<compile_context>
chip_gen: v5e
topology: v5e:2x2
jax: 0.10.0
libtpu: 0.0.40
codegen_flags: <defaults>
</compile_context>

<pallas_src>
import functools

import jax
import jax.numpy as jnp
from jax import lax
from jax.experimental import pallas as pl
from jax.experimental.pallas import tpu as pltpu

_LANES = 1024                    # lane-dense slab width (multiple of 128)
_TARGET_TILE_BYTES = 4 << 20     # ~4 MiB per input tile in its storage dtype
_MAX_BLOCK_ROWS = 2048           # keeps in-kernel f32 temporaries modest
_MIN_PALLAS_ELEMS = 256 * 1024   # below this, fused XLA beats a kernel launch
_VMEM_LIMIT_BYTES = 48 << 20     # below v7x's 64 MiB physical VMEM per TC


def _round_up8(n):
    return ((n + 7) // 8) * 8


def _sse_partial_kernel(x_ref, t_ref, o_ref, *, block_rows, ragged_last,
                        valid_rows_last):
    """Per-block partial sums of (sigmoid(x) - t)^2 as a (1, 8, lanes) tile."""
    x = x_ref[...].astype(jnp.float32)
    t = t_ref[...].astype(jnp.float32)
    d = jax.nn.sigmoid(x) - t
    dd = d * d
    lanes = dd.shape[-1]

    def store(vals):
        # (block_rows, lanes) -> (block_rows//8, 8, lanes) splits only the
        # leading sublane dim (layout-free); sum over axis 0 is pure VALU
        # vadds and the store is fully lane-dense (unmasked vst).
        o_ref[...] = vals.reshape(block_rows // 8, 8, lanes).sum(axis=0)[None]

    if ragged_last:
        last = pl.num_programs(0) - 1

        @pl.when(pl.program_id(0) != last)
        def _():
            store(dd)

        @pl.when(pl.program_id(0) == last)
        def _():
            # Mask rows past the end of the array in the padded last block.
            # Local row indices only, so no int32 overflow for huge inputs.
            row = lax.broadcasted_iota(jnp.int32, (block_rows, 1), 0)
            store(jnp.where(row < valid_rows_last, dd, 0.0))
    else:
        store(dd)


def _rmse_pure_jax(x, t, eps, count):
    d = jax.nn.sigmoid(x.astype(jnp.float32)) - t.astype(jnp.float32)
    return jnp.sqrt(jnp.sum(d * d) / count + jnp.float32(eps))


def rmse_loss(inp, target, eps=1e-06):
    """sqrt(MSE(sigmoid(inp), target) + eps); bulk reduction done in Pallas."""
    assert inp.shape == target.shape
    count = inp.size

    # Fast path: tiny tensors are faster as one fused XLA op.
    if count < _MIN_PALLAS_ELEMS:
        return _rmse_pure_jax(inp, target, eps, count)

    x = inp.reshape(-1)          # contiguous -> zero-copy
    t = target.reshape(-1)

    full_rows = count // _LANES  # >= 256 given _MIN_PALLAS_ELEMS
    main = full_rows * _LANES
    tail = count - main

    if tail == 0:
        x2 = x.reshape(full_rows, _LANES)    # zero-copy
        t2 = t.reshape(full_rows, _LANES)
        tail_sse = None
    else:
        # The <=1023-element tail is reduced in plain JAX; the bulk is a
        # prefix view -- no full-array pad/concatenate copy of the inputs.
        # TODO(synk): if XLA materializes this prefix slice, a fully
        # copy-free ragged path would stream the raw flat refs
        # (memory_space=pl.ANY) with manual DMA instead.
        x2 = lax.slice(x, (0,), (main,)).reshape(full_rows, _LANES)
        t2 = lax.slice(t, (0,), (main,)).reshape(full_rows, _LANES)
        xt = lax.slice(x, (main,), (count,)).astype(jnp.float32)
        tt = lax.slice(t, (main,), (count,)).astype(jnp.float32)
        dt = jax.nn.sigmoid(xt) - tt
        tail_sse = jnp.sum(dt * dt)

    # Byte-based block sizing (~4 MiB per input tile in its storage dtype),
    # capped so grid_n >= 2 and block_rows is a multiple of 8.
    itemsize = max(x.dtype.itemsize, t.dtype.itemsize)
    target_rows = _TARGET_TILE_BYTES // (_LANES * itemsize)
    target_rows = max(8, min(_MAX_BLOCK_ROWS, (target_rows // 8) * 8))
    half_rows = max(8, _round_up8(pl.cdiv(full_rows, 2)))
    block_rows = min(target_rows, half_rows)
    grid_n = pl.cdiv(full_rows, block_rows)
    valid_rows_last = full_rows - (grid_n - 1) * block_rows
    ragged_last = valid_rows_last != block_rows

    kernel = functools.partial(
        _sse_partial_kernel,
        block_rows=block_rows,
        ragged_last=ragged_last,
        valid_rows_last=valid_rows_last,
    )

    partials = pl.pallas_call(
        kernel,
        out_shape=jax.ShapeDtypeStruct((grid_n, 8, _LANES), jnp.float32),
        grid_spec=pltpu.PrefetchScalarGridSpec(
            num_scalar_prefetch=0,
            grid=(grid_n,),
            in_specs=[
                pl.BlockSpec((block_rows, _LANES), lambda i: (i, 0)),
                pl.BlockSpec((block_rows, _LANES), lambda i: (i, 0)),
            ],
            out_specs=pl.BlockSpec((1, 8, _LANES), lambda i: (i, 0, 0)),
        ),
        compiler_params=pltpu.CompilerParams(
            dimension_semantics=("parallel",),
            vmem_limit_bytes=_VMEM_LIMIT_BYTES,
        ),
    )(x2, t2)

    sse = jnp.sum(partials)
    if tail_sse is not None:
        sse = sse + tail_sse
    # Note: f32 divisor is not bit-exact vs f64 for count > 2^24 (harmless).
    return jnp.sqrt(sse / count + jnp.float32(eps))


if __name__ == "__main__":
    key = jax.random.PRNGKey(0)
    k1, k2, k3, k4, k5, k6 = jax.random.split(key, 6)

    def reference(x, t, eps=1e-06):
        d = jax.nn.sigmoid(x.astype(jnp.float32)) - t.astype(jnp.float32)
        return jnp.sqrt(jnp.mean(d * d) + eps)

    # 1) Small, module-consistent NCHW shape (pure-JAX fast path).
    x_small = jax.random.normal(k1, (2, 4, 16, 16), dtype=jnp.float32)
    t_small = jax.random.uniform(k2, (2, 4, 16, 16), dtype=jnp.float32)
    out_small = rmse_loss(x_small, t_small)

    # 2) Larger NCHW shape, element count a multiple of 1024
    #    (Pallas path, zero-copy reshape, no masking).
    x_big = jax.random.normal(k3, (2, 4, 256, 256), dtype=jnp.float32)
    t_big = jax.random.uniform(k4, (2, 4, 256, 256), dtype=jnp.float32)
    out_big = rmse_loss(x_big, t_big)

    # 3) Ragged element count (Pallas path + JAX tail + last-block row mask).
    x_rag = jax.random.normal(k5, (3, 4, 300, 75), dtype=jnp.float32)
    t_rag = jax.random.uniform(k6, (3, 4, 300, 75), dtype=jnp.float32)
    out_rag = rmse_loss(x_rag, t_rag)

    jax.block_until_ready((out_small, out_big, out_rag))

    for out, (xx, tt) in ((out_small, (x_small, t_small)),
                          (out_big, (x_big, t_big)),
                          (out_rag, (x_rag, t_rag))):
        ref = reference(xx, tt)
        assert jnp.allclose(out, ref, rtol=1e-5, atol=1e-6), (out, ref)

    print("KERNEL_OK")
</pallas_src>

<mosaic_0001>
module attributes {stable_mosaic.version = 11 : i64} {
  func.func @_sse_partial_kernel(%arg0: i32, %arg1: memref<256x1024xf32, #tpu.memory_space<vmem>>, %arg2: memref<256x1024xf32, #tpu.memory_space<vmem>>, %arg3: memref<1x8x1024xf32, #tpu.memory_space<vmem>>) attributes {dimension_semantics = [#tpu.dimension_semantics<parallel>], iteration_bounds = array<i64: 2>, scalar_prefetch = 0 : i64, scratch_operands = 0 : i64, tpu.core_type = #tpu.core_type<tc>, window_params = [{transform_indices = @transform_0, window_bounds = array<i64: 256, 1024>}, {transform_indices = @transform_1, window_bounds = array<i64: 256, 1024>}, {transform_indices = @transform_2, window_bounds = array<i64: 1, 8, 1024>}]} {
    %c0 = arith.constant 0 : index
    %c0_0 = arith.constant 0 : index
    %0 = vector.load %arg1[%c0, %c0_0] : memref<256x1024xf32, #tpu.memory_space<vmem>>, vector<256x1024xf32>
    %c0_1 = arith.constant 0 : index
    %c0_2 = arith.constant 0 : index
    %1 = vector.load %arg2[%c0_1, %c0_2] : memref<256x1024xf32, #tpu.memory_space<vmem>>, vector<256x1024xf32>
    %2 = arith.negf %0 : vector<256x1024xf32>
    %3 = math.exp %2 : vector<256x1024xf32>
    %cst = arith.constant 1.000000e+00 : f32
    %4 = vector.broadcast %cst : f32 to vector<256x1024xf32>
    %5 = arith.addf %4, %3 : vector<256x1024xf32>
    %6 = arith.divf %4, %5 : vector<256x1024xf32>
    %7 = arith.subf %6, %1 : vector<256x1024xf32>
    %8 = arith.mulf %7, %7 : vector<256x1024xf32>
    %9 = vector.shape_cast %8 : vector<256x1024xf32> to vector<32x8x1024xf32>
    %cst_3 = arith.constant dense<0.000000e+00> : vector<8x1024xf32>
    %10 = vector.multi_reduction <add>, %9, %cst_3 [0] : vector<32x8x1024xf32> to vector<8x1024xf32>
    %11 = vector.shape_cast %10 : vector<8x1024xf32> to vector<1x8x1024xf32>
    %c0_4 = arith.constant 0 : index
    %c0_5 = arith.constant 0 : index
    %c0_6 = arith.constant 0 : index
    %12 = vector.load %arg3[%c0_4, %c0_5, %c0_6] : memref<1x8x1024xf32, #tpu.memory_space<vmem>>, vector<1x8x1024xf32>
    tpu.vector_store %arg3[%c0_4, %c0_5, %c0_6], %11 {strides = array<i32>} : memref<1x8x1024xf32, #tpu.memory_space<vmem>>, vector<1x8x1024xf32>,
    return
  }
  func.func @transform_0(%arg0: i32) -> (i32, i32) {
    %c0_i32 = arith.constant 0 : i32
    %c0_i32_0 = arith.constant 0 : i32
    return %arg0, %c0_i32 : i32, i32
  }
  func.func @transform_1(%arg0: i32) -> (i32, i32) {
    %c0_i32 = arith.constant 0 : i32
    %c0_i32_0 = arith.constant 0 : i32
    return %arg0, %c0_i32 : i32, i32
  }
  func.func @transform_2(%arg0: i32) -> (i32, i32, i32) {
    %c0_i32 = arith.constant 0 : i32
    %c0_i32_0 = arith.constant 0 : i32
    %c0_i32_1 = arith.constant 0 : i32
    return %arg0, %c0_i32, %c0_i32_0 : i32, i32, i32
  }
}

</mosaic_0001>

<llo_original>
// kernel: tpu_custom_call.1
$region0: #{tpu_custom_call.1}
  #allocation0 [shape = 'u32[]', space=smem, size = 0x4, offset = 0x4, fixed_abs, tag = 'smem constant byte address 0x4 - core index']
  #allocation1 [shape = 'u32[72,128]{1,0:T(1,128)}', space=vmem, size = 0x9000, scoped, tag = 'internal scratch']
  %s0 = inlined_call_operand.hbm [shape: f32[512,1024], index: 0, kind: input, shape index: {}]
  %s1 = inlined_call_operand.hbm [shape: f32[512,1024], index: 1, kind: input, shape index: {}]
  %s2 = inlined_call_operand.hbm [shape: f32[2,8,1024], index: 2, kind: output, shape index: {}]
  %s3 = sld [smem:[#allocation0]]
  $region49: #{tpu_custom_call.1} parent=0
    _
  %s5 = ssub.s32 1, %s3
  %s6 = scalar_select 0, %s5, %s3
  $region1: #{tpu_custom_call.1} parent=0
    #allocation2 [shape = 'u8[2097152]{0}', space=vmem, size = 0x200000, scoped, tag = 'input window, operand 0']
    #allocation3 [shape = 's32[2]{0}', space=sflag, size = 0x8, scoped, tag = 'scoped memory for tpu_custom_call.1']
    #allocation4 [shape = 's32[2]{0}', space=sflag, size = 0x8, scoped, tag = 'scoped memory for tpu_custom_call.1']
    #allocation5 [shape = 'u8[2097152]{0}', space=vmem, size = 0x200000, scoped, tag = 'input window, operand 1']
    #allocation6 [shape = 's32[2]{0}', space=sflag, size = 0x8, scoped, tag = 'scoped memory for tpu_custom_call.1']
    #allocation7 [shape = 'u8[65536]{0}', space=vmem, size = 0x10000, scoped, tag = 'output window, operand 0']
    %7 = vsyncpa [#allocation3], 0
    %s8 = scalar_lea.sflag [#allocation3], 1
    %9 = vsyncpa %s8, 0
    %10 = vsyncpa [#allocation6], 0
    %s11 = scalar_lea.sflag [#allocation6], 1
    %12 = vsyncpa %s11, 0
    %13 = vsyncpa [#allocation4], 0
    %s14 = scalar_lea.sflag [#allocation4], 1
    %15 = vsyncpa %s14, 0
    loop: start=0, step=1, limit=4
    $region2: #{tpu_custom_call.1} parent=1 // loop_pre_header
      _
    $region3: #{tpu_custom_call.1} parent=1 // loop_header
      %s17 = sphi 0, %s21
      %p18 = scmp.ge.s32.totalorder %s17, 4
      %s27 = sphi 0, %s29
      %s30 = sphi 0, %s27
      %s31 = sphi 0, %s30
      %s47 = sphi 0, %s31
      %s53 = sphi 0, %s55
      %s56 = sphi 0, %s53
      %s57 = sphi 0, %s56
      %s73 = sphi 0, %s57
      %s79 = sphi 0, %s81
      %s82 = sphi 0, %s79
      %s83 = sphi 0, %s82
      %s99 = sphi 0, %s83
    $region4: #{tpu_custom_call.1} parent=1 // loop_header_branch
      %20 = sbr.rel (%p18) target = $region8
    $region5: #{tpu_custom_call.1} parent=1 // loop_body
      %s22 = ssub.s32 %s17, 1
      %s23 = ssub.s32 %s17, 2
      %s24 = sadd.s32 %s17, 1
      %s25 = ssub.s32 %s17, %s24
      %p26 = scmp.eq.s32.totalorder %s25, 0
      %s28 = sadd.s32 %s27, 1
      %s29 = scalar_select %p26, %s27, %s28
      %p32 = pneg %p26
      %p33 = scmp.eq.s32.totalorder %s17, 1
      %p34 = por %p32, %p33
      %p35 = scmp.ne.s32.totalorder %s27, %s30
      %p36 = scmp.eq.s32.totalorder %s17, 0
      %p37 = por %p35, %p36
      %p38 = scmp.ne.s32.totalorder %s27, %s30
      %p39 = scmp.eq.s32.totalorder %s22, 1
      %p40 = por %p38, %p39
      %p41 = scmp.ne.s32.totalorder %s30, %s31
      %p42 = scmp.eq.s32.totalorder %s22, 0
      %p43 = por %p41, %p42
      %p44 = scmp.ne.s32.totalorder %s30, %s31
      %p45 = scmp.eq.s32.totalorder %s23, 1
      %p46 = por %p44, %p45
      %p48 = scmp.ne.s32.totalorder %s31, %s47
      %p49 = scmp.eq.s32.totalorder %s23, 0
      %p50 = por %p48, %p49
      %s51 = ssub.s32 %s17, %s24
      %p52 = scmp.eq.s32.totalorder %s51, 0
      %s54 = sadd.s32 %s53, 1
      %s55 = scalar_select %p52, %s53, %s54
      %p58 = pneg %p52
      %p59 = scmp.eq.s32.totalorder %s17, 1
      %p60 = por %p58, %p59
      %p61 = scmp.ne.s32.totalorder %s53, %s56
      %p62 = scmp.eq.s32.totalorder %s17, 0
      %p63 = por %p61, %p62
      %p64 = scmp.ne.s32.totalorder %s53, %s56
      %p65 = scmp.eq.s32.totalorder %s22, 1
      %p66 = por %p64, %p65
      %p67 = scmp.ne.s32.totalorder %s56, %s57
      %p68 = scmp.eq.s32.totalorder %s22, 0
      %p69 = por %p67, %p68
      %p70 = scmp.ne.s32.totalorder %s56, %s57
      %p71 = scmp.eq.s32.totalorder %s23, 1
      %p72 = por %p70, %p71
      %p74 = scmp.ne.s32.totalorder %s57, %s73
      %p75 = scmp.eq.s32.totalorder %s23, 0
      %p76 = por %p74, %p75
      %s77 = ssub.s32 %s17, %s24
      %p78 = scmp.eq.s32.totalorder %s77, 0
      %s80 = sadd.s32 %s79, 1
      %s81 = scalar_select %p78, %s79, %s80
      %p84 = pneg %p78
      %p85 = scmp.eq.s32.totalorder %s17, 1
      %p86 = por %p84, %p85
      %p87 = scmp.ne.s32.totalorder %s79, %s82
      %p88 = scmp.eq.s32.totalorder %s17, 0
      %p89 = por %p87, %p88
      %p90 = scmp.ne.s32.totalorder %s79, %s82
      %p91 = scmp.eq.s32.totalorder %s22, 1
      %p92 = por %p90, %p91
      %p93 = scmp.ne.s32.totalorder %s82, %s83
      %p94 = scmp.eq.s32.totalorder %s22, 0
      %p95 = por %p93, %p94
      %p96 = scmp.ne.s32.totalorder %s82, %s83
      %p97 = scmp.eq.s32.totalorder %s23, 1
      %p98 = por %p96, %p97
      %p100 = scmp.ne.s32.totalorder %s83, %s99
      %p101 = scmp.eq.s32.totalorder %s23, 0
      %p102 = por %p100, %p101
      %p103 = scmp.le.s32.totalorder 1, %s17
      %p104 = scmp.lt.s32.totalorder %s17, 3
      %p105 = pnand %p103, %p104
      %p106 = pneg %p105
      // Predicated region
      $region9: #{tpu_custom_call.1} parent=5 // pred_check
        _
      $region10: #{tpu_custom_call.1} parent=5 // pred_check_branch
        %108 = sbr.rel (%p105) target = $region12
      $region11: #{tpu_custom_call.1} parent=5 // pred_region
        %s109 = ssub.s32 %s17, 1
      $region12: #{tpu_custom_call.1} parent=5 // pred_fallthru
        _
      %p110 = scmp.lt.s32.totalorder %s17, 2
      // Predicated region
      $region13: #{tpu_custom_call.1} parent=5 // pred_check
        %p111 = pneg %p110
      $region14: #{tpu_custom_call.1} parent=5 // pred_check_branch
        %113 = sbr.rel (%p111) target = $region16
      $region15: #{tpu_custom_call.1} parent=5 // pred_region
        // Predicated region
        $region17: #{tpu_custom_call.1} parent=15 // pred_check
          %p114 = pneg %p37
        $region18: #{tpu_custom_call.1} parent=15 // pred_check_branch
          %116 = sbr.rel (%p114) target = $region20
        $region19: #{tpu_custom_call.1} parent=15 // pred_region
          %s117 = sand.u32 %s27, 1
          %s118 = scalar_lea.sflag [#allocation3], %s117
          %s119 = sand.u32 %s27, 1
          %s120 = smul.addr %s119, 2048
          %s121 = scalar_lea.vmem [#allocation2], %s120
          %s122 = smul.u32 32, %s17
          %124 = vsyncadd %s118, 0
          %s125 = smul.addr %s122, 8
          %s126 = smul.addr %s125, 8
          %s127 = scalar_lea.hbm %s0, %s126
          %s128 = sshll.u32 %s127, 4
          %s129 = int_to_ptr.hbm [resolvable:$true] %s128
          %s130 = sshll.u32 %s121, 4
          %s131 = int_to_ptr.vmem [resolvable:$true] %s130
          %136 = dma.hbm_to_vmem [thread:$0]  %s129, 32768, %s131, %s118, 1024, 1024, 64
        $region20: #{tpu_custom_call.1} parent=15 // pred_fallthru
          _
        // Predicated region
        $region21: #{tpu_custom_call.1} parent=15 // pred_check
          %p137 = pneg %p63
        $region22: #{tpu_custom_call.1} parent=15 // pred_check_branch
          %139 = sbr.rel (%p137) target = $region24
        $region23: #{tpu_custom_call.1} parent=15 // pred_region
          %s140 = sand.u32 %s53, 1
          %s141 = scalar_lea.sflag [#allocation6], %s140
          %s142 = sand.u32 %s53, 1
          %s143 = smul.addr %s142, 2048
          %s144 = scalar_lea.vmem [#allocation5], %s143
          %s145 = smul.u32 32, %s17
          %147 = vsyncadd %s141, 0
          %s148 = smul.addr %s145, 8
          %s149 = smul.addr %s148, 8
          %s150 = scalar_lea.hbm %s1, %s149
          %s151 = sshll.u32 %s150, 4
          %s152 = int_to_ptr.hbm [resolvable:$true] %s151
          %s153 = sshll.u32 %s144, 4
          %s154 = int_to_ptr.vmem [resolvable:$true] %s153
          %159 = dma.hbm_to_vmem [thread:$0]  %s152, 32768, %s154, %s141, 1024, 1024, 64
        $region24: #{tpu_custom_call.1} parent=15 // pred_fallthru
          _
      $region16: #{tpu_custom_call.1} parent=5 // pred_fallthru
        _
      %p160 = scmp.le.s32.totalorder 1, %s17
      %p161 = scmp.lt.s32.totalorder %s17, 3
      %p162 = pnand %p160, %p161
      %p163 = pneg %p162
      // Predicated region
      $region25: #{tpu_custom_call.1} parent=5 // pred_check
        _
      $region26: #{tpu_custom_call.1} parent=5 // pred_check_branch
        %165 = sbr.rel (%p162) target = $region28
      $region27: #{tpu_custom_call.1} parent=5 // pred_region
        %s166 = ssub.s32 %s17, 1
        %s167 = sand.u32 %s30, 1
        %s168 = scalar_lea.sflag [#allocation3], %s167
        %s169 = sand.u32 %s30, 1
        %s170 = smul.addr %s169, 2048
        %s171 = scalar_lea.vmem [#allocation2], %s170
        // Predicated region
        $region29: #{tpu_custom_call.1} parent=27 // pred_check
          %p172 = pneg %p43
        $region30: #{tpu_custom_call.1} parent=27 // pred_check_branch
          %174 = sbr.rel (%p172) target = $region32
        $region31: #{tpu_custom_call.1} parent=27 // pred_region
          %176 = dma.done %s168, 32768
        $region32: #{tpu_custom_call.1} parent=27 // pred_fallthru
          _
        %s177 = sand.u32 %s56, 1
        %s178 = scalar_lea.sflag [#allocation6], %s177
        %s179 = sand.u32 %s56, 1
        %s180 = smul.addr %s179, 2048
        %s181 = scalar_lea.vmem [#allocation5], %s180
        // Predicated region
        $region33: #{tpu_custom_call.1} parent=27 // pred_check
          %p182 = pneg %p69
        $region34: #{tpu_custom_call.1} parent=27 // pred_check_branch
          %184 = sbr.rel (%p182) target = $region36
        $region35: #{tpu_custom_call.1} parent=27 // pred_region
          %186 = dma.done %s178, 32768
        $region36: #{tpu_custom_call.1} parent=27 // pred_fallthru
          _
        %s187 = sand.u32 %s30, 1
        %s188 = scalar_lea.sflag [#allocation3], %s187
        %s189 = sand.u32 %s30, 1
        %s190 = smul.addr %s189, 2048
        %s191 = scalar_lea.vmem [#allocation2], %s190
        %p192 = pneg %p43
        %p193 = pneg %p40
        %s194 = sand.u32 %s56, 1
        %s195 = scalar_lea.sflag [#allocation6], %s194
        %s196 = sand.u32 %s56, 1
        %s197 = smul.addr %s196, 2048
        %s198 = scalar_lea.vmem [#allocation5], %s197
        %p199 = pneg %p69
        %p200 = pneg %p66
        %p201 = pneg %p95
        %p202 = pneg %p92
        %s203 = sand.u32 %s82, 1
        %s204 = scalar_lea.sflag [#allocation4], %s203
        %s205 = sand.u32 %s82, 1
        %s206 = smul.addr %s205, 64
        %s207 = scalar_lea.vmem [#allocation7], %s206
        %s208 = smul.u32 32, %s22
        %s209 = smul.u32 32, %s22
        %v210 = vld [vmem:[%s171] sm:$0xff]
        %v211 = vld [vmem:[%s171 + $0x8] sm:$0xff]
        %v212 = vld [vmem:[%s171 + $0x10] sm:$0xff]
        %v213 = vld [vmem:[%s171 + $0x18] sm:$0xff]
        %v214 = vld [vmem:[%s171 + $0x20] sm:$0xff]
        %v215 = vld [vmem:[%s171 + $0x28] sm:$0xff]
        %v216 = vld [vmem:[%s171 + $0x30] sm:$0xff]
        %v217 = vld [vmem:[%s171 + $0x38] sm:$0xff]
        %v218 = vld [vmem:[%s171 + $0x40] sm:$0xff]
        %v219 = vld [vmem:[%s171 + $0x48] sm:$0xff]
        %v220 = vld [vmem:[%s171 + $0x50] sm:$0xff]
        %v221 = vld [vmem:[%s171 + $0x58] sm:$0xff]
        %v222 = vld [vmem:[%s171 + $0x60] sm:$0xff]
        %v223 = vld [vmem:[%s171 + $0x68] sm:$0xff]
        %v224 = vld [vmem:[%s171 + $0x70] sm:$0xff]
        %v225 = vld [vmem:[%s171 + $0x78] sm:$0xff]
        %v226 = vld [vmem:[%s171 + $0x80] sm:$0xff]
        %v227 = vld [vmem:[%s171 + $0x88] sm:$0xff]
        %v228 = vld [vmem:[%s171 + $0x90] sm:$0xff]
        %v229 = vld [vmem:[%s171 + $0x98] sm:$0xff]
        %v230 = vld [vmem:[%s171 + $0xa0] sm:$0xff]
        %v231 = vld [vmem:[%s171 + $0xa8] sm:$0xff]
        %v232 = vld [vmem:[%s171 + $0xb0] sm:$0xff]
        %v233 = vld [vmem:[%s171 + $0xb8] sm:$0xff]
        %v234 = vld [vmem:[%s171 + $0xc0] sm:$0xff]
        %v235 = vld [vmem:[%s171 + $0xc8] sm:$0xff]
        %v236 = vld [vmem:[%s171 + $0xd0] sm:$0xff]
        %v237 = vld [vmem:[%s171 + $0xd8] sm:$0xff]
        %v238 = vld [vmem:[%s171 + $0xe0] sm:$0xff]
        %v239 = vld [vmem:[%s171 + $0xe8] sm:$0xff]
        %v240 = vld [vmem:[%s171 + $0xf0] sm:$0xff]
        %v241 = vld [vmem:[%s171 + $0xf8] sm:$0xff]
        %v242 = vld [vmem:[%s171 + $0x100] sm:$0xff]
        %v243 = vld [vmem:[%s171 + $0x108] sm:$0xff]
        %v244 = vld [vmem:[%s171 + $0x110] sm:$0xff]
        %v245 = vld [vmem:[%s171 + $0x118] sm:$0xff]
        %v246 = vld [vmem:[%s171 + $0x120] sm:$0xff]
        %v247 = vld [vmem:[%s171 + $0x128] sm:$0xff]
        %v248 = vld [vmem:[%s171 + $0x130] sm:$0xff]
        %v249 = vld [vmem:[%s171 + $0x138] sm:$0xff]
        %v250 = vld [vmem:[%s171 + $0x140] sm:$0xff]
        %v251 = vld [vmem:[%s171 + $0x148] sm:$0xff]
        %v252 = vld [vmem:[%s171 + $0x150] sm:$0xff]
        %v253 = vld [vmem:[%s171 + $0x158] sm:$0xff]
        %v254 = vld [vmem:[%s171 + $0x160] sm:$0xff]
        %v255 = vld [vmem:[%s171 + $0x168] sm:$0xff]
        %v256 = vld [vmem:[%s171 + $0x170] sm:$0xff]
        %v257 = vld [vmem:[%s171 + $0x178] sm:$0xff]
        %v258 = vld [vmem:[%s171 + $0x180] sm:$0xff]
        %v259 = vld [vmem:[%s171 + $0x188] sm:$0xff]
        %v260 = vld [vmem:[%s171 + $0x190] sm:$0xff]
        %v261 = vld [vmem:[%s171 + $0x198] sm:$0xff]
        %v262 = vld [vmem:[%s171 + $0x1a0] sm:$0xff]
        %v263 = vld [vmem:[%s171 + $0x1a8] sm:$0xff]
        %v264 = vld [vmem:[%s171 + $0x1b0] sm:$0xff]
        %v265 = vld [vmem:[%s171 + $0x1b8] sm:$0xff]
        %v266 = vld [vmem:[%s171 + $0x1c0] sm:$0xff]
        %v267 = vld [vmem:[%s171 + $0x1c8] sm:$0xff]
        %v268 = vld [vmem:[%s171 + $0x1d0] sm:$0xff]
        %v269 = vld [vmem:[%s171 + $0x1d8] sm:$0xff]
        %v270 = vld [vmem:[%s171 + $0x1e0] sm:$0xff]
        %v271 = vld [vmem:[%s171 + $0x1e8] sm:$0xff]
        %v272 = vld [vmem:[%s171 + $0x1f0] sm:$0xff]
        %v273 = vld [vmem:[%s171 + $0x1f8] sm:$0xff]
        %v274 = vld [vmem:[%s171 + $0x200] sm:$0xff]
        %v275 = vld [vmem:[%s171 + $0x208] sm:$0xff]
        %v276 = vld [vmem:[%s171 + $0x210] sm:$0xff]
        %v277 = vld [vmem:[%s171 + $0x218] sm:$0xff]
        %v278 = vld [vmem:[%s171 + $0x220] sm:$0xff]
        %v279 = vld [vmem:[%s171 + $0x228] sm:$0xff]
        %v280 = vld [vmem:[%s171 + $0x230] sm:$0xff]
        %v281 = vld [vmem:[%s171 + $0x238] sm:$0xff]
        %v282 = vld [vmem:[%s171 + $0x240] sm:$0xff]
        %v283 = vld [vmem:[%s171 + $0x248] sm:$0xff]
        %v284 = vld [vmem:[%s171 + $0x250] sm:$0xff]
        %v285 = vld [vmem:[%s171 + $0x258] sm:$0xff]
        %v286 = vld [vmem:[%s171 + $0x260] sm:$0xff]
        %v287 = vld [vmem:[%s171 + $0x268] sm:$0xff]
        %v288 = vld [vmem:[%s171 + $0x270] sm:$0xff]
        %v289 = vld [vmem:[%s171 + $0x278] sm:$0xff]
        %v290 = vld [vmem:[%s171 + $0x280] sm:$0xff]
        %v291 = vld [vmem:[%s171 + $0x288] sm:$0xff]
        %v292 = vld [vmem:[%s171 + $0x290] sm:$0xff]
        %v293 = vld [vmem:[%s171 + $0x298] sm:$0xff]
        %v294 = vld [vmem:[%s171 + $0x2a0] sm:$0xff]
        %v295 = vld [vmem:[%s171 + $0x2a8] sm:$0xff]
        %v296 = vld [vmem:[%s171 + $0x2b0] sm:$0xff]
        %v297 = vld [vmem:[%s171 + $0x2b8] sm:$0xff]
        %v298 = vld [vmem:[%s171 + $0x2c0] sm:$0xff]
        %v299 = vld [vmem:[%s171 + $0x2c8] sm:$0xff]
        %v300 = vld [vmem:[%s171 + $0x2d0] sm:$0xff]
        %v301 = vld [vmem:[%s171 + $0x2d8] sm:$0xff]
        %v302 = vld [vmem:[%s171 + $0x2e0] sm:$0xff]
        %v303 = vld [vmem:[%s171 + $0x2e8] sm:$0xff]
        %v304 = vld [vmem:[%s171 + $0x2f0] sm:$0xff]
        %v305 = vld [vmem:[%s171 + $0x2f8] sm:$0xff]
        %v306 = vld [vmem:[%s171 + $0x300] sm:$0xff]
        %v307 = vld [vmem:[%s171 + $0x308] sm:$0xff]
        %v308 = vld [vmem:[%s171 + $0x310] sm:$0xff]
        %v309 = vld [vmem:[%s171 + $0x318] sm:$0xff]
        %v310 = vld [vmem:[%s171 + $0x320] sm:$0xff]
        %v311 = vld [vmem:[%s171 + $0x328] sm:$0xff]
        %v312 = vld [vmem:[%s171 + $0x330] sm:$0xff]
        %v313 = vld [vmem:[%s171 + $0x338] sm:$0xff]
        %v314 = vld [vmem:[%s171 + $0x340] sm:$0xff]
        %v315 = vld [vmem:[%s171 + $0x348] sm:$0xff]
        %v316 = vld [vmem:[%s171 + $0x350] sm:$0xff]
        %v317 = vld [vmem:[%s171 + $0x358] sm:$0xff]
        %v318 = vld [vmem:[%s171 + $0x360] sm:$0xff]
        %v319 = vld [vmem:[%s171 + $0x368] sm:$0xff]
        %v320 = vld [vmem:[%s171 + $0x370] sm:$0xff]
        %v321 = vld [vmem:[%s171 + $0x378] sm:$0xff]
        %v322 = vld [vmem:[%s171 + $0x380] sm:$0xff]
        %v323 = vld [vmem:[%s171 + $0x388] sm:$0xff]
        %v324 = vld [vmem:[%s171 + $0x390] sm:$0xff]
        %v325 = vld [vmem:[%s171 + $0x398] sm:$0xff]
        %v326 = vld [vmem:[%s171 + $0x3a0] sm:$0xff]
        %v327 = vld [vmem:[%s171 + $0x3a8] sm:$0xff]
        %v328 = vld [vmem:[%s171 + $0x3b0] sm:$0xff]
        %v329 = vld [vmem:[%s171 + $0x3b8] sm:$0xff]
        %v330 = vld [vmem:[%s171 + $0x3c0] sm:$0xff]
        %v331 = vld [vmem:[%s171 + $0x3c8] sm:$0xff]
        %v332 = vld [vmem:[%s171 + $0x3d0] sm:$0xff]
        %v333 = vld [vmem:[%s171 + $0x3d8] sm:$0xff]
        %v334 = vld [vmem:[%s171 + $0x3e0] sm:$0xff]
        %v335 = vld [vmem:[%s171 + $0x3e8] sm:$0xff]
        %v336 = vld [vmem:[%s171 + $0x3f0] sm:$0xff]
        %v337 = vld [vmem:[%s171 + $0x3f8] sm:$0xff]
        %v338 = vld [vmem:[%s171 + $0x400] sm:$0xff]
        %v339 = vld [vmem:[%s171 + $0x408] sm:$0xff]
        %v340 = vld [vmem:[%s171 + $0x410] sm:$0xff]
        %v341 = vld [vmem:[%s171 + $0x418] sm:$0xff]
        %v342 = vld [vmem:[%s171 + $0x420] sm:$0xff]
        %v343 = vld [vmem:[%s171 + $0x428] sm:$0xff]
        %v344 = vld [vmem:[%s171 + $0x430] sm:$0xff]
        %v345 = vld [vmem:[%s171 + $0x438] sm:$0xff]
        %v346 = vld [vmem:[%s171 + $0x440] sm:$0xff]
        %v347 = vld [vmem:[%s171 + $0x448] sm:$0xff]
        %v348 = vld [vmem:[%s171 + $0x450] sm:$0xff]
        %v349 = vld [vmem:[%s171 + $0x458] sm:$0xff]
        %v350 = vld [vmem:[%s171 + $0x460] sm:$0xff]
        %v351 = vld [vmem:[%s171 + $0x468] sm:$0xff]
        %v352 = vld [vmem:[%s171 + $0x470] sm:$0xff]
        %v353 = vld [vmem:[%s171 + $0x478] sm:$0xff]
        %v354 = vld [vmem:[%s171 + $0x480] sm:$0xff]
        %v355 = vld [vmem:[%s171 + $0x488] sm:$0xff]
        %v356 = vld [vmem:[%s171 + $0x490] sm:$0xff]
        %v357 = vld [vmem:[%s171 + $0x498] sm:$0xff]
        %v358 = vld [vmem:[%s171 + $0x4a0] sm:$0xff]
        %v359 = vld [vmem:[%s171 + $0x4a8] sm:$0xff]
        %v360 = vld [vmem:[%s171 + $0x4b0] sm:$0xff]
        %v361 = vld [vmem:[%s171 + $0x4b8] sm:$0xff]
        %v362 = vld [vmem:[%s171 + $0x4c0] sm:$0xff]
        %v363 = vld [vmem:[%s171 + $0x4c8] sm:$0xff]
        %v364 = vld [vmem:[%s171 + $0x4d0] sm:$0xff]
        %v365 = vld [vmem:[%s171 + $0x4d8] sm:$0xff]
        %v366 = vld [vmem:[%s171 + $0x4e0] sm:$0xff]
        %v367 = vld [vmem:[%s171 + $0x4e8] sm:$0xff]
        %v368 = vld [vmem:[%s171 + $0x4f0] sm:$0xff]
        %v369 = vld [vmem:[%s171 + $0x4f8] sm:$0xff]
        %v370 = vld [vmem:[%s171 + $0x500] sm:$0xff]
        %v371 = vld [vmem:[%s171 + $0x508] sm:$0xff]
        %v372 = vld [vmem:[%s171 + $0x510] sm:$0xff]
        %v373 = vld [vmem:[%s171 + $0x518] sm:$0xff]
        %v374 = vld [vmem:[%s171 + $0x520] sm:$0xff]
        %v375 = vld [vmem:[%s171 + $0x528] sm:$0xff]
        %v376 = vld [vmem:[%s171 + $0x530] sm:$0xff]
        %v377 = vld [vmem:[%s171 + $0x538] sm:$0xff]
        %v378 = vld [vmem:[%s171 + $0x540] sm:$0xff]
        %v379 = vld [vmem:[%s171 + $0x548] sm:$0xff]
        %v380 = vld [vmem:[%s171 + $0x550] sm:$0xff]
        %v381 = vld [vmem:[%s171 + $0x558] sm:$0xff]
        %v382 = vld [vmem:[%s171 + $0x560] sm:$0xff]
        %v383 = vld [vmem:[%s171 + $0x568] sm:$0xff]
        %v384 = vld [vmem:[%s171 + $0x570] sm:$0xff]
        %v385 = vld [vmem:[%s171 + $0x578] sm:$0xff]
        %v386 = vld [vmem:[%s171 + $0x580] sm:$0xff]
        %v387 = vld [vmem:[%s171 + $0x588] sm:$0xff]
        %v388 = vld [vmem:[%s171 + $0x590] sm:$0xff]
        %v389 = vld [vmem:[%s171 + $0x598] sm:$0xff]
        %v390 = vld [vmem:[%s171 + $0x5a0] sm:$0xff]
        %v391 = vld [vmem:[%s171 + $0x5a8] sm:$0xff]
        %v392 = vld [vmem:[%s171 + $0x5b0] sm:$0xff]
        %v393 = vld [vmem:[%s171 + $0x5b8] sm:$0xff]
        %v394 = vld [vmem:[%s171 + $0x5c0] sm:$0xff]
        %v395 = vld [vmem:[%s171 + $0x5c8] sm:$0xff]
        %v396 = vld [vmem:[%s171 + $0x5d0] sm:$0xff]
        %v397 = vld [vmem:[%s171 + $0x5d8] sm:$0xff]
        %v398 = vld [vmem:[%s171 + $0x5e0] sm:$0xff]
        %v399 = vld [vmem:[%s171 + $0x5e8] sm:$0xff]
        %v400 = vld [vmem:[%s171 + $0x5f0] sm:$0xff]
        %v401 = vld [vmem:[%s171 + $0x5f8] sm:$0xff]
        %v402 = vld [vmem:[%s171 + $0x600] sm:$0xff]
        %v403 = vld [vmem:[%s171 + $0x608] sm:$0xff]
        %v404 = vld [vmem:[%s171 + $0x610] sm:$0xff]
        %v405 = vld [vmem:[%s171 + $0x618] sm:$0xff]
        %v406 = vld [vmem:[%s171 + $0x620] sm:$0xff]
        %v407 = vld [vmem:[%s171 + $0x628] sm:$0xff]
        %v408 = vld [vmem:[%s171 + $0x630] sm:$0xff]
        %v409 = vld [vmem:[%s171 + $0x638] sm:$0xff]
        %v410 = vld [vmem:[%s171 + $0x640] sm:$0xff]
        %v411 = vld [vmem:[%s171 + $0x648] sm:$0xff]
        %v412 = vld [vmem:[%s171 + $0x650] sm:$0xff]
        %v413 = vld [vmem:[%s171 + $0x658] sm:$0xff]
        %v414 = vld [vmem:[%s171 + $0x660] sm:$0xff]
        %v415 = vld [vmem:[%s171 + $0x668] sm:$0xff]
        %v416 = vld [vmem:[%s171 + $0x670] sm:$0xff]
        %v417 = vld [vmem:[%s171 + $0x678] sm:$0xff]
        %v418 = vld [vmem:[%s171 + $0x680] sm:$0xff]
        %v419 = vld [vmem:[%s171 + $0x688] sm:$0xff]
        %v420 = vld [vmem:[%s171 + $0x690] sm:$0xff]
        %v421 = vld [vmem:[%s171 + $0x698] sm:$0xff]
        %v422 = vld [vmem:[%s171 + $0x6a0] sm:$0xff]
        %v423 = vld [vmem:[%s171 + $0x6a8] sm:$0xff]
        %v424 = vld [vmem:[%s171 + $0x6b0] sm:$0xff]
        %v425 = vld [vmem:[%s171 + $0x6b8] sm:$0xff]
        %v426 = vld [vmem:[%s171 + $0x6c0] sm:$0xff]
        %v427 = vld [vmem:[%s171 + $0x6c8] sm:$0xff]
        %v428 = vld [vmem:[%s171 + $0x6d0] sm:$0xff]
        %v429 = vld [vmem:[%s171 + $0x6d8] sm:$0xff]
        %v430 = vld [vmem:[%s171 + $0x6e0] sm:$0xff]
        %v431 = vld [vmem:[%s171 + $0x6e8] sm:$0xff]
        %v432 = vld [vmem:[%s171 + $0x6f0] sm:$0xff]
        %v433 = vld [vmem:[%s171 + $0x6f8] sm:$0xff]
        %v434 = vld [vmem:[%s171 + $0x700] sm:$0xff]
        %v435 = vld [vmem:[%s171 + $0x708] sm:$0xff]
        %v436 = vld [vmem:[%s171 + $0x710] sm:$0xff]
        %v437 = vld [vmem:[%s171 + $0x718] sm:$0xff]
        %v438 = vld [vmem:[%s171 + $0x720] sm:$0xff]
        %v439 = vld [vmem:[%s171 + $0x728] sm:$0xff]
        %v440 = vld [vmem:[%s171 + $0x730] sm:$0xff]
        %v441 = vld [vmem:[%s171 + $0x738] sm:$0xff]
        %v442 = vld [vmem:[%s171 + $0x740] sm:$0xff]
        %v443 = vld [vmem:[%s171 + $0x748] sm:$0xff]
        %v444 = vld [vmem:[%s171 + $0x750] sm:$0xff]
        %v445 = vld [vmem:[%s171 + $0x758] sm:$0xff]
        %v446 = vld [vmem:[%s171 + $0x760] sm:$0xff]
        %v447 = vld [vmem:[%s171 + $0x768] sm:$0xff]
        %v448 = vld [vmem:[%s171 + $0x770] sm:$0xff]
        %v449 = vld [vmem:[%s171 + $0x778] sm:$0xff]
        %v450 = vld [vmem:[%s171 + $0x780] sm:$0xff]
        %v451 = vld [vmem:[%s171 + $0x788] sm:$0xff]
        %v452 = vld [vmem:[%s171 + $0x790] sm:$0xff]
        %v453 = vld [vmem:[%s171 + $0x798] sm:$0xff]
        %v454 = vld [vmem:[%s171 + $0x7a0] sm:$0xff]
        %v455 = vld [vmem:[%s171 + $0x7a8] sm:$0xff]
        %v456 = vld [vmem:[%s171 + $0x7b0] sm:$0xff]
        %v457 = vld [vmem:[%s171 + $0x7b8] sm:$0xff]
        %v458 = vld [vmem:[%s171 + $0x7c0] sm:$0xff]
        %v459 = vld [vmem:[%s171 + $0x7c8] sm:$0xff]
        %v460 = vld [vmem:[%s171 + $0x7d0] sm:$0xff]
        %v461 = vld [vmem:[%s171 + $0x7d8] sm:$0xff]
        %v462 = vld [vmem:[%s171 + $0x7e0] sm:$0xff]
        %v463 = vld [vmem:[%s171 + $0x7e8] sm:$0xff]
        %v464 = vld [vmem:[%s171 + $0x7f0] sm:$0xff]
        %v465 = vld [vmem:[%s171 + $0x7f8] sm:$0xff]
        %v466 = vld [vmem:[%s181] sm:$0xff]
        %v467 = vld [vmem:[%s181 + $0x8] sm:$0xff]
        %v468 = vld [vmem:[%s181 + $0x10] sm:$0xff]
        %v469 = vld [vmem:[%s181 + $0x18] sm:$0xff]
        %v470 = vld [vmem:[%s181 + $0x20] sm:$0xff]
        %v471 = vld [vmem:[%s181 + $0x28] sm:$0xff]
        %v472 = vld [vmem:[%s181 + $0x30] sm:$0xff]
        %v473 = vld [vmem:[%s181 + $0x38] sm:$0xff]
        %v474 = vld [vmem:[%s181 + $0x40] sm:$0xff]
        %v475 = vld [vmem:[%s181 + $0x48] sm:$0xff]
        %v476 = vld [vmem:[%s181 + $0x50] sm:$0xff]
        %v477 = vld [vmem:[%s181 + $0x58] sm:$0xff]
        %v478 = vld [vmem:[%s181 + $0x60] sm:$0xff]
        %v479 = vld [vmem:[%s181 + $0x68] sm:$0xff]
        %v480 = vld [vmem:[%s181 + $0x70] sm:$0xff]
        %v481 = vld [vmem:[%s181 + $0x78] sm:$0xff]
        %v482 = vld [vmem:[%s181 + $0x80] sm:$0xff]
        %v483 = vld [vmem:[%s181 + $0x88] sm:$0xff]
        %v484 = vld [vmem:[%s181 + $0x90] sm:$0xff]
        %v485 = vld [vmem:[%s181 + $0x98] sm:$0xff]
        %v486 = vld [vmem:[%s181 + $0xa0] sm:$0xff]
        %v487 = vld [vmem:[%s181 + $0xa8] sm:$0xff]
        %v488 = vld [vmem:[%s181 + $0xb0] sm:$0xff]
        %v489 = vld [vmem:[%s181 + $0xb8] sm:$0xff]
        %v490 = vld [vmem:[%s181 + $0xc0] sm:$0xff]
        %v491 = vld [vmem:[%s181 + $0xc8] sm:$0xff]
        %v492 = vld [vmem:[%s181 + $0xd0] sm:$0xff]
        %v493 = vld [vmem:[%s181 + $0xd8] sm:$0xff]
        %v494 = vld [vmem:[%s181 + $0xe0] sm:$0xff]
        %v495 = vld [vmem:[%s181 + $0xe8] sm:$0xff]
        %v496 = vld [vmem:[%s181 + $0xf0] sm:$0xff]
        %v497 = vld [vmem:[%s181 + $0xf8] sm:$0xff]
        %v498 = vld [vmem:[%s181 + $0x100] sm:$0xff]
        %v499 = vld [vmem:[%s181 + $0x108] sm:$0xff]
        %v500 = vld [vmem:[%s181 + $0x110] sm:$0xff]
        %v501 = vld [vmem:[%s181 + $0x118] sm:$0xff]
        %v502 = vld [vmem:[%s181 + $0x120] sm:$0xff]
        %v503 = vld [vmem:[%s181 + $0x128] sm:$0xff]
        %v504 = vld [vmem:[%s181 + $0x130] sm:$0xff]
        %v505 = vld [vmem:[%s181 + $0x138] sm:$0xff]
        %v506 = vld [vmem:[%s181 + $0x140] sm:$0xff]
        %v507 = vld [vmem:[%s181 + $0x148] sm:$0xff]
        %v508 = vld [vmem:[%s181 + $0x150] sm:$0xff]
        %v509 = vld [vmem:[%s181 + $0x158] sm:$0xff]
        %v510 = vld [vmem:[%s181 + $0x160] sm:$0xff]
        %v511 = vld [vmem:[%s181 + $0x168] sm:$0xff]
        %v512 = vld [vmem:[%s181 + $0x170] sm:$0xff]
        %v513 = vld [vmem:[%s181 + $0x178] sm:$0xff]
        %v514 = vld [vmem:[%s181 + $0x180] sm:$0xff]
        %v515 = vld [vmem:[%s181 + $0x188] sm:$0xff]
        %v516 = vld [vmem:[%s181 + $0x190] sm:$0xff]
        %v517 = vld [vmem:[%s181 + $0x198] sm:$0xff]
        %v518 = vld [vmem:[%s181 + $0x1a0] sm:$0xff]
        %v519 = vld [vmem:[%s181 + $0x1a8] sm:$0xff]
        %v520 = vld [vmem:[%s181 + $0x1b0] sm:$0xff]
        %v521 = vld [vmem:[%s181 + $0x1b8] sm:$0xff]
        %v522 = vld [vmem:[%s181 + $0x1c0] sm:$0xff]
        %v523 = vld [vmem:[%s181 + $0x1c8] sm:$0xff]
        %v524 = vld [vmem:[%s181 + $0x1d0] sm:$0xff]
        %v525 = vld [vmem:[%s181 + $0x1d8] sm:$0xff]
        %v526 = vld [vmem:[%s181 + $0x1e0] sm:$0xff]
        %v527 = vld [vmem:[%s181 + $0x1e8] sm:$0xff]
        %v528 = vld [vmem:[%s181 + $0x1f0] sm:$0xff]
        %v529 = vld [vmem:[%s181 + $0x1f8] sm:$0xff]
        %v530 = vld [vmem:[%s181 + $0x200] sm:$0xff]
        %v531 = vld [vmem:[%s181 + $0x208] sm:$0xff]
        %v532 = vld [vmem:[%s181 + $0x210] sm:$0xff]
        %v533 = vld [vmem:[%s181 + $0x218] sm:$0xff]
        %v534 = vld [vmem:[%s181 + $0x220] sm:$0xff]
        %v535 = vld [vmem:[%s181 + $0x228] sm:$0xff]
        %v536 = vld [vmem:[%s181 + $0x230] sm:$0xff]
        %v537 = vld [vmem:[%s181 + $0x238] sm:$0xff]
        %v538 = vld [vmem:[%s181 + $0x240] sm:$0xff]
        %v539 = vld [vmem:[%s181 + $0x248] sm:$0xff]
        %v540 = vld [vmem:[%s181 + $0x250] sm:$0xff]
        %v541 = vld [vmem:[%s181 + $0x258] sm:$0xff]
        %v542 = vld [vmem:[%s181 + $0x260] sm:$0xff]
        %v543 = vld [vmem:[%s181 + $0x268] sm:$0xff]
        %v544 = vld [vmem:[%s181 + $0x270] sm:$0xff]
        %v545 = vld [vmem:[%s181 + $0x278] sm:$0xff]
        %v546 = vld [vmem:[%s181 + $0x280] sm:$0xff]
        %v547 = vld [vmem:[%s181 + $0x288] sm:$0xff]
        %v548 = vld [vmem:[%s181 + $0x290] sm:$0xff]
        %v549 = vld [vmem:[%s181 + $0x298] sm:$0xff]
        %v550 = vld [vmem:[%s181 + $0x2a0] sm:$0xff]
        %v551 = vld [vmem:[%s181 + $0x2a8] sm:$0xff]
        %v552 = vld [vmem:[%s181 + $0x2b0] sm:$0xff]
        %v553 = vld [vmem:[%s181 + $0x2b8] sm:$0xff]
        %v554 = vld [vmem:[%s181 + $0x2c0] sm:$0xff]
        %v555 = vld [vmem:[%s181 + $0x2c8] sm:$0xff]
        %v556 = vld [vmem:[%s181 + $0x2d0] sm:$0xff]
        %v557 = vld [vmem:[%s181 + $0x2d8] sm:$0xff]
        %v558 = vld [vmem:[%s181 + $0x2e0] sm:$0xff]
        %v559 = vld [vmem:[%s181 + $0x2e8] sm:$0xff]
        %v560 = vld [vmem:[%s181 + $0x2f0] sm:$0xff]
        %v561 = vld [vmem:[%s181 + $0x2f8] sm:$0xff]
        %v562 = vld [vmem:[%s181 + $0x300] sm:$0xff]
        %v563 = vld [vmem:[%s181 + $0x308] sm:$0xff]
        %v564 = vld [vmem:[%s181 + $0x310] sm:$0xff]
        %v565 = vld [vmem:[%s181 + $0x318] sm:$0xff]
        %v566 = vld [vmem:[%s181 + $0x320] sm:$0xff]
        %v567 = vld [vmem:[%s181 + $0x328] sm:$0xff]
        %v568 = vld [vmem:[%s181 + $0x330] sm:$0xff]
        %v569 = vld [vmem:[%s181 + $0x338] sm:$0xff]
        %v570 = vld [vmem:[%s181 + $0x340] sm:$0xff]
        %v571 = vld [vmem:[%s181 + $0x348] sm:$0xff]
        %v572 = vld [vmem:[%s181 + $0x350] sm:$0xff]
        %v573 = vld [vmem:[%s181 + $0x358] sm:$0xff]
        %v574 = vld [vmem:[%s181 + $0x360] sm:$0xff]
        %v575 = vld [vmem:[%s181 + $0x368] sm:$0xff]
        %v576 = vld [vmem:[%s181 + $0x370] sm:$0xff]
        %v577 = vld [vmem:[%s181 + $0x378] sm:$0xff]
        %v578 = vld [vmem:[%s181 + $0x380] sm:$0xff]
        %v579 = vld [vmem:[%s181 + $0x388] sm:$0xff]
        %v580 = vld [vmem:[%s181 + $0x390] sm:$0xff]
        %v581 = vld [vmem:[%s181 + $0x398] sm:$0xff]
        %v582 = vld [vmem:[%s181 + $0x3a0] sm:$0xff]
        %v583 = vld [vmem:[%s181 + $0x3a8] sm:$0xff]
        %v584 = vld [vmem:[%s181 + $0x3b0] sm:$0xff]
        %v585 = vld [vmem:[%s181 + $0x3b8] sm:$0xff]
        %v586 = vld [vmem:[%s181 + $0x3c0] sm:$0xff]
        %v587 = vld [vmem:[%s181 + $0x3c8] sm:$0xff]
        %v588 = vld [vmem:[%s181 + $0x3d0] sm:$0xff]
        %v589 = vld [vmem:[%s181 + $0x3d8] sm:$0xff]
        %v590 = vld [vmem:[%s181 + $0x3e0] sm:$0xff]
        %v591 = vld [vmem:[%s181 + $0x3e8] sm:$0xff]
        %v592 = vld [vmem:[%s181 + $0x3f0] sm:$0xff]
        %v593 = vld [vmem:[%s181 + $0x3f8] sm:$0xff]
        %v594 = vld [vmem:[%s181 + $0x400] sm:$0xff]
        %v595 = vld [vmem:[%s181 + $0x408] sm:$0xff]
        %v596 = vld [vmem:[%s181 + $0x410] sm:$0xff]
        %v597 = vld [vmem:[%s181 + $0x418] sm:$0xff]
        %v598 = vld [vmem:[%s181 + $0x420] sm:$0xff]
        %v599 = vld [vmem:[%s181 + $0x428] sm:$0xff]
        %v600 = vld [vmem:[%s181 + $0x430] sm:$0xff]
        %v601 = vld [vmem:[%s181 + $0x438] sm:$0xff]
        %v602 = vld [vmem:[%s181 + $0x440] sm:$0xff]
        %v603 = vld [vmem:[%s181 + $0x448] sm:$0xff]
        %v604 = vld [vmem:[%s181 + $0x450] sm:$0xff]
        %v605 = vld [vmem:[%s181 + $0x458] sm:$0xff]
        %v606 = vld [vmem:[%s181 + $0x460] sm:$0xff]
        %v607 = vld [vmem:[%s181 + $0x468] sm:$0xff]
        %v608 = vld [vmem:[%s181 + $0x470] sm:$0xff]
        %v609 = vld [vmem:[%s181 + $0x478] sm:$0xff]
        %v610 = vld [vmem:[%s181 + $0x480] sm:$0xff]
        %v611 = vld [vmem:[%s181 + $0x488] sm:$0xff]
        %v612 = vld [vmem:[%s181 + $0x490] sm:$0xff]
        %v613 = vld [vmem:[%s181 + $0x498] sm:$0xff]
        %v614 = vld [vmem:[%s181 + $0x4a0] sm:$0xff]
        %v615 = vld [vmem:[%s181 + $0x4a8] sm:$0xff]
        %v616 = vld [vmem:[%s181 + $0x4b0] sm:$0xff]
        %v617 = vld [vmem:[%s181 + $0x4b8] sm:$0xff]
        %v618 = vld [vmem:[%s181 + $0x4c0] sm:$0xff]
        %v619 = vld [vmem:[%s181 + $0x4c8] sm:$0xff]
        %v620 = vld [vmem:[%s181 + $0x4d0] sm:$0xff]
        %v621 = vld [vmem:[%s181 + $0x4d8] sm:$0xff]
        %v622 = vld [vmem:[%s181 + $0x4e0] sm:$0xff]
        %v623 = vld [vmem:[%s181 + $0x4e8] sm:$0xff]
        %v624 = vld [vmem:[%s181 + $0x4f0] sm:$0xff]
        %v625 = vld [vmem:[%s181 + $0x4f8] sm:$0xff]
        %v626 = vld [vmem:[%s181 + $0x500] sm:$0xff]
        %v627 = vld [vmem:[%s181 + $0x508] sm:$0xff]
        %v628 = vld [vmem:[%s181 + $0x510] sm:$0xff]
        %v629 = vld [vmem:[%s181 + $0x518] sm:$0xff]
        %v630 = vld [vmem:[%s181 + $0x520] sm:$0xff]
        %v631 = vld [vmem:[%s181 + $0x528] sm:$0xff]
        %v632 = vld [vmem:[%s181 + $0x530] sm:$0xff]
        %v633 = vld [vmem:[%s181 + $0x538] sm:$0xff]
        %v634 = vld [vmem:[%s181 + $0x540] sm:$0xff]
        %v635 = vld [vmem:[%s181 + $0x548] sm:$0xff]
        %v636 = vld [vmem:[%s181 + $0x550] sm:$0xff]
        %v637 = vld [vmem:[%s181 + $0x558] sm:$0xff]
        %v638 = vld [vmem:[%s181 + $0x560] sm:$0xff]
        %v639 = vld [vmem:[%s181 + $0x568] sm:$0xff]
        %v640 = vld [vmem:[%s181 + $0x570] sm:$0xff]
        %v641 = vld [vmem:[%s181 + $0x578] sm:$0xff]
        %v642 = vld [vmem:[%s181 + $0x580] sm:$0xff]
        %v643 = vld [vmem:[%s181 + $0x588] sm:$0xff]
        %v644 = vld [vmem:[%s181 + $0x590] sm:$0xff]
        %v645 = vld [vmem:[%s181 + $0x598] sm:$0xff]
        %v646 = vld [vmem:[%s181 + $0x5a0] sm:$0xff]
        %v647 = vld [vmem:[%s181 + $0x5a8] sm:$0xff]
        %v648 = vld [vmem:[%s181 + $0x5b0] sm:$0xff]
        %v649 = vld [vmem:[%s181 + $0x5b8] sm:$0xff]
        %v650 = vld [vmem:[%s181 + $0x5c0] sm:$0xff]
        %v651 = vld [vmem:[%s181 + $0x5c8] sm:$0xff]
        %v652 = vld [vmem:[%s181 + $0x5d0] sm:$0xff]
        %v653 = vld [vmem:[%s181 + $0x5d8] sm:$0xff]
        %v654 = vld [vmem:[%s181 + $0x5e0] sm:$0xff]
        %v655 = vld [vmem:[%s181 + $0x5e8] sm:$0xff]
        %v656 = vld [vmem:[%s181 + $0x5f0] sm:$0xff]
        %v657 = vld [vmem:[%s181 + $0x5f8] sm:$0xff]
        %v658 = vld [vmem:[%s181 + $0x600] sm:$0xff]
        %v659 = vld [vmem:[%s181 + $0x608] sm:$0xff]
        %v660 = vld [vmem:[%s181 + $0x610] sm:$0xff]
        %v661 = vld [vmem:[%s181 + $0x618] sm:$0xff]
        %v662 = vld [vmem:[%s181 + $0x620] sm:$0xff]
        %v663 = vld [vmem:[%s181 + $0x628] sm:$0xff]
        %v664 = vld [vmem:[%s181 + $0x630] sm:$0xff]
        %v665 = vld [vmem:[%s181 + $0x638] sm:$0xff]
        %v666 = vld [vmem:[%s181 + $0x640] sm:$0xff]
        %v667 = vld [vmem:[%s181 + $0x648] sm:$0xff]
        %v668 = vld [vmem:[%s181 + $0x650] sm:$0xff]
        %v669 = vld [vmem:[%s181 + $0x658] sm:$0xff]
        %v670 = vld [vmem:[%s181 + $0x660] sm:$0xff]
        %v671 = vld [vmem:[%s181 + $0x668] sm:$0xff]
        %v672 = vld [vmem:[%s181 + $0x670] sm:$0xff]
        %v673 = vld [vmem:[%s181 + $0x678] sm:$0xff]
        %v674 = vld [vmem:[%s181 + $0x680] sm:$0xff]
        %v675 = vld [vmem:[%s181 + $0x688] sm:$0xff]
        %v676 = vld [vmem:[%s181 + $0x690] sm:$0xff]
        %v677 = vld [vmem:[%s181 + $0x698] sm:$0xff]
        %v678 = vld [vmem:[%s181 + $0x6a0] sm:$0xff]
        %v679 = vld [vmem:[%s181 + $0x6a8] sm:$0xff]
        %v680 = vld [vmem:[%s181 + $0x6b0] sm:$0xff]
        %v681 = vld [vmem:[%s181 + $0x6b8] sm:$0xff]
        %v682 = vld [vmem:[%s181 + $0x6c0] sm:$0xff]
        %v683 = vld [vmem:[%s181 + $0x6c8] sm:$0xff]
        %v684 = vld [vmem:[%s181 + $0x6d0] sm:$0xff]
        %v685 = vld [vmem:[%s181 + $0x6d8] sm:$0xff]
        %v686 = vld [vmem:[%s181 + $0x6e0] sm:$0xff]
        %v687 = vld [vmem:[%s181 + $0x6e8] sm:$0xff]
        %v688 = vld [vmem:[%s181 + $0x6f0] sm:$0xff]
        %v689 = vld [vmem:[%s181 + $0x6f8] sm:$0xff]
        %v690 = vld [vmem:[%s181 + $0x700] sm:$0xff]
        %v691 = vld [vmem:[%s181 + $0x708] sm:$0xff]
        %v692 = vld [vmem:[%s181 + $0x710] sm:$0xff]
        %v693 = vld [vmem:[%s181 + $0x718] sm:$0xff]
        %v694 = vld [vmem:[%s181 + $0x720] sm:$0xff]
        %v695 = vld [vmem:[%s181 + $0x728] sm:$0xff]
        %v696 = vld [vmem:[%s181 + $0x730] sm:$0xff]
        %v697 = vld [vmem:[%s181 + $0x738] sm:$0xff]
        %v698 = vld [vmem:[%s181 + $0x740] sm:$0xff]
        %v699 = vld [vmem:[%s181 + $0x748] sm:$0xff]
        %v700 = vld [vmem:[%s181 + $0x750] sm:$0xff]
        %v701 = vld [vmem:[%s181 + $0x758] sm:$0xff]
        %v702 = vld [vmem:[%s181 + $0x760] sm:$0xff]
        %v703 = vld [vmem:[%s181 + $0x768] sm:$0xff]
        %v704 = vld [vmem:[%s181 + $0x770] sm:$0xff]
        %v705 = vld [vmem:[%s181 + $0x778] sm:$0xff]
        %v706 = vld [vmem:[%s181 + $0x780] sm:$0xff]
        %v707 = vld [vmem:[%s181 + $0x788] sm:$0xff]
        %v708 = vld [vmem:[%s181 + $0x790] sm:$0xff]
        %v709 = vld [vmem:[%s181 + $0x798] sm:$0xff]
        %v710 = vld [vmem:[%s181 + $0x7a0] sm:$0xff]
        %v711 = vld [vmem:[%s181 + $0x7a8] sm:$0xff]
        %v712 = vld [vmem:[%s181 + $0x7b0] sm:$0xff]
        %v713 = vld [vmem:[%s181 + $0x7b8] sm:$0xff]
        %v714 = vld [vmem:[%s181 + $0x7c0] sm:$0xff]
        %v715 = vld [vmem:[%s181 + $0x7c8] sm:$0xff]
        %v716 = vld [vmem:[%s181 + $0x7d0] sm:$0xff]
        %v717 = vld [vmem:[%s181 + $0x7d8] sm:$0xff]
        %v718 = vld [vmem:[%s181 + $0x7e0] sm:$0xff]
        %v719 = vld [vmem:[%s181 + $0x7e8] sm:$0xff]
        %v720 = vld [vmem:[%s181 + $0x7f0] sm:$0xff]
        %v721 = vld [vmem:[%s181 + $0x7f8] sm:$0xff]
        %v722 = vxor.u32 %v210, 2147483648
        %v723 = vxor.u32 %v211, 2147483648
        %v724 = vxor.u32 %v212, 2147483648
        %v725 = vxor.u32 %v213, 2147483648
        %v726 = vxor.u32 %v214, 2147483648
        %v727 = vxor.u32 %v215, 2147483648
        %v728 = vxor.u32 %v216, 2147483648
        %v729 = vxor.u32 %v217, 2147483648
        %v730 = vxor.u32 %v218, 2147483648
        %v731 = vxor.u32 %v219, 2147483648
        %v732 = vxor.u32 %v220, 2147483648
        %v733 = vxor.u32 %v221, 2147483648
        %v734 = vxor.u32 %v222, 2147483648
        %v735 = vxor.u32 %v223, 2147483648
        %v736 = vxor.u32 %v224, 2147483648
        %v737 = vxor.u32 %v225, 2147483648
        %v738 = vxor.u32 %v226, 2147483648
        %v739 = vxor.u32 %v227, 2147483648
        %v740 = vxor.u32 %v228, 2147483648
        %v741 = vxor.u32 %v229, 2147483648
        %v742 = vxor.u32 %v230, 2147483648
        %v743 = vxor.u32 %v231, 2147483648
        %v744 = vxor.u32 %v232, 2147483648
        %v745 = vxor.u32 %v233, 2147483648
        %v746 = vxor.u32 %v234, 2147483648
        %v747 = vxor.u32 %v235, 2147483648
        %v748 = vxor.u32 %v236, 2147483648
        %v749 = vxor.u32 %v237, 2147483648
        %v750 = vxor.u32 %v238, 2147483648
        %v751 = vxor.u32 %v239, 2147483648
        %v752 = vxor.u32 %v240, 2147483648
        %v753 = vxor.u32 %v241, 2147483648
        %v754 = vxor.u32 %v242, 2147483648
        %v755 = vxor.u32 %v243, 2147483648
        %v756 = vxor.u32 %v244, 2147483648
        %v757 = vxor.u32 %v245, 2147483648
        %v758 = vxor.u32 %v246, 2147483648
        %v759 = vxor.u32 %v247, 2147483648
        %v760 = vxor.u32 %v248, 2147483648
        %v761 = vxor.u32 %v249, 2147483648
        %v762 = vxor.u32 %v250, 2147483648
        %v763 = vxor.u32 %v251, 2147483648
        %v764 = vxor.u32 %v252, 2147483648
        %v765 = vxor.u32 %v253, 2147483648
        %v766 = vxor.u32 %v254, 2147483648
        %v767 = vxor.u32 %v255, 2147483648
        %v768 = vxor.u32 %v256, 2147483648
        %v769 = vxor.u32 %v257, 2147483648
        %v770 = vxor.u32 %v258, 2147483648
        %v771 = vxor.u32 %v259, 2147483648
        %v772 = vxor.u32 %v260, 2147483648
        %v773 = vxor.u32 %v261, 2147483648
        %v774 = vxor.u32 %v262, 2147483648
        %v775 = vxor.u32 %v263, 2147483648
        %v776 = vxor.u32 %v264, 2147483648
        %v777 = vxor.u32 %v265, 2147483648
        %v778 = vxor.u32 %v266, 2147483648
        %v779 = vxor.u32 %v267, 2147483648
        %v780 = vxor.u32 %v268, 2147483648
        %v781 = vxor.u32 %v269, 2147483648
        %v782 = vxor.u32 %v270, 2147483648
        %v783 = vxor.u32 %v271, 2147483648
        %v784 = vxor.u32 %v272, 2147483648
        %v785 = vxor.u32 %v273, 2147483648
        %v786 = vxor.u32 %v274, 2147483648
        %v787 = vxor.u32 %v275, 2147483648
        %v788 = vxor.u32 %v276, 2147483648
        %v789 = vxor.u32 %v277, 2147483648
        %v790 = vxor.u32 %v278, 2147483648
        %v791 = vxor.u32 %v279, 2147483648
        %v792 = vxor.u32 %v280, 2147483648
        %v793 = vxor.u32 %v281, 2147483648
        %v794 = vxor.u32 %v282, 2147483648
        %v795 = vxor.u32 %v283, 2147483648
        %v796 = vxor.u32 %v284, 2147483648
        %v797 = vxor.u32 %v285, 2147483648
        %v798 = vxor.u32 %v286, 2147483648
        %v799 = vxor.u32 %v287, 2147483648
        %v800 = vxor.u32 %v288, 2147483648
        %v801 = vxor.u32 %v289, 2147483648
        %v802 = vxor.u32 %v290, 2147483648
        %v803 = vxor.u32 %v291, 2147483648
        %v804 = vxor.u32 %v292, 2147483648
        %v805 = vxor.u32 %v293, 2147483648
        %v806 = vxor.u32 %v294, 2147483648
        %v807 = vxor.u32 %v295, 2147483648
        %v808 = vxor.u32 %v296, 2147483648
        %v809 = vxor.u32 %v297, 2147483648
        %v810 = vxor.u32 %v298, 2147483648
        %v811 = vxor.u32 %v299, 2147483648
        %v812 = vxor.u32 %v300, 2147483648
        %v813 = vxor.u32 %v301, 2147483648
        %v814 = vxor.u32 %v302, 2147483648
        %v815 = vxor.u32 %v303, 2147483648
        %v816 = vxor.u32 %v304, 2147483648
        %v817 = vxor.u32 %v305, 2147483648
        %v818 = vxor.u32 %v306, 2147483648
        %v819 = vxor.u32 %v307, 2147483648
        %v820 = vxor.u32 %v308, 2147483648
        %v821 = vxor.u32 %v309, 2147483648
        %v822 = vxor.u32 %v310, 2147483648
        %v823 = vxor.u32 %v311, 2147483648
        %v824 = vxor.u32 %v312, 2147483648
        %v825 = vxor.u32 %v313, 2147483648
        %v826 = vxor.u32 %v314, 2147483648
        %v827 = vxor.u32 %v315, 2147483648
        %v828 = vxor.u32 %v316, 2147483648
        %v829 = vxor.u32 %v317, 2147483648
        %v830 = vxor.u32 %v318, 2147483648
        %v831 = vxor.u32 %v319, 2147483648
        %v832 = vxor.u32 %v320, 2147483648
        %v833 = vxor.u32 %v321, 2147483648
        %v834 = vxor.u32 %v322, 2147483648
        %v835 = vxor.u32 %v323, 2147483648
        %v836 = vxor.u32 %v324, 2147483648
        %v837 = vxor.u32 %v325, 2147483648
        %v838 = vxor.u32 %v326, 2147483648
        %v839 = vxor.u32 %v327, 2147483648
        %v840 = vxor.u32 %v328, 2147483648
        %v841 = vxor.u32 %v329, 2147483648
        %v842 = vxor.u32 %v330, 2147483648
        %v843 = vxor.u32 %v331, 2147483648
        %v844 = vxor.u32 %v332, 2147483648
        %v845 = vxor.u32 %v333, 2147483648
        %v846 = vxor.u32 %v334, 2147483648
        %v847 = vxor.u32 %v335, 2147483648
        %v848 = vxor.u32 %v336, 2147483648
        %v849 = vxor.u32 %v337, 2147483648
        %v850 = vxor.u32 %v338, 2147483648
        %v851 = vxor.u32 %v339, 2147483648
        %v852 = vxor.u32 %v340, 2147483648
        %v853 = vxor.u32 %v341, 2147483648
        %v854 = vxor.u32 %v342, 2147483648
        %v855 = vxor.u32 %v343, 2147483648
        %v856 = vxor.u32 %v344, 2147483648
        %v857 = vxor.u32 %v345, 2147483648
        %v858 = vxor.u32 %v346, 2147483648
        %v859 = vxor.u32 %v347, 2147483648
        %v860 = vxor.u32 %v348, 2147483648
        %v861 = vxor.u32 %v349, 2147483648
        %v862 = vxor.u32 %v350, 2147483648
        %v863 = vxor.u32 %v351, 2147483648
        %v864 = vxor.u32 %v352, 2147483648
        %v865 = vxor.u32 %v353, 2147483648
        %v866 = vxor.u32 %v354, 2147483648
        %v867 = vxor.u32 %v355, 2147483648
        %v868 = vxor.u32 %v356, 2147483648
        %v869 = vxor.u32 %v357, 2147483648
        %v870 = vxor.u32 %v358, 2147483648
        %v871 = vxor.u32 %v359, 2147483648
        %v872 = vxor.u32 %v360, 2147483648
        %v873 = vxor.u32 %v361, 2147483648
        %v874 = vxor.u32 %v362, 2147483648
        %v875 = vxor.u32 %v363, 2147483648
        %v876 = vxor.u32 %v364, 2147483648
        %v877 = vxor.u32 %v365, 2147483648
        %v878 = vxor.u32 %v366, 2147483648
        %v879 = vxor.u32 %v367, 2147483648
        %v880 = vxor.u32 %v368, 2147483648
        %v881 = vxor.u32 %v369, 2147483648
        %v882 = vxor.u32 %v370, 2147483648
        %v883 = vxor.u32 %v371, 2147483648
        %v884 = vxor.u32 %v372, 2147483648
        %v885 = vxor.u32 %v373, 2147483648
        %v886 = vxor.u32 %v374, 2147483648
        %v887 = vxor.u32 %v375, 2147483648
        %v888 = vxor.u32 %v376, 2147483648
        %v889 = vxor.u32 %v377, 2147483648
        %v890 = vxor.u32 %v378, 2147483648
        %v891 = vxor.u32 %v379, 2147483648
        %v892 = vxor.u32 %v380, 2147483648
        %v893 = vxor.u32 %v381, 2147483648
        %v894 = vxor.u32 %v382, 2147483648
        %v895 = vxor.u32 %v383, 2147483648
        %v896 = vxor.u32 %v384, 2147483648
        %v897 = vxor.u32 %v385, 2147483648
        %v898 = vxor.u32 %v386, 2147483648
        %v899 = vxor.u32 %v387, 2147483648
        %v900 = vxor.u32 %v388, 2147483648
        %v901 = vxor.u32 %v389, 2147483648
        %v902 = vxor.u32 %v390, 2147483648
        %v903 = vxor.u32 %v391, 2147483648
        %v904 = vxor.u32 %v392, 2147483648
        %v905 = vxor.u32 %v393, 2147483648
        %v906 = vxor.u32 %v394, 2147483648
        %v907 = vxor.u32 %v395, 2147483648
        %v908 = vxor.u32 %v396, 2147483648
        %v909 = vxor.u32 %v397, 2147483648
        %v910 = vxor.u32 %v398, 2147483648
        %v911 = vxor.u32 %v399, 2147483648
        %v912 = vxor.u32 %v400, 2147483648
        %v913 = vxor.u32 %v401, 2147483648
        %v914 = vxor.u32 %v402, 2147483648
        %v915 = vxor.u32 %v403, 2147483648
        %v916 = vxor.u32 %v404, 2147483648
        %v917 = vxor.u32 %v405, 2147483648
        %v918 = vxor.u32 %v406, 2147483648
        %v919 = vxor.u32 %v407, 2147483648
        %v920 = vxor.u32 %v408, 2147483648
        %v921 = vxor.u32 %v409, 2147483648
        %v922 = vxor.u32 %v410, 2147483648
        %v923 = vxor.u32 %v411, 2147483648
        %v924 = vxor.u32 %v412, 2147483648
        %v925 = vxor.u32 %v413, 2147483648
        %v926 = vxor.u32 %v414, 2147483648
        %v927 = vxor.u32 %v415, 2147483648
        %v928 = vxor.u32 %v416, 2147483648
        %v929 = vxor.u32 %v417, 2147483648
        %v930 = vxor.u32 %v418, 2147483648
        %v931 = vxor.u32 %v419, 2147483648
        %v932 = vxor.u32 %v420, 2147483648
        %v933 = vxor.u32 %v421, 2147483648
        %v934 = vxor.u32 %v422, 2147483648
        %v935 = vxor.u32 %v423, 2147483648
        %v936 = vxor.u32 %v424, 2147483648
        %v937 = vxor.u32 %v425, 2147483648
        %v938 = vxor.u32 %v426, 2147483648
        %v939 = vxor.u32 %v427, 2147483648
        %v940 = vxor.u32 %v428, 2147483648
        %v941 = vxor.u32 %v429, 2147483648
        %v942 = vxor.u32 %v430, 2147483648
        %v943 = vxor.u32 %v431, 2147483648
        %v944 = vxor.u32 %v432, 2147483648
        %v945 = vxor.u32 %v433, 2147483648
        %v946 = vxor.u32 %v434, 2147483648
        %v947 = vxor.u32 %v435, 2147483648
        %v948 = vxor.u32 %v436, 2147483648
        %v949 = vxor.u32 %v437, 2147483648
        %v950 = vxor.u32 %v438, 2147483648
        %v951 = vxor.u32 %v439, 2147483648
        %v952 = vxor.u32 %v440, 2147483648
        %v953 = vxor.u32 %v441, 2147483648
        %v954 = vxor.u32 %v442, 2147483648
        %v955 = vxor.u32 %v443, 2147483648
        %v956 = vxor.u32 %v444, 2147483648
        %v957 = vxor.u32 %v445, 2147483648
        %v958 = vxor.u32 %v446, 2147483648
        %v959 = vxor.u32 %v447, 2147483648
        %v960 = vxor.u32 %v448, 2147483648
        %v961 = vxor.u32 %v449, 2147483648
        %v962 = vxor.u32 %v450, 2147483648
        %v963 = vxor.u32 %v451, 2147483648
        %v964 = vxor.u32 %v452, 2147483648
        %v965 = vxor.u32 %v453, 2147483648
        %v966 = vxor.u32 %v454, 2147483648
        %v967 = vxor.u32 %v455, 2147483648
        %v968 = vxor.u32 %v456, 2147483648
        %v969 = vxor.u32 %v457, 2147483648
        %v970 = vxor.u32 %v458, 2147483648
        %v971 = vxor.u32 %v459, 2147483648
        %v972 = vxor.u32 %v460, 2147483648
        %v973 = vxor.u32 %v461, 2147483648
        %v974 = vxor.u32 %v462, 2147483648
        %v975 = vxor.u32 %v463, 2147483648
        %v976 = vxor.u32 %v464, 2147483648
        %v977 = vxor.u32 %v465, 2147483648
        %v978 = vmul.f32 %v722, 1.442695
        %v979 = vpow.pop %v978
        %v980 = vmul.f32 %v723, 1.442695
        %v981 = vpow.pop %v980
        %v982 = vmul.f32 %v724, 1.442695
        %v983 = vpow.pop %v982
        %v984 = vmul.f32 %v725, 1.442695
        %v985 = vpow.pop %v984
        %v986 = vmul.f32 %v726, 1.442695
        %v987 = vpow.pop %v986
        %v988 = vmul.f32 %v727, 1.442695
        %v989 = vpow.pop %v988
        %v990 = vmul.f32 %v728, 1.442695
        %v991 = vpow.pop %v990
        %v992 = vmul.f32 %v729, 1.442695
        %v993 = vpow.pop %v992
        %v994 = vmul.f32 %v730, 1.442695
        %v995 = vpow.pop %v994
        %v996 = vmul.f32 %v731, 1.442695
        %v997 = vpow.pop %v996
        %v998 = vmul.f32 %v732, 1.442695
        %v999 = vpow.pop %v998
        %v1000 = vmul.f32 %v733, 1.442695
        %v1001 = vpow.pop %v1000
        %v1002 = vmul.f32 %v734, 1.442695
        %v1003 = vpow.pop %v1002
        %v1004 = vmul.f32 %v735, 1.442695
        %v1005 = vpow.pop %v1004
        %v1006 = vmul.f32 %v736, 1.442695
        %v1007 = vpow.pop %v1006
        %v1008 = vmul.f32 %v737, 1.442695
        %v1009 = vpow.pop %v1008
        %v1010 = vmul.f32 %v738, 1.442695
        %v1011 = vpow.pop %v1010
        %v1012 = vmul.f32 %v739, 1.442695
        %v1013 = vpow.pop %v1012
        %v1014 = vmul.f32 %v740, 1.442695
        %v1015 = vpow.pop %v1014
        %v1016 = vmul.f32 %v741, 1.442695
        %v1017 = vpow.pop %v1016
        %v1018 = vmul.f32 %v742, 1.442695
        %v1019 = vpow.pop %v1018
        %v1020 = vmul.f32 %v743, 1.442695
        %v1021 = vpow.pop %v1020
        %v1022 = vmul.f32 %v744, 1.442695
        %v1023 = vpow.pop %v1022
        %v1024 = vmul.f32 %v745, 1.442695
        %v1025 = vpow.pop %v1024
        %v1026 = vmul.f32 %v746, 1.442695
        %v1027 = vpow.pop %v1026
        %v1028 = vmul.f32 %v747, 1.442695
        %v1029 = vpow.pop %v1028
        %v1030 = vmul.f32 %v748, 1.442695
        %v1031 = vpow.pop %v1030
        %v1032 = vmul.f32 %v749, 1.442695
        %v1033 = vpow.pop %v1032
        %v1034 = vmul.f32 %v750, 1.442695
        %v1035 = vpow.pop %v1034
        %v1036 = vmul.f32 %v751, 1.442695
        %v1037 = vpow.pop %v1036
        %v1038 = vmul.f32 %v752, 1.442695
        %v1039 = vpow.pop %v1038
        %v1040 = vmul.f32 %v753, 1.442695
        %v1041 = vpow.pop %v1040
        %v1042 = vmul.f32 %v754, 1.442695
        %v1043 = vpow.pop %v1042
        %v1044 = vmul.f32 %v755, 1.442695
        %v1045 = vpow.pop %v1044
        %v1046 = vmul.f32 %v756, 1.442695
        %v1047 = vpow.pop %v1046
        %v1048 = vmul.f32 %v757, 1.442695
        %v1049 = vpow.pop %v1048
        %v1050 = vmul.f32 %v758, 1.442695
        %v1051 = vpow.pop %v1050
        %v1052 = vmul.f32 %v759, 1.442695
        %v1053 = vpow.pop %v1052
        %v1054 = vmul.f32 %v760, 1.442695
        %v1055 = vpow.pop %v1054
        %v1056 = vmul.f32 %v761, 1.442695
        %v1057 = vpow.pop %v1056
        %v1058 = vmul.f32 %v762, 1.442695
        %v1059 = vpow.pop %v1058
        %v1060 = vmul.f32 %v763, 1.442695
        %v1061 = vpow.pop %v1060
        %v1062 = vmul.f32 %v764, 1.442695
        %v1063 = vpow.pop %v1062
        %v1064 = vmul.f32 %v765, 1.442695
        %v1065 = vpow.pop %v1064
        %v1066 = vmul.f32 %v766, 1.442695
        %v1067 = vpow.pop %v1066
        %v1068 = vmul.f32 %v767, 1.442695
        %v1069 = vpow.pop %v1068
        %v1070 = vmul.f32 %v768, 1.442695
        %v1071 = vpow.pop %v1070
        %v1072 = vmul.f32 %v769, 1.442695
        %v1073 = vpow.pop %v1072
        %v1074 = vmul.f32 %v770, 1.442695
        %v1075 = vpow.pop %v1074
        %v1076 = vmul.f32 %v771, 1.442695
        %v1077 = vpow.pop %v1076
        %v1078 = vmul.f32 %v772, 1.442695
        %v1079 = vpow.pop %v1078
        %v1080 = vmul.f32 %v773, 1.442695
        %v1081 = vpow.pop %v1080
        %v1082 = vmul.f32 %v774, 1.442695
        %v1083 = vpow.pop %v1082
        %v1084 = vmul.f32 %v775, 1.442695
        %v1085 = vpow.pop %v1084
        %v1086 = vmul.f32 %v776, 1.442695
        %v1087 = vpow.pop %v1086
        %v1088 = vmul.f32 %v777, 1.442695
        %v1089 = vpow.pop %v1088
        %v1090 = vmul.f32 %v778, 1.442695
        %v1091 = vpow.pop %v1090
        %v1092 = vmul.f32 %v779, 1.442695
        %v1093 = vpow.pop %v1092
        %v1094 = vmul.f32 %v780, 1.442695
        %v1095 = vpow.pop %v1094
        %v1096 = vmul.f32 %v781, 1.442695
        %v1097 = vpow.pop %v1096
        %v1098 = vmul.f32 %v782, 1.442695
        %v1099 = vpow.pop %v1098
        %v1100 = vmul.f32 %v783, 1.442695
        %v1101 = vpow.pop %v1100
        %v1102 = vmul.f32 %v784, 1.442695
        %v1103 = vpow.pop %v1102
        %v1104 = vmul.f32 %v785, 1.442695
        %v1105 = vpow.pop %v1104
        %v1106 = vmul.f32 %v786, 1.442695
        %v1107 = vpow.pop %v1106
        %v1108 = vmul.f32 %v787, 1.442695
        %v1109 = vpow.pop %v1108
        %v1110 = vmul.f32 %v788, 1.442695
        %v1111 = vpow.pop %v1110
        %v1112 = vmul.f32 %v789, 1.442695
        %v1113 = vpow.pop %v1112
        %v1114 = vmul.f32 %v790, 1.442695
        %v1115 = vpow.pop %v1114
        %v1116 = vmul.f32 %v791, 1.442695
        %v1117 = vpow.pop %v1116
        %v1118 = vmul.f32 %v792, 1.442695
        %v1119 = vpow.pop %v1118
        %v1120 = vmul.f32 %v793, 1.442695
        %v1121 = vpow.pop %v1120
        %v1122 = vmul.f32 %v794, 1.442695
        %v1123 = vpow.pop %v1122
        %v1124 = vmul.f32 %v795, 1.442695
        %v1125 = vpow.pop %v1124
        %v1126 = vmul.f32 %v796, 1.442695
        %v1127 = vpow.pop %v1126
        %v1128 = vmul.f32 %v797, 1.442695
        %v1129 = vpow.pop %v1128
        %v1130 = vmul.f32 %v798, 1.442695
        %v1131 = vpow.pop %v1130
        %v1132 = vmul.f32 %v799, 1.442695
        %v1133 = vpow.pop %v1132
        %v1134 = vmul.f32 %v800, 1.442695
        %v1135 = vpow.pop %v1134
        %v1136 = vmul.f32 %v801, 1.442695
        %v1137 = vpow.pop %v1136
        %v1138 = vmul.f32 %v802, 1.442695
        %v1139 = vpow.pop %v1138
        %v1140 = vmul.f32 %v803, 1.442695
        %v1141 = vpow.pop %v1140
        %v1142 = vmul.f32 %v804, 1.442695
        %v1143 = vpow.pop %v1142
        %v1144 = vmul.f32 %v805, 1.442695
        %v1145 = vpow.pop %v1144
        %v1146 = vmul.f32 %v806, 1.442695
        %v1147 = vpow.pop %v1146
        %v1148 = vmul.f32 %v807, 1.442695
        %v1149 = vpow.pop %v1148
        %v1150 = vmul.f32 %v808, 1.442695
        %v1151 = vpow.pop %v1150
        %v1152 = vmul.f32 %v809, 1.442695
        %v1153 = vpow.pop %v1152
        %v1154 = vmul.f32 %v810, 1.442695
        %v1155 = vpow.pop %v1154
        %v1156 = vmul.f32 %v811, 1.442695
        %v1157 = vpow.pop %v1156
        %v1158 = vmul.f32 %v812, 1.442695
        %v1159 = vpow.pop %v1158
        %v1160 = vmul.f32 %v813, 1.442695
        %v1161 = vpow.pop %v1160
        %v1162 = vmul.f32 %v814, 1.442695
        %v1163 = vpow.pop %v1162
        %v1164 = vmul.f32 %v815, 1.442695
        %v1165 = vpow.pop %v1164
        %v1166 = vmul.f32 %v816, 1.442695
        %v1167 = vpow.pop %v1166
        %v1168 = vmul.f32 %v817, 1.442695
        %v1169 = vpow.pop %v1168
        %v1170 = vmul.f32 %v818, 1.442695
        %v1171 = vpow.pop %v1170
        %v1172 = vmul.f32 %v819, 1.442695
        %v1173 = vpow.pop %v1172
        %v1174 = vmul.f32 %v820, 1.442695
        %v1175 = vpow.pop %v1174
        %v1176 = vmul.f32 %v821, 1.442695
        %v1177 = vpow.pop %v1176
        %v1178 = vmul.f32 %v822, 1.442695
        %v1179 = vpow.pop %v1178
        %v1180 = vmul.f32 %v823, 1.442695
        %v1181 = vpow.pop %v1180
        %v1182 = vmul.f32 %v824, 1.442695
        %v1183 = vpow.pop %v1182
        %v1184 = vmul.f32 %v825, 1.442695
        %v1185 = vpow.pop %v1184
        %v1186 = vmul.f32 %v826, 1.442695
        %v1187 = vpow.pop %v1186
        %v1188 = vmul.f32 %v827, 1.442695
        %v1189 = vpow.pop %v1188
        %v1190 = vmul.f32 %v828, 1.442695
        %v1191 = vpow.pop %v1190
        %v1192 = vmul.f32 %v829, 1.442695
        %v1193 = vpow.pop %v1192
        %v1194 = vmul.f32 %v830, 1.442695
        %v1195 = vpow.pop %v1194
        %v1196 = vmul.f32 %v831, 1.442695
        %v1197 = vpow.pop %v1196
        %v1198 = vmul.f32 %v832, 1.442695
        %v1199 = vpow.pop %v1198
        %v1200 = vmul.f32 %v833, 1.442695
        %v1201 = vpow.pop %v1200
        %v1202 = vmul.f32 %v834, 1.442695
        %v1203 = vpow.pop %v1202
        %v1204 = vmul.f32 %v835, 1.442695
        %v1205 = vpow.pop %v1204
        %v1206 = vmul.f32 %v836, 1.442695
        %v1207 = vpow.pop %v1206
        %v1208 = vmul.f32 %v837, 1.442695
        %v1209 = vpow.pop %v1208
        %v1210 = vmul.f32 %v838, 1.442695
        %v1211 = vpow.pop %v1210
        %v1212 = vmul.f32 %v839, 1.442695
        %v1213 = vpow.pop %v1212
        %v1214 = vmul.f32 %v840, 1.442695
        %v1215 = vpow.pop %v1214
        %v1216 = vmul.f32 %v841, 1.442695
        %v1217 = vpow.pop %v1216
        %v1218 = vmul.f32 %v842, 1.442695
        %v1219 = vpow.pop %v1218
        %v1220 = vmul.f32 %v843, 1.442695
        %v1221 = vpow.pop %v1220
        %v1222 = vmul.f32 %v844, 1.442695
        %v1223 = vpow.pop %v1222
        %v1224 = vmul.f32 %v845, 1.442695
        %v1225 = vpow.pop %v1224
        %v1226 = vmul.f32 %v846, 1.442695
        %v1227 = vpow.pop %v1226
        %v1228 = vmul.f32 %v847, 1.442695
        %v1229 = vpow.pop %v1228
        %v1230 = vmul.f32 %v848, 1.442695
        %v1231 = vpow.pop %v1230
        %v1232 = vmul.f32 %v849, 1.442695
        %v1233 = vpow.pop %v1232
        %v1234 = vmul.f32 %v850, 1.442695
        %v1235 = vpow.pop %v1234
        %v1236 = vmul.f32 %v851, 1.442695
        %v1237 = vpow.pop %v1236
        %v1238 = vmul.f32 %v852, 1.442695
        %v1239 = vpow.pop %v1238
        %v1240 = vmul.f32 %v853, 1.442695
        %v1241 = vpow.pop %v1240
        %v1242 = vmul.f32 %v854, 1.442695
        %v1243 = vpow.pop %v1242
        %v1244 = vmul.f32 %v855, 1.442695
        %v1245 = vpow.pop %v1244
        %v1246 = vmul.f32 %v856, 1.442695
        %v1247 = vpow.pop %v1246
        %v1248 = vmul.f32 %v857, 1.442695
        %v1249 = vpow.pop %v1248
        %v1250 = vmul.f32 %v858, 1.442695
        %v1251 = vpow.pop %v1250
        %v1252 = vmul.f32 %v859, 1.442695
        %v1253 = vpow.pop %v1252
        %v1254 = vmul.f32 %v860, 1.442695
        %v1255 = vpow.pop %v1254
        %v1256 = vmul.f32 %v861, 1.442695
        %v1257 = vpow.pop %v1256
        %v1258 = vmul.f32 %v862, 1.442695
        %v1259 = vpow.pop %v1258
        %v1260 = vmul.f32 %v863, 1.442695
        %v1261 = vpow.pop %v1260
        %v1262 = vmul.f32 %v864, 1.442695
        %v1263 = vpow.pop %v1262
        %v1264 = vmul.f32 %v865, 1.442695
        %v1265 = vpow.pop %v1264
        %v1266 = vmul.f32 %v866, 1.442695
        %v1267 = vpow.pop %v1266
        %v1268 = vmul.f32 %v867, 1.442695
        %v1269 = vpow.pop %v1268
        %v1270 = vmul.f32 %v868, 1.442695
        %v1271 = vpow.pop %v1270
        %v1272 = vmul.f32 %v869, 1.442695
        %v1273 = vpow.pop %v1272
        %v1274 = vmul.f32 %v870, 1.442695
        %v1275 = vpow.pop %v1274
        %v1276 = vmul.f32 %v871, 1.442695
        %v1277 = vpow.pop %v1276
        %v1278 = vmul.f32 %v872, 1.442695
        %v1279 = vpow.pop %v1278
        %v1280 = vmul.f32 %v873, 1.442695
        %v1281 = vpow.pop %v1280
        %v1282 = vmul.f32 %v874, 1.442695
        %v1283 = vpow.pop %v1282
        %v1284 = vmul.f32 %v875, 1.442695
        %v1285 = vpow.pop %v1284
        %v1286 = vmul.f32 %v876, 1.442695
        %v1287 = vpow.pop %v1286
        %v1288 = vmul.f32 %v877, 1.442695
        %v1289 = vpow.pop %v1288
        %v1290 = vmul.f32 %v878, 1.442695
        %v1291 = vpow.pop %v1290
        %v1292 = vmul.f32 %v879, 1.442695
        %v1293 = vpow.pop %v1292
        %v1294 = vmul.f32 %v880, 1.442695
        %v1295 = vpow.pop %v1294
        %v1296 = vmul.f32 %v881, 1.442695
        %v1297 = vpow.pop %v1296
        %v1298 = vmul.f32 %v882, 1.442695
        %v1299 = vpow.pop %v1298
        %v1300 = vmul.f32 %v883, 1.442695
        %v1301 = vpow.pop %v1300
        %v1302 = vmul.f32 %v884, 1.442695
        %v1303 = vpow.pop %v1302
        %v1304 = vmul.f32 %v885, 1.442695
        %v1305 = vpow.pop %v1304
        %v1306 = vmul.f32 %v886, 1.442695
        %v1307 = vpow.pop %v1306
        %v1308 = vmul.f32 %v887, 1.442695
        %v1309 = vpow.pop %v1308
        %v1310 = vmul.f32 %v888, 1.442695
        %v1311 = vpow.pop %v1310
        %v1312 = vmul.f32 %v889, 1.442695
        %v1313 = vpow.pop %v1312
        %v1314 = vmul.f32 %v890, 1.442695
        %v1315 = vpow.pop %v1314
        %v1316 = vmul.f32 %v891, 1.442695
        %v1317 = vpow.pop %v1316
        %v1318 = vmul.f32 %v892, 1.442695
        %v1319 = vpow.pop %v1318
        %v1320 = vmul.f32 %v893, 1.442695
        %v1321 = vpow.pop %v1320
        %v1322 = vmul.f32 %v894, 1.442695
        %v1323 = vpow.pop %v1322
        %v1324 = vmul.f32 %v895, 1.442695
        %v1325 = vpow.pop %v1324
        %v1326 = vmul.f32 %v896, 1.442695
        %v1327 = vpow.pop %v1326
        %v1328 = vmul.f32 %v897, 1.442695
        %v1329 = vpow.pop %v1328
        %v1330 = vmul.f32 %v898, 1.442695
        %v1331 = vpow.pop %v1330
        %v1332 = vmul.f32 %v899, 1.442695
        %v1333 = vpow.pop %v1332
        %v1334 = vmul.f32 %v900, 1.442695
        %v1335 = vpow.pop %v1334
        %v1336 = vmul.f32 %v901, 1.442695
        %v1337 = vpow.pop %v1336
        %v1338 = vmul.f32 %v902, 1.442695
        %v1339 = vpow.pop %v1338
        %v1340 = vmul.f32 %v903, 1.442695
        %v1341 = vpow.pop %v1340
        %v1342 = vmul.f32 %v904, 1.442695
        %v1343 = vpow.pop %v1342
        %v1344 = vmul.f32 %v905, 1.442695
        %v1345 = vpow.pop %v1344
        %v1346 = vmul.f32 %v906, 1.442695
        %v1347 = vpow.pop %v1346
        %v1348 = vmul.f32 %v907, 1.442695
        %v1349 = vpow.pop %v1348
        %v1350 = vmul.f32 %v908, 1.442695
        %v1351 = vpow.pop %v1350
        %v1352 = vmul.f32 %v909, 1.442695
        %v1353 = vpow.pop %v1352
        %v1354 = vmul.f32 %v910, 1.442695
        %v1355 = vpow.pop %v1354
        %v1356 = vmul.f32 %v911, 1.442695
        %v1357 = vpow.pop %v1356
        %v1358 = vmul.f32 %v912, 1.442695
        %v1359 = vpow.pop %v1358
        %v1360 = vmul.f32 %v913, 1.442695
        %v1361 = vpow.pop %v1360
        %v1362 = vmul.f32 %v914, 1.442695
        %v1363 = vpow.pop %v1362
        %v1364 = vmul.f32 %v915, 1.442695
        %v1365 = vpow.pop %v1364
        %v1366 = vmul.f32 %v916, 1.442695
        %v1367 = vpow.pop %v1366
        %v1368 = vmul.f32 %v917, 1.442695
        %v1369 = vpow.pop %v1368
        %v1370 = vmul.f32 %v918, 1.442695
        %v1371 = vpow.pop %v1370
        %v1372 = vmul.f32 %v919, 1.442695
        %v1373 = vpow.pop %v1372
        %v1374 = vmul.f32 %v920, 1.442695
        %v1375 = vpow.pop %v1374
        %v1376 = vmul.f32 %v921, 1.442695
        %v1377 = vpow.pop %v1376
        %v1378 = vmul.f32 %v922, 1.442695
        %v1379 = vpow.pop %v1378
        %v1380 = vmul.f32 %v923, 1.442695
        %v1381 = vpow.pop %v1380
        %v1382 = vmul.f32 %v924, 1.442695
        %v1383 = vpow.pop %v1382
        %v1384 = vmul.f32 %v925, 1.442695
        %v1385 = vpow.pop %v1384
        %v1386 = vmul.f32 %v926, 1.442695
        %v1387 = vpow.pop %v1386
        %v1388 = vmul.f32 %v927, 1.442695
        %v1389 = vpow.pop %v1388
        %v1390 = vmul.f32 %v928, 1.442695
        %v1391 = vpow.pop %v1390
        %v1392 = vmul.f32 %v929, 1.442695
        %v1393 = vpow.pop %v1392
        %v1394 = vmul.f32 %v930, 1.442695
        %v1395 = vpow.pop %v1394
        %v1396 = vmul.f32 %v931, 1.442695
        %v1397 = vpow.pop %v1396
        %v1398 = vmul.f32 %v932, 1.442695
        %v1399 = vpow.pop %v1398
        %v1400 = vmul.f32 %v933, 1.442695
        %v1401 = vpow.pop %v1400
        %v1402 = vmul.f32 %v934, 1.442695
        %v1403 = vpow.pop %v1402
        %v1404 = vmul.f32 %v935, 1.442695
        %v1405 = vpow.pop %v1404
        %v1406 = vmul.f32 %v936, 1.442695
        %v1407 = vpow.pop %v1406
        %v1408 = vmul.f32 %v937, 1.442695
        %v1409 = vpow.pop %v1408
        %v1410 = vmul.f32 %v938, 1.442695
        %v1411 = vpow.pop %v1410
        %v1412 = vmul.f32 %v939, 1.442695
        %v1413 = vpow.pop %v1412
        %v1414 = vmul.f32 %v940, 1.442695
        %v1415 = vpow.pop %v1414
        %v1416 = vmul.f32 %v941, 1.442695
        %v1417 = vpow.pop %v1416
        %v1418 = vmul.f32 %v942, 1.442695
        %v1419 = vpow.pop %v1418
        %v1420 = vmul.f32 %v943, 1.442695
        %v1421 = vpow.pop %v1420
        %v1422 = vmul.f32 %v944, 1.442695
        %v1423 = vpow.pop %v1422
        %v1424 = vmul.f32 %v945, 1.442695
        %v1425 = vpow.pop %v1424
        %v1426 = vmul.f32 %v946, 1.442695
        %v1427 = vpow.pop %v1426
        %v1428 = vmul.f32 %v947, 1.442695
        %v1429 = vpow.pop %v1428
        %v1430 = vmul.f32 %v948, 1.442695
        %v1431 = vpow.pop %v1430
        %v1432 = vmul.f32 %v949, 1.442695
        %v1433 = vpow.pop %v1432
        %v1434 = vmul.f32 %v950, 1.442695
        %v1435 = vpow.pop %v1434
        %v1436 = vmul.f32 %v951, 1.442695
        %v1437 = vpow.pop %v1436
        %v1438 = vmul.f32 %v952, 1.442695
        %v1439 = vpow.pop %v1438
        %v1440 = vmul.f32 %v953, 1.442695
        %v1441 = vpow.pop %v1440
        %v1442 = vmul.f32 %v954, 1.442695
        %v1443 = vpow.pop %v1442
        %v1444 = vmul.f32 %v955, 1.442695
        %v1445 = vpow.pop %v1444
        %v1446 = vmul.f32 %v956, 1.442695
        %v1447 = vpow.pop %v1446
        %v1448 = vmul.f32 %v957, 1.442695
        %v1449 = vpow.pop %v1448
        %v1450 = vmul.f32 %v958, 1.442695
        %v1451 = vpow.pop %v1450
        %v1452 = vmul.f32 %v959, 1.442695
        %v1453 = vpow.pop %v1452
        %v1454 = vmul.f32 %v960, 1.442695
        %v1455 = vpow.pop %v1454
        %v1456 = vmul.f32 %v961, 1.442695
        %v1457 = vpow.pop %v1456
        %v1458 = vmul.f32 %v962, 1.442695
        %v1459 = vpow.pop %v1458
        %v1460 = vmul.f32 %v963, 1.442695
        %v1461 = vpow.pop %v1460
        %v1462 = vmul.f32 %v964, 1.442695
        %v1463 = vpow.pop %v1462
        %v1464 = vmul.f32 %v965, 1.442695
        %v1465 = vpow.pop %v1464
        %v1466 = vmul.f32 %v966, 1.442695
        %v1467 = vpow.pop %v1466
        %v1468 = vmul.f32 %v967, 1.442695
        %v1469 = vpow.pop %v1468
        %v1470 = vmul.f32 %v968, 1.442695
        %v1471 = vpow.pop %v1470
        %v1472 = vmul.f32 %v969, 1.442695
        %v1473 = vpow.pop %v1472
        %v1474 = vmul.f32 %v970, 1.442695
        %v1475 = vpow.pop %v1474
        %v1476 = vmul.f32 %v971, 1.442695
        %v1477 = vpow.pop %v1476
        %v1478 = vmul.f32 %v972, 1.442695
        %v1479 = vpow.pop %v1478
        %v1480 = vmul.f32 %v973, 1.442695
        %v1481 = vpow.pop %v1480
        %v1482 = vmul.f32 %v974, 1.442695
        %v1483 = vpow.pop %v1482
        %v1484 = vmul.f32 %v975, 1.442695
        %v1485 = vpow.pop %v1484
        %v1486 = vmul.f32 %v976, 1.442695
        %v1487 = vpow.pop %v1486
        %v1488 = vmul.f32 %v977, 1.442695
        %v1489 = vpow.pop %v1488
        %v1490 = vadd.f32 %v979, 1.0
        %v1491 = vadd.f32 %v981, 1.0
        %v1492 = vadd.f32 %v983, 1.0
        %v1493 = vadd.f32 %v985, 1.0
        %v1494 = vadd.f32 %v987, 1.0
        %v1495 = vadd.f32 %v989, 1.0
        %v1496 = vadd.f32 %v991, 1.0
        %v1497 = vadd.f32 %v993, 1.0
        %v1498 = vadd.f32 %v995, 1.0
        %v1499 = vadd.f32 %v997, 1.0
        %v1500 = vadd.f32 %v999, 1.0
        %v1501 = vadd.f32 %v1001, 1.0
        %v1502 = vadd.f32 %v1003, 1.0
        %v1503 = vadd.f32 %v1005, 1.0
        %v1504 = vadd.f32 %v1007, 1.0
        %v1505 = vadd.f32 %v1009, 1.0
        %v1506 = vadd.f32 %v1011, 1.0
        %v1507 = vadd.f32 %v1013, 1.0
        %v1508 = vadd.f32 %v1015, 1.0
        %v1509 = vadd.f32 %v1017, 1.0
        %v1510 = vadd.f32 %v1019, 1.0
        %v1511 = vadd.f32 %v1021, 1.0
        %v1512 = vadd.f32 %v1023, 1.0
        %v1513 = vadd.f32 %v1025, 1.0
        %v1514 = vadd.f32 %v1027, 1.0
        %v1515 = vadd.f32 %v1029, 1.0
        %v1516 = vadd.f32 %v1031, 1.0
        %v1517 = vadd.f32 %v1033, 1.0
        %v1518 = vadd.f32 %v1035, 1.0
        %v1519 = vadd.f32 %v1037, 1.0
        %v1520 = vadd.f32 %v1039, 1.0
        %v1521 = vadd.f32 %v1041, 1.0
        %v1522 = vadd.f32 %v1043, 1.0
        %v1523 = vadd.f32 %v1045, 1.0
        %v1524 = vadd.f32 %v1047, 1.0
        %v1525 = vadd.f32 %v1049, 1.0
        %v1526 = vadd.f32 %v1051, 1.0
        %v1527 = vadd.f32 %v1053, 1.0
        %v1528 = vadd.f32 %v1055, 1.0
        %v1529 = vadd.f32 %v1057, 1.0
        %v1530 = vadd.f32 %v1059, 1.0
        %v1531 = vadd.f32 %v1061, 1.0
        %v1532 = vadd.f32 %v1063, 1.0
        %v1533 = vadd.f32 %v1065, 1.0
        %v1534 = vadd.f32 %v1067, 1.0
        %v1535 = vadd.f32 %v1069, 1.0
        %v1536 = vadd.f32 %v1071, 1.0
        %v1537 = vadd.f32 %v1073, 1.0
        %v1538 = vadd.f32 %v1075, 1.0
        %v1539 = vadd.f32 %v1077, 1.0
        %v1540 = vadd.f32 %v1079, 1.0
        %v1541 = vadd.f32 %v1081, 1.0
        %v1542 = vadd.f32 %v1083, 1.0
        %v1543 = vadd.f32 %v1085, 1.0
        %v1544 = vadd.f32 %v1087, 1.0
        %v1545 = vadd.f32 %v1089, 1.0
        %v1546 = vadd.f32 %v1091, 1.0
        %v1547 = vadd.f32 %v1093, 1.0
        %v1548 = vadd.f32 %v1095, 1.0
        %v1549 = vadd.f32 %v1097, 1.0
        %v1550 = vadd.f32 %v1099, 1.0
        %v1551 = vadd.f32 %v1101, 1.0
        %v1552 = vadd.f32 %v1103, 1.0
        %v1553 = vadd.f32 %v1105, 1.0
        %v1554 = vadd.f32 %v1107, 1.0
        %v1555 = vadd.f32 %v1109, 1.0
        %v1556 = vadd.f32 %v1111, 1.0
        %v1557 = vadd.f32 %v1113, 1.0
        %v1558 = vadd.f32 %v1115, 1.0
        %v1559 = vadd.f32 %v1117, 1.0
        %v1560 = vadd.f32 %v1119, 1.0
        %v1561 = vadd.f32 %v1121, 1.0
        %v1562 = vadd.f32 %v1123, 1.0
        %v1563 = vadd.f32 %v1125, 1.0
        %v1564 = vadd.f32 %v1127, 1.0
        %v1565 = vadd.f32 %v1129, 1.0
        %v1566 = vadd.f32 %v1131, 1.0
        %v1567 = vadd.f32 %v1133, 1.0
        %v1568 = vadd.f32 %v1135, 1.0
        %v1569 = vadd.f32 %v1137, 1.0
        %v1570 = vadd.f32 %v1139, 1.0
        %v1571 = vadd.f32 %v1141, 1.0
        %v1572 = vadd.f32 %v1143, 1.0
        %v1573 = vadd.f32 %v1145, 1.0
        %v1574 = vadd.f32 %v1147, 1.0
        %v1575 = vadd.f32 %v1149, 1.0
        %v1576 = vadd.f32 %v1151, 1.0
        %v1577 = vadd.f32 %v1153, 1.0
        %v1578 = vadd.f32 %v1155, 1.0
        %v1579 = vadd.f32 %v1157, 1.0
        %v1580 = vadd.f32 %v1159, 1.0
        %v1581 = vadd.f32 %v1161, 1.0
        %v1582 = vadd.f32 %v1163, 1.0
        %v1583 = vadd.f32 %v1165, 1.0
        %v1584 = vadd.f32 %v1167, 1.0
        %v1585 = vadd.f32 %v1169, 1.0
        %v1586 = vadd.f32 %v1171, 1.0
        %v1587 = vadd.f32 %v1173, 1.0
        %v1588 = vadd.f32 %v1175, 1.0
        %v1589 = vadd.f32 %v1177, 1.0
        %v1590 = vadd.f32 %v1179, 1.0
        %v1591 = vadd.f32 %v1181, 1.0
        %v1592 = vadd.f32 %v1183, 1.0
        %v1593 = vadd.f32 %v1185, 1.0
        %v1594 = vadd.f32 %v1187, 1.0
        %v1595 = vadd.f32 %v1189, 1.0
        %v1596 = vadd.f32 %v1191, 1.0
        %v1597 = vadd.f32 %v1193, 1.0
        %v1598 = vadd.f32 %v1195, 1.0
        %v1599 = vadd.f32 %v1197, 1.0
        %v1600 = vadd.f32 %v1199, 1.0
        %v1601 = vadd.f32 %v1201, 1.0
        %v1602 = vadd.f32 %v1203, 1.0
        %v1603 = vadd.f32 %v1205, 1.0
        %v1604 = vadd.f32 %v1207, 1.0
        %v1605 = vadd.f32 %v1209, 1.0
        %v1606 = vadd.f32 %v1211, 1.0
        %v1607 = vadd.f32 %v1213, 1.0
        %v1608 = vadd.f32 %v1215, 1.0
        %v1609 = vadd.f32 %v1217, 1.0
        %v1610 = vadd.f32 %v1219, 1.0
        %v1611 = vadd.f32 %v1221, 1.0
        %v1612 = vadd.f32 %v1223, 1.0
        %v1613 = vadd.f32 %v1225, 1.0
        %v1614 = vadd.f32 %v1227, 1.0
        %v1615 = vadd.f32 %v1229, 1.0
        %v1616 = vadd.f32 %v1231, 1.0
        %v1617 = vadd.f32 %v1233, 1.0
        %v1618 = vadd.f32 %v1235, 1.0
        %v1619 = vadd.f32 %v1237, 1.0
        %v1620 = vadd.f32 %v1239, 1.0
        %v1621 = vadd.f32 %v1241, 1.0
        %v1622 = vadd.f32 %v1243, 1.0
        %v1623 = vadd.f32 %v1245, 1.0
        %v1624 = vadd.f32 %v1247, 1.0
        %v1625 = vadd.f32 %v1249, 1.0
        %v1626 = vadd.f32 %v1251, 1.0
        %v1627 = vadd.f32 %v1253, 1.0
        %v1628 = vadd.f32 %v1255, 1.0
        %v1629 = vadd.f32 %v1257, 1.0
        %v1630 = vadd.f32 %v1259, 1.0
        %v1631 = vadd.f32 %v1261, 1.0
        %v1632 = vadd.f32 %v1263, 1.0
        %v1633 = vadd.f32 %v1265, 1.0
        %v1634 = vadd.f32 %v1267, 1.0
        %v1635 = vadd.f32 %v1269, 1.0
        %v1636 = vadd.f32 %v1271, 1.0
        %v1637 = vadd.f32 %v1273, 1.0
        %v1638 = vadd.f32 %v1275, 1.0
        %v1639 = vadd.f32 %v1277, 1.0
        %v1640 = vadd.f32 %v1279, 1.0
        %v1641 = vadd.f32 %v1281, 1.0
        %v1642 = vadd.f32 %v1283, 1.0
        %v1643 = vadd.f32 %v1285, 1.0
        %v1644 = vadd.f32 %v1287, 1.0
        %v1645 = vadd.f32 %v1289, 1.0
        %v1646 = vadd.f32 %v1291, 1.0
        %v1647 = vadd.f32 %v1293, 1.0
        %v1648 = vadd.f32 %v1295, 1.0
        %v1649 = vadd.f32 %v1297, 1.0
        %v1650 = vadd.f32 %v1299, 1.0
        %v1651 = vadd.f32 %v1301, 1.0
        %v1652 = vadd.f32 %v1303, 1.0
        %v1653 = vadd.f32 %v1305, 1.0
        %v1654 = vadd.f32 %v1307, 1.0
        %v1655 = vadd.f32 %v1309, 1.0
        %v1656 = vadd.f32 %v1311, 1.0
        %v1657 = vadd.f32 %v1313, 1.0
        %v1658 = vadd.f32 %v1315, 1.0
        %v1659 = vadd.f32 %v1317, 1.0
        %v1660 = vadd.f32 %v1319, 1.0
        %v1661 = vadd.f32 %v1321, 1.0
        %v1662 = vadd.f32 %v1323, 1.0
        %v1663 = vadd.f32 %v1325, 1.0
        %v1664 = vadd.f32 %v1327, 1.0
        %v1665 = vadd.f32 %v1329, 1.0
        %v1666 = vadd.f32 %v1331, 1.0
        %v1667 = vadd.f32 %v1333, 1.0
        %v1668 = vadd.f32 %v1335, 1.0
        %v1669 = vadd.f32 %v1337, 1.0
        %v1670 = vadd.f32 %v1339, 1.0
        %v1671 = vadd.f32 %v1341, 1.0
        %v1672 = vadd.f32 %v1343, 1.0
        %v1673 = vadd.f32 %v1345, 1.0
        %v1674 = vadd.f32 %v1347, 1.0
        %v1675 = vadd.f32 %v1349, 1.0
        %v1676 = vadd.f32 %v1351, 1.0
        %v1677 = vadd.f32 %v1353, 1.0
        %v1678 = vadd.f32 %v1355, 1.0
        %v1679 = vadd.f32 %v1357, 1.0
        %v1680 = vadd.f32 %v1359, 1.0
        %v1681 = vadd.f32 %v1361, 1.0
        %v1682 = vadd.f32 %v1363, 1.0
        %v1683 = vadd.f32 %v1365, 1.0
        %v1684 = vadd.f32 %v1367, 1.0
        %v1685 = vadd.f32 %v1369, 1.0
        %v1686 = vadd.f32 %v1371, 1.0
        %v1687 = vadd.f32 %v1373, 1.0
        %v1688 = vadd.f32 %v1375, 1.0
        %v1689 = vadd.f32 %v1377, 1.0
        %v1690 = vadd.f32 %v1379, 1.0
        %v1691 = vadd.f32 %v1381, 1.0
        %v1692 = vadd.f32 %v1383, 1.0
        %v1693 = vadd.f32 %v1385, 1.0
        %v1694 = vadd.f32 %v1387, 1.0
        %v1695 = vadd.f32 %v1389, 1.0
        %v1696 = vadd.f32 %v1391, 1.0
        %v1697 = vadd.f32 %v1393, 1.0
        %v1698 = vadd.f32 %v1395, 1.0
        %v1699 = vadd.f32 %v1397, 1.0
        %v1700 = vadd.f32 %v1399, 1.0
        %v1701 = vadd.f32 %v1401, 1.0
        %v1702 = vadd.f32 %v1403, 1.0
        %v1703 = vadd.f32 %v1405, 1.0
        %v1704 = vadd.f32 %v1407, 1.0
        %v1705 = vadd.f32 %v1409, 1.0
        %v1706 = vadd.f32 %v1411, 1.0
        %v1707 = vadd.f32 %v1413, 1.0
        %v1708 = vadd.f32 %v1415, 1.0
        %v1709 = vadd.f32 %v1417, 1.0
        %v1710 = vadd.f32 %v1419, 1.0
        %v1711 = vadd.f32 %v1421, 1.0
        %v1712 = vadd.f32 %v1423, 1.0
        %v1713 = vadd.f32 %v1425, 1.0
        %v1714 = vadd.f32 %v1427, 1.0
        %v1715 = vadd.f32 %v1429, 1.0
        %v1716 = vadd.f32 %v1431, 1.0
        %v1717 = vadd.f32 %v1433, 1.0
        %v1718 = vadd.f32 %v1435, 1.0
        %v1719 = vadd.f32 %v1437, 1.0
        %v1720 = vadd.f32 %v1439, 1.0
        %v1721 = vadd.f32 %v1441, 1.0
        %v1722 = vadd.f32 %v1443, 1.0
        %v1723 = vadd.f32 %v1445, 1.0
        %v1724 = vadd.f32 %v1447, 1.0
        %v1725 = vadd.f32 %v1449, 1.0
        %v1726 = vadd.f32 %v1451, 1.0
        %v1727 = vadd.f32 %v1453, 1.0
        %v1728 = vadd.f32 %v1455, 1.0
        %v1729 = vadd.f32 %v1457, 1.0
        %v1730 = vadd.f32 %v1459, 1.0
        %v1731 = vadd.f32 %v1461, 1.0
        %v1732 = vadd.f32 %v1463, 1.0
        %v1733 = vadd.f32 %v1465, 1.0
        %v1734 = vadd.f32 %v1467, 1.0
        %v1735 = vadd.f32 %v1469, 1.0
        %v1736 = vadd.f32 %v1471, 1.0
        %v1737 = vadd.f32 %v1473, 1.0
        %v1738 = vadd.f32 %v1475, 1.0
        %v1739 = vadd.f32 %v1477, 1.0
        %v1740 = vadd.f32 %v1479, 1.0
        %v1741 = vadd.f32 %v1481, 1.0
        %v1742 = vadd.f32 %v1483, 1.0
        %v1743 = vadd.f32 %v1485, 1.0
        %v1744 = vadd.f32 %v1487, 1.0
        %v1745 = vadd.f32 %v1489, 1.0
        %v1746 = vrcp.pop %v1490
        %v1747 = vmul.f32 %v1490, %v1746
        %v1748 = vsub.f32 1.0, %v1747
        %v1749 = vmul.f32 %v1746, %v1748
        %v1750 = vadd.f32 %v1746, %v1749
        %vm1751 = vweird.f32 %v1490
        %vm1752 = vweird.f32 %v1746
        %vm1753 = vmor %vm1751, %vm1752
        %v1754 = vsel %vm1753, %v1746, %v1750
        %v1755 = vand.u32 2147483647, %v1490
        %vm1756 = vcmp.eq.f32.partialorder %v1755, 8.507059e+37
        %v1757 = vand.u32 %v1490, 2147483648
        %v1758 = vor.u32 1.1754944e-38, %v1757
        %v1759 = vsel %vm1756, %v1758, %v1754
        %v1760 = vmul.f32 1.0, %v1759
        %v1761 = vrcp.pop %v1491
        %v1762 = vmul.f32 %v1491, %v1761
        %v1763 = vsub.f32 1.0, %v1762
        %v1764 = vmul.f32 %v1761, %v1763
        %v1765 = vadd.f32 %v1761, %v1764
        %vm1766 = vweird.f32 %v1491
        %vm1767 = vweird.f32 %v1761
        %vm1768 = vmor %vm1766, %vm1767
        %v1769 = vsel %vm1768, %v1761, %v1765
        %v1770 = vand.u32 2147483647, %v1491
        %vm1771 = vcmp.eq.f32.partialorder %v1770, 8.507059e+37
        %v1772 = vand.u32 %v1491, 2147483648
        %v1773 = vor.u32 1.1754944e-38, %v1772
        %v1774 = vsel %vm1771, %v1773, %v1769
        %v1775 = vmul.f32 1.0, %v1774
        %v1776 = vrcp.pop %v1492
        %v1777 = vmul.f32 %v1492, %v1776
        %v1778 = vsub.f32 1.0, %v1777
        %v1779 = vmul.f32 %v1776, %v1778
        %v1780 = vadd.f32 %v1776, %v1779
        %vm1781 = vweird.f32 %v1492
        %vm1782 = vweird.f32 %v1776
        %vm1783 = vmor %vm1781, %vm1782
        %v1784 = vsel %vm1783, %v1776, %v1780
        %v1785 = vand.u32 2147483647, %v1492
        %vm1786 = vcmp.eq.f32.partialorder %v1785, 8.507059e+37
        %v1787 = vand.u32 %v1492, 2147483648
        %v1788 = vor.u32 1.1754944e-38, %v1787
        %v1789 = vsel %vm1786, %v1788, %v1784
        %v1790 = vmul.f32 1.0, %v1789
        %v1791 = vrcp.pop %v1493
        %v1792 = vmul.f32 %v1493, %v1791
        %v1793 = vsub.f32 1.0, %v1792
        %v1794 = vmul.f32 %v1791, %v1793
        %v1795 = vadd.f32 %v1791, %v1794
        %vm1796 = vweird.f32 %v1493
        %vm1797 = vweird.f32 %v1791
        %vm1798 = vmor %vm1796, %vm1797
        %v1799 = vsel %vm1798, %v1791, %v1795
        %v1800 = vand.u32 2147483647, %v1493
        %vm1801 = vcmp.eq.f32.partialorder %v1800, 8.507059e+37
        %v1802 = vand.u32 %v1493, 2147483648
        %v1803 = vor.u32 1.1754944e-38, %v1802
        %v1804 = vsel %vm1801, %v1803, %v1799
        %v1805 = vmul.f32 1.0, %v1804
        %v1806 = vrcp.pop %v1494
        %v1807 = vmul.f32 %v1494, %v1806
        %v1808 = vsub.f32 1.0, %v1807
        %v1809 = vmul.f32 %v1806, %v1808
        %v1810 = vadd.f32 %v1806, %v1809
        %vm1811 = vweird.f32 %v1494
        %vm1812 = vweird.f32 %v1806
        %vm1813 = vmor %vm1811, %vm1812
        %v1814 = vsel %vm1813, %v1806, %v1810
        %v1815 = vand.u32 2147483647, %v1494
        %vm1816 = vcmp.eq.f32.partialorder %v1815, 8.507059e+37
        %v1817 = vand.u32 %v1494, 2147483648
        %v1818 = vor.u32 1.1754944e-38, %v1817
        %v1819 = vsel %vm1816, %v1818, %v1814
        %v1820 = vmul.f32 1.0, %v1819
        %v1821 = vrcp.pop %v1495
        %v1822 = vmul.f32 %v1495, %v1821
        %v1823 = vsub.f32 1.0, %v1822
        %v1824 = vmul.f32 %v1821, %v1823
        %v1825 = vadd.f32 %v1821, %v1824
        %vm1826 = vweird.f32 %v1495
        %vm1827 = vweird.f32 %v1821
        %vm1828 = vmor %vm1826, %vm1827
        %v1829 = vsel %vm1828, %v1821, %v1825
        %v1830 = vand.u32 2147483647, %v1495
        %vm1831 = vcmp.eq.f32.partialorder %v1830, 8.507059e+37
        %v1832 = vand.u32 %v1495, 2147483648
        %v1833 = vor.u32 1.1754944e-38, %v1832
        %v1834 = vsel %vm1831, %v1833, %v1829
        %v1835 = vmul.f32 1.0, %v1834
        %v1836 = vrcp.pop %v1496
        %v1837 = vmul.f32 %v1496, %v1836
        %v1838 = vsub.f32 1.0, %v1837
        %v1839 = vmul.f32 %v1836, %v1838
        %v1840 = vadd.f32 %v1836, %v1839
        %vm1841 = vweird.f32 %v1496
        %vm1842 = vweird.f32 %v1836
        %vm1843 = vmor %vm1841, %vm1842
        %v1844 = vsel %vm1843, %v1836, %v1840
        %v1845 = vand.u32 2147483647, %v1496
        %vm1846 = vcmp.eq.f32.partialorder %v1845, 8.507059e+37
        %v1847 = vand.u32 %v1496, 2147483648
        %v1848 = vor.u32 1.1754944e-38, %v1847
        %v1849 = vsel %vm1846, %v1848, %v1844
        %v1850 = vmul.f32 1.0, %v1849
        %v1851 = vrcp.pop %v1497
        %v1852 = vmul.f32 %v1497, %v1851
        %v1853 = vsub.f32 1.0, %v1852
        %v1854 = vmul.f32 %v1851, %v1853
        %v1855 = vadd.f32 %v1851, %v1854
        %vm1856 = vweird.f32 %v1497
        %vm1857 = vweird.f32 %v1851
        %vm1858 = vmor %vm1856, %vm1857
        %v1859 = vsel %vm1858, %v1851, %v1855
        %v1860 = vand.u32 2147483647, %v1497
        %vm1861 = vcmp.eq.f32.partialorder %v1860, 8.507059e+37
        %v1862 = vand.u32 %v1497, 2147483648
        %v1863 = vor.u32 1.1754944e-38, %v1862
        %v1864 = vsel %vm1861, %v1863, %v1859
        %v1865 = vmul.f32 1.0, %v1864
        %v1866 = vrcp.pop %v1498
        %v1867 = vmul.f32 %v1498, %v1866
        %v1868 = vsub.f32 1.0, %v1867
        %v1869 = vmul.f32 %v1866, %v1868
        %v1870 = vadd.f32 %v1866, %v1869
        %vm1871 = vweird.f32 %v1498
        %vm1872 = vweird.f32 %v1866
        %vm1873 = vmor %vm1871, %vm1872
        %v1874 = vsel %vm1873, %v1866, %v1870
        %v1875 = vand.u32 2147483647, %v1498
        %vm1876 = vcmp.eq.f32.partialorder %v1875, 8.507059e+37
        %v1877 = vand.u32 %v1498, 2147483648
        %v1878 = vor.u32 1.1754944e-38, %v1877
        %v1879 = vsel %vm1876, %v1878, %v1874
        %v1880 = vmul.f32 1.0, %v1879
        %v1881 = vrcp.pop %v1499
        %v1882 = vmul.f32 %v1499, %v1881
        %v1883 = vsub.f32 1.0, %v1882
        %v1884 = vmul.f32 %v1881, %v1883
        %v1885 = vadd.f32 %v1881, %v1884
        %vm1886 = vweird.f32 %v1499
        %vm1887 = vweird.f32 %v1881
        %vm1888 = vmor %vm1886, %vm1887
        %v1889 = vsel %vm1888, %v1881, %v1885
        %v1890 = vand.u32 2147483647, %v1499
        %vm1891 = vcmp.eq.f32.partialorder %v1890, 8.507059e+37
        %v1892 = vand.u32 %v1499, 2147483648
        %v1893 = vor.u32 1.1754944e-38, %v1892
        %v1894 = vsel %vm1891, %v1893, %v1889
        %v1895 = vmul.f32 1.0, %v1894
        %v1896 = vrcp.pop %v1500
        %v1897 = vmul.f32 %v1500, %v1896
        %v1898 = vsub.f32 1.0, %v1897
        %v1899 = vmul.f32 %v1896, %v1898
        %v1900 = vadd.f32 %v1896, %v1899
        %vm1901 = vweird.f32 %v1500
        %vm1902 = vweird.f32 %v1896
        %vm1903 = vmor %vm1901, %vm1902
        %v1904 = vsel %vm1903, %v1896, %v1900
        %v1905 = vand.u32 2147483647, %v1500
        %vm1906 = vcmp.eq.f32.partialorder %v1905, 8.507059e+37
        %v1907 = vand.u32 %v1500, 2147483648
        %v1908 = vor.u32 1.1754944e-38, %v1907
        %v1909 = vsel %vm1906, %v1908, %v1904
        %v1910 = vmul.f32 1.0, %v1909
        %v1911 = vrcp.pop %v1501
        %v1912 = vmul.f32 %v1501, %v1911
        %v1913 = vsub.f32 1.0, %v1912
        %v1914 = vmul.f32 %v1911, %v1913
        %v1915 = vadd.f32 %v1911, %v1914
        %vm1916 = vweird.f32 %v1501
        %vm1917 = vweird.f32 %v1911
        %vm1918 = vmor %vm1916, %vm1917
        %v1919 = vsel %vm1918, %v1911, %v1915
        %v1920 = vand.u32 2147483647, %v1501
        %vm1921 = vcmp.eq.f32.partialorder %v1920, 8.507059e+37
        %v1922 = vand.u32 %v1501, 2147483648
        %v1923 = vor.u32 1.1754944e-38, %v1922
        %v1924 = vsel %vm1921, %v1923, %v1919
        %v1925 = vmul.f32 1.0, %v1924
        %v1926 = vrcp.pop %v1502
        %v1927 = vmul.f32 %v1502, %v1926
        %v1928 = vsub.f32 1.0, %v1927
        %v1929 = vmul.f32 %v1926, %v1928
        %v1930 = vadd.f32 %v1926, %v1929
        %vm1931 = vweird.f32 %v1502
        %vm1932 = vweird.f32 %v1926
        %vm1933 = vmor %vm1931, %vm1932
        %v1934 = vsel %vm1933, %v1926, %v1930
        %v1935 = vand.u32 2147483647, %v1502
        %vm1936 = vcmp.eq.f32.partialorder %v1935, 8.507059e+37
        %v1937 = vand.u32 %v1502, 2147483648
        %v1938 = vor.u32 1.1754944e-38, %v1937
        %v1939 = vsel %vm1936, %v1938, %v1934
        %v1940 = vmul.f32 1.0, %v1939
        %v1941 = vrcp.pop %v1503
        %v1942 = vmul.f32 %v1503, %v1941
        %v1943 = vsub.f32 1.0, %v1942
        %v1944 = vmul.f32 %v1941, %v1943
        %v1945 = vadd.f32 %v1941, %v1944
        %vm1946 = vweird.f32 %v1503
        %vm1947 = vweird.f32 %v1941
        %vm1948 = vmor %vm1946, %vm1947
        %v1949 = vsel %vm1948, %v1941, %v1945
        %v1950 = vand.u32 2147483647, %v1503
        %vm1951 = vcmp.eq.f32.partialorder %v1950, 8.507059e+37
        %v1952 = vand.u32 %v1503, 2147483648
        %v1953 = vor.u32 1.1754944e-38, %v1952
        %v1954 = vsel %vm1951, %v1953, %v1949
        %v1955 = vmul.f32 1.0, %v1954
        %v1956 = vrcp.pop %v1504
        %v1957 = vmul.f32 %v1504, %v1956
        %v1958 = vsub.f32 1.0, %v1957
        %v1959 = vmul.f32 %v1956, %v1958
        %v1960 = vadd.f32 %v1956, %v1959
        %vm1961 = vweird.f32 %v1504
        %vm1962 = vweird.f32 %v1956
        %vm1963 = vmor %vm1961, %vm1962
        %v1964 = vsel %vm1963, %v1956, %v1960
        %v1965 = vand.u32 2147483647, %v1504
        %vm1966 = vcmp.eq.f32.partialorder %v1965, 8.507059e+37
        %v1967 = vand.u32 %v1504, 2147483648
        %v1968 = vor.u32 1.1754944e-38, %v1967
        %v1969 = vsel %vm1966, %v1968, %v1964
        %v1970 = vmul.f32 1.0, %v1969
        %v1971 = vrcp.pop %v1505
        %v1972 = vmul.f32 %v1505, %v1971
        %v1973 = vsub.f32 1.0, %v1972
        %v1974 = vmul.f32 %v1971, %v1973
        %v1975 = vadd.f32 %v1971, %v1974
        %vm1976 = vweird.f32 %v1505
        %vm1977 = vweird.f32 %v1971
        %vm1978 = vmor %vm1976, %vm1977
        %v1979 = vsel %vm1978, %v1971, %v1975
        %v1980 = vand.u32 2147483647, %v1505
        %vm1981 = vcmp.eq.f32.partialorder %v1980, 8.507059e+37
        %v1982 = vand.u32 %v1505, 2147483648
        %v1983 = vor.u32 1.1754944e-38, %v1982
        %v1984 = vsel %vm1981, %v1983, %v1979
        %v1985 = vmul.f32 1.0, %v1984
        %v1986 = vrcp.pop %v1506
        %v1987 = vmul.f32 %v1506, %v1986
        %v1988 = vsub.f32 1.0, %v1987
        %v1989 = vmul.f32 %v1986, %v1988
        %v1990 = vadd.f32 %v1986, %v1989
        %vm1991 = vweird.f32 %v1506
        %vm1992 = vweird.f32 %v1986
        %vm1993 = vmor %vm1991, %vm1992
        %v1994 = vsel %vm1993, %v1986, %v1990
        %v1995 = vand.u32 2147483647, %v1506
        %vm1996 = vcmp.eq.f32.partialorder %v1995, 8.507059e+37
        %v1997 = vand.u32 %v1506, 2147483648
        %v1998 = vor.u32 1.1754944e-38, %v1997
        %v1999 = vsel %vm1996, %v1998, %v1994
        %v2000 = vmul.f32 1.0, %v1999
        %v2001 = vrcp.pop %v1507
        %v2002 = vmul.f32 %v1507, %v2001
        %v2003 = vsub.f32 1.0, %v2002
        %v2004 = vmul.f32 %v2001, %v2003
        %v2005 = vadd.f32 %v2001, %v2004
        %vm2006 = vweird.f32 %v1507
        %vm2007 = vweird.f32 %v2001
        %vm2008 = vmor %vm2006, %vm2007
        %v2009 = vsel %vm2008, %v2001, %v2005
        %v2010 = vand.u32 2147483647, %v1507
        %vm2011 = vcmp.eq.f32.partialorder %v2010, 8.507059e+37
        %v2012 = vand.u32 %v1507, 2147483648
        %v2013 = vor.u32 1.1754944e-38, %v2012
        %v2014 = vsel %vm2011, %v2013, %v2009
        %v2015 = vmul.f32 1.0, %v2014
        %v2016 = vrcp.pop %v1508
        %v2017 = vmul.f32 %v1508, %v2016
        %v2018 = vsub.f32 1.0, %v2017
        %v2019 = vmul.f32 %v2016, %v2018
        %v2020 = vadd.f32 %v2016, %v2019
        %vm2021 = vweird.f32 %v1508
        %vm2022 = vweird.f32 %v2016
        %vm2023 = vmor %vm2021, %vm2022
        %v2024 = vsel %vm2023, %v2016, %v2020
        %v2025 = vand.u32 2147483647, %v1508
        %vm2026 = vcmp.eq.f32.partialorder %v2025, 8.507059e+37
        %v2027 = vand.u32 %v1508, 2147483648
        %v2028 = vor.u32 1.1754944e-38, %v2027
        %v2029 = vsel %vm2026, %v2028, %v2024
        %v2030 = vmul.f32 1.0, %v2029
        %v2031 = vrcp.pop %v1509
        %v2032 = vmul.f32 %v1509, %v2031
        %v2033 = vsub.f32 1.0, %v2032
        %v2034 = vmul.f32 %v2031, %v2033
        %v2035 = vadd.f32 %v2031, %v2034
        %vm2036 = vweird.f32 %v1509
        %vm2037 = vweird.f32 %v2031
        %vm2038 = vmor %vm2036, %vm2037
        %v2039 = vsel %vm2038, %v2031, %v2035
        %v2040 = vand.u32 2147483647, %v1509
        %vm2041 = vcmp.eq.f32.partialorder %v2040, 8.507059e+37
        %v2042 = vand.u32 %v1509, 2147483648
        %v2043 = vor.u32 1.1754944e-38, %v2042
        %v2044 = vsel %vm2041, %v2043, %v2039
        %v2045 = vmul.f32 1.0, %v2044
        %v2046 = vrcp.pop %v1510
        %v2047 = vmul.f32 %v1510, %v2046
        %v2048 = vsub.f32 1.0, %v2047
        %v2049 = vmul.f32 %v2046, %v2048
        %v2050 = vadd.f32 %v2046, %v2049
        %vm2051 = vweird.f32 %v1510
        %vm2052 = vweird.f32 %v2046
        %vm2053 = vmor %vm2051, %vm2052
        %v2054 = vsel %vm2053, %v2046, %v2050
        %v2055 = vand.u32 2147483647, %v1510
        %vm2056 = vcmp.eq.f32.partialorder %v2055, 8.507059e+37
        %v2057 = vand.u32 %v1510, 2147483648
        %v2058 = vor.u32 1.1754944e-38, %v2057
        %v2059 = vsel %vm2056, %v2058, %v2054
        %v2060 = vmul.f32 1.0, %v2059
        %v2061 = vrcp.pop %v1511
        %v2062 = vmul.f32 %v1511, %v2061
        %v2063 = vsub.f32 1.0, %v2062
        %v2064 = vmul.f32 %v2061, %v2063
        %v2065 = vadd.f32 %v2061, %v2064
        %vm2066 = vweird.f32 %v1511
        %vm2067 = vweird.f32 %v2061
        %vm2068 = vmor %vm2066, %vm2067
        %v2069 = vsel %vm2068, %v2061, %v2065
        %v2070 = vand.u32 2147483647, %v1511
        %vm2071 = vcmp.eq.f32.partialorder %v2070, 8.507059e+37
        %v2072 = vand.u32 %v1511, 2147483648
        %v2073 = vor.u32 1.1754944e-38, %v2072
        %v2074 = vsel %vm2071, %v2073, %v2069
        %v2075 = vmul.f32 1.0, %v2074
        %v2076 = vrcp.pop %v1512
        %v2077 = vmul.f32 %v1512, %v2076
        %v2078 = vsub.f32 1.0, %v2077
        %v2079 = vmul.f32 %v2076, %v2078
        %v2080 = vadd.f32 %v2076, %v2079
        %vm2081 = vweird.f32 %v1512
        %vm2082 = vweird.f32 %v2076
        %vm2083 = vmor %vm2081, %vm2082
        %v2084 = vsel %vm2083, %v2076, %v2080
        %v2085 = vand.u32 2147483647, %v1512
        %vm2086 = vcmp.eq.f32.partialorder %v2085, 8.507059e+37
        %v2087 = vand.u32 %v1512, 2147483648
        %v2088 = vor.u32 1.1754944e-38, %v2087
        %v2089 = vsel %vm2086, %v2088, %v2084
        %v2090 = vmul.f32 1.0, %v2089
        %v2091 = vrcp.pop %v1513
        %v2092 = vmul.f32 %v1513, %v2091
        %v2093 = vsub.f32 1.0, %v2092
        %v2094 = vmul.f32 %v2091, %v2093
        %v2095 = vadd.f32 %v2091, %v2094
        %vm2096 = vweird.f32 %v1513
        %vm2097 = vweird.f32 %v2091
        %vm2098 = vmor %vm2096, %vm2097
        %v2099 = vsel %vm2098, %v2091, %v2095
        %v2100 = vand.u32 2147483647, %v1513
        %vm2101 = vcmp.eq.f32.partialorder %v2100, 8.507059e+37
        %v2102 = vand.u32 %v1513, 2147483648
        %v2103 = vor.u32 1.1754944e-38, %v2102
        %v2104 = vsel %vm2101, %v2103, %v2099
        %v2105 = vmul.f32 1.0, %v2104
        %v2106 = vrcp.pop %v1514
        %v2107 = vmul.f32 %v1514, %v2106
        %v2108 = vsub.f32 1.0, %v2107
        %v2109 = vmul.f32 %v2106, %v2108
        %v2110 = vadd.f32 %v2106, %v2109
        %vm2111 = vweird.f32 %v1514
        %vm2112 = vweird.f32 %v2106
        %vm2113 = vmor %vm2111, %vm2112
        %v2114 = vsel %vm2113, %v2106, %v2110
        %v2115 = vand.u32 2147483647, %v1514
        %vm2116 = vcmp.eq.f32.partialorder %v2115, 8.507059e+37
        %v2117 = vand.u32 %v1514, 2147483648
        %v2118 = vor.u32 1.1754944e-38, %v2117
        %v2119 = vsel %vm2116, %v2118, %v2114
        %v2120 = vmul.f32 1.0, %v2119
        %v2121 = vrcp.pop %v1515
        %v2122 = vmul.f32 %v1515, %v2121
        %v2123 = vsub.f32 1.0, %v2122
        %v2124 = vmul.f32 %v2121, %v2123
        %v2125 = vadd.f32 %v2121, %v2124
        %vm2126 = vweird.f32 %v1515
        %vm2127 = vweird.f32 %v2121
        %vm2128 = vmor %vm2126, %vm2127
        %v2129 = vsel %vm2128, %v2121, %v2125
        %v2130 = vand.u32 2147483647, %v1515
        %vm2131 = vcmp.eq.f32.partialorder %v2130, 8.507059e+37
        %v2132 = vand.u32 %v1515, 2147483648
        %v2133 = vor.u32 1.1754944e-38, %v2132
        %v2134 = vsel %vm2131, %v2133, %v2129
        %v2135 = vmul.f32 1.0, %v2134
        %v2136 = vrcp.pop %v1516
        %v2137 = vmul.f32 %v1516, %v2136
        %v2138 = vsub.f32 1.0, %v2137
        %v2139 = vmul.f32 %v2136, %v2138
        %v2140 = vadd.f32 %v2136, %v2139
        %vm2141 = vweird.f32 %v1516
        %vm2142 = vweird.f32 %v2136
        %vm2143 = vmor %vm2141, %vm2142
        %v2144 = vsel %vm2143, %v2136, %v2140
        %v2145 = vand.u32 2147483647, %v1516
        %vm2146 = vcmp.eq.f32.partialorder %v2145, 8.507059e+37
        %v2147 = vand.u32 %v1516, 2147483648
        %v2148 = vor.u32 1.1754944e-38, %v2147
        %v2149 = vsel %vm2146, %v2148, %v2144
        %v2150 = vmul.f32 1.0, %v2149
        %v2151 = vrcp.pop %v1517
        %v2152 = vmul.f32 %v1517, %v2151
        %v2153 = vsub.f32 1.0, %v2152
        %v2154 = vmul.f32 %v2151, %v2153
        %v2155 = vadd.f32 %v2151, %v2154
        %vm2156 = vweird.f32 %v1517
        %vm2157 = vweird.f32 %v2151
        %vm2158 = vmor %vm2156, %vm2157
        %v2159 = vsel %vm2158, %v2151, %v2155
        %v2160 = vand.u32 2147483647, %v1517
        %vm2161 = vcmp.eq.f32.partialorder %v2160, 8.507059e+37
        %v2162 = vand.u32 %v1517, 2147483648
        %v2163 = vor.u32 1.1754944e-38, %v2162
        %v2164 = vsel %vm2161, %v2163, %v2159
        %v2165 = vmul.f32 1.0, %v2164
        %v2166 = vrcp.pop %v1518
        %v2167 = vmul.f32 %v1518, %v2166
        %v2168 = vsub.f32 1.0, %v2167
        %v2169 = vmul.f32 %v2166, %v2168
        %v2170 = vadd.f32 %v2166, %v2169
        %vm2171 = vweird.f32 %v1518
        %vm2172 = vweird.f32 %v2166
        %vm2173 = vmor %vm2171, %vm2172
        %v2174 = vsel %vm2173, %v2166, %v2170
        %v2175 = vand.u32 2147483647, %v1518
        %vm2176 = vcmp.eq.f32.partialorder %v2175, 8.507059e+37
        %v2177 = vand.u32 %v1518, 2147483648
        %v2178 = vor.u32 1.1754944e-38, %v2177
        %v2179 = vsel %vm2176, %v2178, %v2174
        %v2180 = vmul.f32 1.0, %v2179
        %v2181 = vrcp.pop %v1519
        %v2182 = vmul.f32 %v1519, %v2181
        %v2183 = vsub.f32 1.0, %v2182
        %v2184 = vmul.f32 %v2181, %v2183
        %v2185 = vadd.f32 %v2181, %v2184
        %vm2186 = vweird.f32 %v1519
        %vm2187 = vweird.f32 %v2181
        %vm2188 = vmor %vm2186, %vm2187
        %v2189 = vsel %vm2188, %v2181, %v2185
        %v2190 = vand.u32 2147483647, %v1519
        %vm2191 = vcmp.eq.f32.partialorder %v2190, 8.507059e+37
        %v2192 = vand.u32 %v1519, 2147483648
        %v2193 = vor.u32 1.1754944e-38, %v2192
        %v2194 = vsel %vm2191, %v2193, %v2189
        %v2195 = vmul.f32 1.0, %v2194
        %v2196 = vrcp.pop %v1520
        %v2197 = vmul.f32 %v1520, %v2196
        %v2198 = vsub.f32 1.0, %v2197
        %v2199 = vmul.f32 %v2196, %v2198
        %v2200 = vadd.f32 %v2196, %v2199
        %vm2201 = vweird.f32 %v1520
        %vm2202 = vweird.f32 %v2196
        %vm2203 = vmor %vm2201, %vm2202
        %v2204 = vsel %vm2203, %v2196, %v2200
        %v2205 = vand.u32 2147483647, %v1520
        %vm2206 = vcmp.eq.f32.partialorder %v2205, 8.507059e+37
        %v2207 = vand.u32 %v1520, 2147483648
        %v2208 = vor.u32 1.1754944e-38, %v2207
        %v2209 = vsel %vm2206, %v2208, %v2204
        %v2210 = vmul.f32 1.0, %v2209
        %v2211 = vrcp.pop %v1521
        %v2212 = vmul.f32 %v1521, %v2211
        %v2213 = vsub.f32 1.0, %v2212
        %v2214 = vmul.f32 %v2211, %v2213
        %v2215 = vadd.f32 %v2211, %v2214
        %vm2216 = vweird.f32 %v1521
        %vm2217 = vweird.f32 %v2211
        %vm2218 = vmor %vm2216, %vm2217
        %v2219 = vsel %vm2218, %v2211, %v2215
        %v2220 = vand.u32 2147483647, %v1521
        %vm2221 = vcmp.eq.f32.partialorder %v2220, 8.507059e+37
        %v2222 = vand.u32 %v1521, 2147483648
        %v2223 = vor.u32 1.1754944e-38, %v2222
        %v2224 = vsel %vm2221, %v2223, %v2219
        %v2225 = vmul.f32 1.0, %v2224
        %v2226 = vrcp.pop %v1522
        %v2227 = vmul.f32 %v1522, %v2226
        %v2228 = vsub.f32 1.0, %v2227
        %v2229 = vmul.f32 %v2226, %v2228
        %v2230 = vadd.f32 %v2226, %v2229
        %vm2231 = vweird.f32 %v1522
        %vm2232 = vweird.f32 %v2226
        %vm2233 = vmor %vm2231, %vm2232
        %v2234 = vsel %vm2233, %v2226, %v2230
        %v2235 = vand.u32 2147483647, %v1522
        %vm2236 = vcmp.eq.f32.partialorder %v2235, 8.507059e+37
        %v2237 = vand.u32 %v1522, 2147483648
        %v2238 = vor.u32 1.1754944e-38, %v2237
        %v2239 = vsel %vm2236, %v2238, %v2234
        %v2240 = vmul.f32 1.0, %v2239
        %v2241 = vrcp.pop %v1523
        %v2242 = vmul.f32 %v1523, %v2241
        %v2243 = vsub.f32 1.0, %v2242
        %v2244 = vmul.f32 %v2241, %v2243
        %v2245 = vadd.f32 %v2241, %v2244
        %vm2246 = vweird.f32 %v1523
        %vm2247 = vweird.f32 %v2241
        %vm2248 = vmor %vm2246, %vm2247
        %v2249 = vsel %vm2248, %v2241, %v2245
        %v2250 = vand.u32 2147483647, %v1523
        %vm2251 = vcmp.eq.f32.partialorder %v2250, 8.507059e+37
        %v2252 = vand.u32 %v1523, 2147483648
        %v2253 = vor.u32 1.1754944e-38, %v2252
        %v2254 = vsel %vm2251, %v2253, %v2249
        %v2255 = vmul.f32 1.0, %v2254
        %v2256 = vrcp.pop %v1524
        %v2257 = vmul.f32 %v1524, %v2256
        %v2258 = vsub.f32 1.0, %v2257
        %v2259 = vmul.f32 %v2256, %v2258
        %v2260 = vadd.f32 %v2256, %v2259
        %vm2261 = vweird.f32 %v1524
        %vm2262 = vweird.f32 %v2256
        %vm2263 = vmor %vm2261, %vm2262
        %v2264 = vsel %vm2263, %v2256, %v2260
        %v2265 = vand.u32 2147483647, %v1524
        %vm2266 = vcmp.eq.f32.partialorder %v2265, 8.507059e+37
        %v2267 = vand.u32 %v1524, 2147483648
        %v2268 = vor.u32 1.1754944e-38, %v2267
        %v2269 = vsel %vm2266, %v2268, %v2264
        %v2270 = vmul.f32 1.0, %v2269
        %v2271 = vrcp.pop %v1525
        %v2272 = vmul.f32 %v1525, %v2271
        %v2273 = vsub.f32 1.0, %v2272
        %v2274 = vmul.f32 %v2271, %v2273
        %v2275 = vadd.f32 %v2271, %v2274
        %vm2276 = vweird.f32 %v1525
        %vm2277 = vweird.f32 %v2271
        %vm2278 = vmor %vm2276, %vm2277
        %v2279 = vsel %vm2278, %v2271, %v2275
        %v2280 = vand.u32 2147483647, %v1525
        %vm2281 = vcmp.eq.f32.partialorder %v2280, 8.507059e+37
        %v2282 = vand.u32 %v1525, 2147483648
        %v2283 = vor.u32 1.1754944e-38, %v2282
        %v2284 = vsel %vm2281, %v2283, %v2279
        %v2285 = vmul.f32 1.0, %v2284
        %v2286 = vrcp.pop %v1526
        %v2287 = vmul.f32 %v1526, %v2286
        %v2288 = vsub.f32 1.0, %v2287
        %v2289 = vmul.f32 %v2286, %v2288
        %v2290 = vadd.f32 %v2286, %v2289
        %vm2291 = vweird.f32 %v1526
        %vm2292 = vweird.f32 %v2286
        %vm2293 = vmor %vm2291, %vm2292
        %v2294 = vsel %vm2293, %v2286, %v2290
        %v2295 = vand.u32 2147483647, %v1526
        %vm2296 = vcmp.eq.f32.partialorder %v2295, 8.507059e+37
        %v2297 = vand.u32 %v1526, 2147483648
        %v2298 = vor.u32 1.1754944e-38, %v2297
        %v2299 = vsel %vm2296, %v2298, %v2294
        %v2300 = vmul.f32 1.0, %v2299
        %v2301 = vrcp.pop %v1527
        %v2302 = vmul.f32 %v1527, %v2301
        %v2303 = vsub.f32 1.0, %v2302
        %v2304 = vmul.f32 %v2301, %v2303
        %v2305 = vadd.f32 %v2301, %v2304
        %vm2306 = vweird.f32 %v1527
        %vm2307 = vweird.f32 %v2301
        %vm2308 = vmor %vm2306, %vm2307
        %v2309 = vsel %vm2308, %v2301, %v2305
        %v2310 = vand.u32 2147483647, %v1527
        %vm2311 = vcmp.eq.f32.partialorder %v2310, 8.507059e+37
        %v2312 = vand.u32 %v1527, 2147483648
        %v2313 = vor.u32 1.1754944e-38, %v2312
        %v2314 = vsel %vm2311, %v2313, %v2309
        %v2315 = vmul.f32 1.0, %v2314
        %v2316 = vrcp.pop %v1528
        %v2317 = vmul.f32 %v1528, %v2316
        %v2318 = vsub.f32 1.0, %v2317
        %v2319 = vmul.f32 %v2316, %v2318
        %v2320 = vadd.f32 %v2316, %v2319
        %vm2321 = vweird.f32 %v1528
        %vm2322 = vweird.f32 %v2316
        %vm2323 = vmor %vm2321, %vm2322
        %v2324 = vsel %vm2323, %v2316, %v2320
        %v2325 = vand.u32 2147483647, %v1528
        %vm2326 = vcmp.eq.f32.partialorder %v2325, 8.507059e+37
        %v2327 = vand.u32 %v1528, 2147483648
        %v2328 = vor.u32 1.1754944e-38, %v2327
        %v2329 = vsel %vm2326, %v2328, %v2324
        %v2330 = vmul.f32 1.0, %v2329
        %v2331 = vrcp.pop %v1529
        %v2332 = vmul.f32 %v1529, %v2331
        %v2333 = vsub.f32 1.0, %v2332
        %v2334 = vmul.f32 %v2331, %v2333
        %v2335 = vadd.f32 %v2331, %v2334
        %vm2336 = vweird.f32 %v1529
        %vm2337 = vweird.f32 %v2331
        %vm2338 = vmor %vm2336, %vm2337
        %v2339 = vsel %vm2338, %v2331, %v2335
        %v2340 = vand.u32 2147483647, %v1529
        %vm2341 = vcmp.eq.f32.partialorder %v2340, 8.507059e+37
        %v2342 = vand.u32 %v1529, 2147483648
        %v2343 = vor.u32 1.1754944e-38, %v2342
        %v2344 = vsel %vm2341, %v2343, %v2339
        %v2345 = vmul.f32 1.0, %v2344
        %v2346 = vrcp.pop %v1530
        %v2347 = vmul.f32 %v1530, %v2346
        %v2348 = vsub.f32 1.0, %v2347
        %v2349 = vmul.f32 %v2346, %v2348
        %v2350 = vadd.f32 %v2346, %v2349
        %vm2351 = vweird.f32 %v1530
        %vm2352 = vweird.f32 %v2346
        %vm2353 = vmor %vm2351, %vm2352
        %v2354 = vsel %vm2353, %v2346, %v2350
        %v2355 = vand.u32 2147483647, %v1530
        %vm2356 = vcmp.eq.f32.partialorder %v2355, 8.507059e+37
        %v2357 = vand.u32 %v1530, 2147483648
        %v2358 = vor.u32 1.1754944e-38, %v2357
        %v2359 = vsel %vm2356, %v2358, %v2354
        %v2360 = vmul.f32 1.0, %v2359
        %v2361 = vrcp.pop %v1531
        %v2362 = vmul.f32 %v1531, %v2361
        %v2363 = vsub.f32 1.0, %v2362
        %v2364 = vmul.f32 %v2361, %v2363
        %v2365 = vadd.f32 %v2361, %v2364
        %vm2366 = vweird.f32 %v1531
        %vm2367 = vweird.f32 %v2361
        %vm2368 = vmor %vm2366, %vm2367
        %v2369 = vsel %vm2368, %v2361, %v2365
        %v2370 = vand.u32 2147483647, %v1531
        %vm2371 = vcmp.eq.f32.partialorder %v2370, 8.507059e+37
        %v2372 = vand.u32 %v1531, 2147483648
        %v2373 = vor.u32 1.1754944e-38, %v2372
        %v2374 = vsel %vm2371, %v2373, %v2369
        %v2375 = vmul.f32 1.0, %v2374
        %v2376 = vrcp.pop %v1532
        %v2377 = vmul.f32 %v1532, %v2376
        %v2378 = vsub.f32 1.0, %v2377
        %v2379 = vmul.f32 %v2376, %v2378
        %v2380 = vadd.f32 %v2376, %v2379
        %vm2381 = vweird.f32 %v1532
        %vm2382 = vweird.f32 %v2376
        %vm2383 = vmor %vm2381, %vm2382
        %v2384 = vsel %vm2383, %v2376, %v2380
        %v2385 = vand.u32 2147483647, %v1532
        %vm2386 = vcmp.eq.f32.partialorder %v2385, 8.507059e+37
        %v2387 = vand.u32 %v1532, 2147483648
        %v2388 = vor.u32 1.1754944e-38, %v2387
        %v2389 = vsel %vm2386, %v2388, %v2384
        %v2390 = vmul.f32 1.0, %v2389
        %v2391 = vrcp.pop %v1533
        %v2392 = vmul.f32 %v1533, %v2391
        %v2393 = vsub.f32 1.0, %v2392
        %v2394 = vmul.f32 %v2391, %v2393
        %v2395 = vadd.f32 %v2391, %v2394
        %vm2396 = vweird.f32 %v1533
        %vm2397 = vweird.f32 %v2391
        %vm2398 = vmor %vm2396, %vm2397
        %v2399 = vsel %vm2398, %v2391, %v2395
        %v2400 = vand.u32 2147483647, %v1533
        %vm2401 = vcmp.eq.f32.partialorder %v2400, 8.507059e+37
        %v2402 = vand.u32 %v1533, 2147483648
        %v2403 = vor.u32 1.1754944e-38, %v2402
        %v2404 = vsel %vm2401, %v2403, %v2399
        %v2405 = vmul.f32 1.0, %v2404
        %v2406 = vrcp.pop %v1534
        %v2407 = vmul.f32 %v1534, %v2406
        %v2408 = vsub.f32 1.0, %v2407
        %v2409 = vmul.f32 %v2406, %v2408
        %v2410 = vadd.f32 %v2406, %v2409
        %vm2411 = vweird.f32 %v1534
        %vm2412 = vweird.f32 %v2406
        %vm2413 = vmor %vm2411, %vm2412
        %v2414 = vsel %vm2413, %v2406, %v2410
        %v2415 = vand.u32 2147483647, %v1534
        %vm2416 = vcmp.eq.f32.partialorder %v2415, 8.507059e+37
        %v2417 = vand.u32 %v1534, 2147483648
        %v2418 = vor.u32 1.1754944e-38, %v2417
        %v2419 = vsel %vm2416, %v2418, %v2414
        %v2420 = vmul.f32 1.0, %v2419
        %v2421 = vrcp.pop %v1535
        %v2422 = vmul.f32 %v1535, %v2421
        %v2423 = vsub.f32 1.0, %v2422
        %v2424 = vmul.f32 %v2421, %v2423
        %v2425 = vadd.f32 %v2421, %v2424
        %vm2426 = vweird.f32 %v1535
        %vm2427 = vweird.f32 %v2421
        %vm2428 = vmor %vm2426, %vm2427
        %v2429 = vsel %vm2428, %v2421, %v2425
        %v2430 = vand.u32 2147483647, %v1535
        %vm2431 = vcmp.eq.f32.partialorder %v2430, 8.507059e+37
        %v2432 = vand.u32 %v1535, 2147483648
        %v2433 = vor.u32 1.1754944e-38, %v2432
        %v2434 = vsel %vm2431, %v2433, %v2429
        %v2435 = vmul.f32 1.0, %v2434
        %v2436 = vrcp.pop %v1536
        %v2437 = vmul.f32 %v1536, %v2436
        %v2438 = vsub.f32 1.0, %v2437
        %v2439 = vmul.f32 %v2436, %v2438
        %v2440 = vadd.f32 %v2436, %v2439
        %vm2441 = vweird.f32 %v1536
        %vm2442 = vweird.f32 %v2436
        %vm2443 = vmor %vm2441, %vm2442
        %v2444 = vsel %vm2443, %v2436, %v2440
        %v2445 = vand.u32 2147483647, %v1536
        %vm2446 = vcmp.eq.f32.partialorder %v2445, 8.507059e+37
        %v2447 = vand.u32 %v1536, 2147483648
        %v2448 = vor.u32 1.1754944e-38, %v2447
        %v2449 = vsel %vm2446, %v2448, %v2444
        %v2450 = vmul.f32 1.0, %v2449
        %v2451 = vrcp.pop %v1537
        %v2452 = vmul.f32 %v1537, %v2451
        %v2453 = vsub.f32 1.0, %v2452
        %v2454 = vmul.f32 %v2451, %v2453
        %v2455 = vadd.f32 %v2451, %v2454
        %vm2456 = vweird.f32 %v1537
        %vm2457 = vweird.f32 %v2451
        %vm2458 = vmor %vm2456, %vm2457
        %v2459 = vsel %vm2458, %v2451, %v2455
        %v2460 = vand.u32 2147483647, %v1537
        %vm2461 = vcmp.eq.f32.partialorder %v2460, 8.507059e+37
        %v2462 = vand.u32 %v1537, 2147483648
        %v2463 = vor.u32 1.1754944e-38, %v2462
        %v2464 = vsel %vm2461, %v2463, %v2459
        %v2465 = vmul.f32 1.0, %v2464
        %v2466 = vrcp.pop %v1538
        %v2467 = vmul.f32 %v1538, %v2466
        %v2468 = vsub.f32 1.0, %v2467
        %v2469 = vmul.f32 %v2466, %v2468
        %v2470 = vadd.f32 %v2466, %v2469
        %vm2471 = vweird.f32 %v1538
        %vm2472 = vweird.f32 %v2466
        %vm2473 = vmor %vm2471, %vm2472
        %v2474 = vsel %vm2473, %v2466, %v2470
        %v2475 = vand.u32 2147483647, %v1538
        %vm2476 = vcmp.eq.f32.partialorder %v2475, 8.507059e+37
        %v2477 = vand.u32 %v1538, 2147483648
        %v2478 = vor.u32 1.1754944e-38, %v2477
        %v2479 = vsel %vm2476, %v2478, %v2474
        %v2480 = vmul.f32 1.0, %v2479
        %v2481 = vrcp.pop %v1539
        %v2482 = vmul.f32 %v1539, %v2481
        %v2483 = vsub.f32 1.0, %v2482
        %v2484 = vmul.f32 %v2481, %v2483
        %v2485 = vadd.f32 %v2481, %v2484
        %vm2486 = vweird.f32 %v1539
        %vm2487 = vweird.f32 %v2481
        %vm2488 = vmor %vm2486, %vm2487
        %v2489 = vsel %vm2488, %v2481, %v2485
        %v2490 = vand.u32 2147483647, %v1539
        %vm2491 = vcmp.eq.f32.partialorder %v2490, 8.507059e+37
        %v2492 = vand.u32 %v1539, 2147483648
        %v2493 = vor.u32 1.1754944e-38, %v2492
        %v2494 = vsel %vm2491, %v2493, %v2489
        %v2495 = vmul.f32 1.0, %v2494
        %v2496 = vrcp.pop %v1540
        %v2497 = vmul.f32 %v1540, %v2496
        %v2498 = vsub.f32 1.0, %v2497
        %v2499 = vmul.f32 %v2496, %v2498
        %v2500 = vadd.f32 %v2496, %v2499
        %vm2501 = vweird.f32 %v1540
        %vm2502 = vweird.f32 %v2496
        %vm2503 = vmor %vm2501, %vm2502
        %v2504 = vsel %vm2503, %v2496, %v2500
        %v2505 = vand.u32 2147483647, %v1540
        %vm2506 = vcmp.eq.f32.partialorder %v2505, 8.507059e+37
        %v2507 = vand.u32 %v1540, 2147483648
        %v2508 = vor.u32 1.1754944e-38, %v2507
        %v2509 = vsel %vm2506, %v2508, %v2504
        %v2510 = vmul.f32 1.0, %v2509
        %v2511 = vrcp.pop %v1541
        %v2512 = vmul.f32 %v1541, %v2511
        %v2513 = vsub.f32 1.0, %v2512
        %v2514 = vmul.f32 %v2511, %v2513
        %v2515 = vadd.f32 %v2511, %v2514
        %vm2516 = vweird.f32 %v1541
        %vm2517 = vweird.f32 %v2511
        %vm2518 = vmor %vm2516, %vm2517
        %v2519 = vsel %vm2518, %v2511, %v2515
        %v2520 = vand.u32 2147483647, %v1541
        %vm2521 = vcmp.eq.f32.partialorder %v2520, 8.507059e+37
        %v2522 = vand.u32 %v1541, 2147483648
        %v2523 = vor.u32 1.1754944e-38, %v2522
        %v2524 = vsel %vm2521, %v2523, %v2519
        %v2525 = vmul.f32 1.0, %v2524
        %v2526 = vrcp.pop %v1542
        %v2527 = vmul.f32 %v1542, %v2526
        %v2528 = vsub.f32 1.0, %v2527
        %v2529 = vmul.f32 %v2526, %v2528
        %v2530 = vadd.f32 %v2526, %v2529
        %vm2531 = vweird.f32 %v1542
        %vm2532 = vweird.f32 %v2526
        %vm2533 = vmor %vm2531, %vm2532
        %v2534 = vsel %vm2533, %v2526, %v2530
        %v2535 = vand.u32 2147483647, %v1542
        %vm2536 = vcmp.eq.f32.partialorder %v2535, 8.507059e+37
        %v2537 = vand.u32 %v1542, 2147483648
        %v2538 = vor.u32 1.1754944e-38, %v2537
        %v2539 = vsel %vm2536, %v2538, %v2534
        %v2540 = vmul.f32 1.0, %v2539
        %v2541 = vrcp.pop %v1543
        %v2542 = vmul.f32 %v1543, %v2541
        %v2543 = vsub.f32 1.0, %v2542
        %v2544 = vmul.f32 %v2541, %v2543
        %v2545 = vadd.f32 %v2541, %v2544
        %vm2546 = vweird.f32 %v1543
        %vm2547 = vweird.f32 %v2541
        %vm2548 = vmor %vm2546, %vm2547
        %v2549 = vsel %vm2548, %v2541, %v2545
        %v2550 = vand.u32 2147483647, %v1543
        %vm2551 = vcmp.eq.f32.partialorder %v2550, 8.507059e+37
        %v2552 = vand.u32 %v1543, 2147483648
        %v2553 = vor.u32 1.1754944e-38, %v2552
        %v2554 = vsel %vm2551, %v2553, %v2549
        %v2555 = vmul.f32 1.0, %v2554
        %v2556 = vrcp.pop %v1544
        %v2557 = vmul.f32 %v1544, %v2556
        %v2558 = vsub.f32 1.0, %v2557
        %v2559 = vmul.f32 %v2556, %v2558
        %v2560 = vadd.f32 %v2556, %v2559
        %vm2561 = vweird.f32 %v1544
        %vm2562 = vweird.f32 %v2556
        %vm2563 = vmor %vm2561, %vm2562
        %v2564 = vsel %vm2563, %v2556, %v2560
        %v2565 = vand.u32 2147483647, %v1544
        %vm2566 = vcmp.eq.f32.partialorder %v2565, 8.507059e+37
        %v2567 = vand.u32 %v1544, 2147483648
        %v2568 = vor.u32 1.1754944e-38, %v2567
        %v2569 = vsel %vm2566, %v2568, %v2564
        %v2570 = vmul.f32 1.0, %v2569
        %v2571 = vrcp.pop %v1545
        %v2572 = vmul.f32 %v1545, %v2571
        %v2573 = vsub.f32 1.0, %v2572
        %v2574 = vmul.f32 %v2571, %v2573
        %v2575 = vadd.f32 %v2571, %v2574
        %vm2576 = vweird.f32 %v1545
        %vm2577 = vweird.f32 %v2571
        %vm2578 = vmor %vm2576, %vm2577
        %v2579 = vsel %vm2578, %v2571, %v2575
        %v2580 = vand.u32 2147483647, %v1545
        %vm2581 = vcmp.eq.f32.partialorder %v2580, 8.507059e+37
        %v2582 = vand.u32 %v1545, 2147483648
        %v2583 = vor.u32 1.1754944e-38, %v2582
        %v2584 = vsel %vm2581, %v2583, %v2579
        %v2585 = vmul.f32 1.0, %v2584
        %v2586 = vrcp.pop %v1546
        %v2587 = vmul.f32 %v1546, %v2586
        %v2588 = vsub.f32 1.0, %v2587
        %v2589 = vmul.f32 %v2586, %v2588
        %v2590 = vadd.f32 %v2586, %v2589
        %vm2591 = vweird.f32 %v1546
        %vm2592 = vweird.f32 %v2586
        %vm2593 = vmor %vm2591, %vm2592
        %v2594 = vsel %vm2593, %v2586, %v2590
        %v2595 = vand.u32 2147483647, %v1546
        %vm2596 = vcmp.eq.f32.partialorder %v2595, 8.507059e+37
        %v2597 = vand.u32 %v1546, 2147483648
        %v2598 = vor.u32 1.1754944e-38, %v2597
        %v2599 = vsel %vm2596, %v2598, %v2594
        %v2600 = vmul.f32 1.0, %v2599
        %v2601 = vrcp.pop %v1547
        %v2602 = vmul.f32 %v1547, %v2601
        %v2603 = vsub.f32 1.0, %v2602
        %v2604 = vmul.f32 %v2601, %v2603
        %v2605 = vadd.f32 %v2601, %v2604
        %vm2606 = vweird.f32 %v1547
        %vm2607 = vweird.f32 %v2601
        %vm2608 = vmor %vm2606, %vm2607
        %v2609 = vsel %vm2608, %v2601, %v2605
        %v2610 = vand.u32 2147483647, %v1547
        %vm2611 = vcmp.eq.f32.partialorder %v2610, 8.507059e+37
        %v2612 = vand.u32 %v1547, 2147483648
        %v2613 = vor.u32 1.1754944e-38, %v2612
        %v2614 = vsel %vm2611, %v2613, %v2609
        %v2615 = vmul.f32 1.0, %v2614
        %v2616 = vrcp.pop %v1548
        %v2617 = vmul.f32 %v1548, %v2616
        %v2618 = vsub.f32 1.0, %v2617
        %v2619 = vmul.f32 %v2616, %v2618
        %v2620 = vadd.f32 %v2616, %v2619
        %vm2621 = vweird.f32 %v1548
        %vm2622 = vweird.f32 %v2616
        %vm2623 = vmor %vm2621, %vm2622
        %v2624 = vsel %vm2623, %v2616, %v2620
        %v2625 = vand.u32 2147483647, %v1548
        %vm2626 = vcmp.eq.f32.partialorder %v2625, 8.507059e+37
        %v2627 = vand.u32 %v1548, 2147483648
        %v2628 = vor.u32 1.1754944e-38, %v2627
        %v2629 = vsel %vm2626, %v2628, %v2624
        %v2630 = vmul.f32 1.0, %v2629
        %v2631 = vrcp.pop %v1549
        %v2632 = vmul.f32 %v1549, %v2631
        %v2633 = vsub.f32 1.0, %v2632
        %v2634 = vmul.f32 %v2631, %v2633
        %v2635 = vadd.f32 %v2631, %v2634
        %vm2636 = vweird.f32 %v1549
        %vm2637 = vweird.f32 %v2631
        %vm2638 = vmor %vm2636, %vm2637
        %v2639 = vsel %vm2638, %v2631, %v2635
        %v2640 = vand.u32 2147483647, %v1549
        %vm2641 = vcmp.eq.f32.partialorder %v2640, 8.507059e+37
        %v2642 = vand.u32 %v1549, 2147483648
        %v2643 = vor.u32 1.1754944e-38, %v2642
        %v2644 = vsel %vm2641, %v2643, %v2639
        %v2645 = vmul.f32 1.0, %v2644
        %v2646 = vrcp.pop %v1550
        %v2647 = vmul.f32 %v1550, %v2646
        %v2648 = vsub.f32 1.0, %v2647
        %v2649 = vmul.f32 %v2646, %v2648
        %v2650 = vadd.f32 %v2646, %v2649
        %vm2651 = vweird.f32 %v1550
        %vm2652 = vweird.f32 %v2646
        %vm2653 = vmor %vm2651, %vm2652
        %v2654 = vsel %vm2653, %v2646, %v2650
        %v2655 = vand.u32 2147483647, %v1550
        %vm2656 = vcmp.eq.f32.partialorder %v2655, 8.507059e+37
        %v2657 = vand.u32 %v1550, 2147483648
        %v2658 = vor.u32 1.1754944e-38, %v2657
        %v2659 = vsel %vm2656, %v2658, %v2654
        %v2660 = vmul.f32 1.0, %v2659
        %v2661 = vrcp.pop %v1551
        %v2662 = vmul.f32 %v1551, %v2661
        %v2663 = vsub.f32 1.0, %v2662
        %v2664 = vmul.f32 %v2661, %v2663
        %v2665 = vadd.f32 %v2661, %v2664
        %vm2666 = vweird.f32 %v1551
        %vm2667 = vweird.f32 %v2661
        %vm2668 = vmor %vm2666, %vm2667
        %v2669 = vsel %vm2668, %v2661, %v2665
        %v2670 = vand.u32 2147483647, %v1551
        %vm2671 = vcmp.eq.f32.partialorder %v2670, 8.507059e+37
        %v2672 = vand.u32 %v1551, 2147483648
        %v2673 = vor.u32 1.1754944e-38, %v2672
        %v2674 = vsel %vm2671, %v2673, %v2669
        %v2675 = vmul.f32 1.0, %v2674
        %v2676 = vrcp.pop %v1552
        %v2677 = vmul.f32 %v1552, %v2676
        %v2678 = vsub.f32 1.0, %v2677
        %v2679 = vmul.f32 %v2676, %v2678
        %v2680 = vadd.f32 %v2676, %v2679
        %vm2681 = vweird.f32 %v1552
        %vm2682 = vweird.f32 %v2676
        %vm2683 = vmor %vm2681, %vm2682
        %v2684 = vsel %vm2683, %v2676, %v2680
        %v2685 = vand.u32 2147483647, %v1552
        %vm2686 = vcmp.eq.f32.partialorder %v2685, 8.507059e+37
        %v2687 = vand.u32 %v1552, 2147483648
        %v2688 = vor.u32 1.1754944e-38, %v2687
        %v2689 = vsel %vm2686, %v2688, %v2684
        %v2690 = vmul.f32 1.0, %v2689
        %v2691 = vrcp.pop %v1553
        %v2692 = vmul.f32 %v1553, %v2691
        %v2693 = vsub.f32 1.0, %v2692
        %v2694 = vmul.f32 %v2691, %v2693
        %v2695 = vadd.f32 %v2691, %v2694
        %vm2696 = vweird.f32 %v1553
        %vm2697 = vweird.f32 %v2691
        %vm2698 = vmor %vm2696, %vm2697
        %v2699 = vsel %vm2698, %v2691, %v2695
        %v2700 = vand.u32 2147483647, %v1553
        %vm2701 = vcmp.eq.f32.partialorder %v2700, 8.507059e+37
        %v2702 = vand.u32 %v1553, 2147483648
        %v2703 = vor.u32 1.1754944e-38, %v2702
        %v2704 = vsel %vm2701, %v2703, %v2699
        %v2705 = vmul.f32 1.0, %v2704
        %v2706 = vrcp.pop %v1554
        %v2707 = vmul.f32 %v1554, %v2706
        %v2708 = vsub.f32 1.0, %v2707
        %v2709 = vmul.f32 %v2706, %v2708
        %v2710 = vadd.f32 %v2706, %v2709
        %vm2711 = vweird.f32 %v1554
        %vm2712 = vweird.f32 %v2706
        %vm2713 = vmor %vm2711, %vm2712
        %v2714 = vsel %vm2713, %v2706, %v2710
        %v2715 = vand.u32 2147483647, %v1554
        %vm2716 = vcmp.eq.f32.partialorder %v2715, 8.507059e+37
        %v2717 = vand.u32 %v1554, 2147483648
        %v2718 = vor.u32 1.1754944e-38, %v2717
        %v2719 = vsel %vm2716, %v2718, %v2714
        %v2720 = vmul.f32 1.0, %v2719
        %v2721 = vrcp.pop %v1555
        %v2722 = vmul.f32 %v1555, %v2721
        %v2723 = vsub.f32 1.0, %v2722
        %v2724 = vmul.f32 %v2721, %v2723
        %v2725 = vadd.f32 %v2721, %v2724
        %vm2726 = vweird.f32 %v1555
        %vm2727 = vweird.f32 %v2721
        %vm2728 = vmor %vm2726, %vm2727
        %v2729 = vsel %vm2728, %v2721, %v2725
        %v2730 = vand.u32 2147483647, %v1555
        %vm2731 = vcmp.eq.f32.partialorder %v2730, 8.507059e+37
        %v2732 = vand.u32 %v1555, 2147483648
        %v2733 = vor.u32 1.1754944e-38, %v2732
        %v2734 = vsel %vm2731, %v2733, %v2729
        %v2735 = vmul.f32 1.0, %v2734
        %v2736 = vrcp.pop %v1556
        %v2737 = vmul.f32 %v1556, %v2736
        %v2738 = vsub.f32 1.0, %v2737
        %v2739 = vmul.f32 %v2736, %v2738
        %v2740 = vadd.f32 %v2736, %v2739
        %vm2741 = vweird.f32 %v1556
        %vm2742 = vweird.f32 %v2736
        %vm2743 = vmor %vm2741, %vm2742
        %v2744 = vsel %vm2743, %v2736, %v2740
        %v2745 = vand.u32 2147483647, %v1556
        %vm2746 = vcmp.eq.f32.partialorder %v2745, 8.507059e+37
        %v2747 = vand.u32 %v1556, 2147483648
        %v2748 = vor.u32 1.1754944e-38, %v2747
        %v2749 = vsel %vm2746, %v2748, %v2744
        %v2750 = vmul.f32 1.0, %v2749
        %v2751 = vrcp.pop %v1557
        %v2752 = vmul.f32 %v1557, %v2751
        %v2753 = vsub.f32 1.0, %v2752
        %v2754 = vmul.f32 %v2751, %v2753
        %v2755 = vadd.f32 %v2751, %v2754
        %vm2756 = vweird.f32 %v1557
        %vm2757 = vweird.f32 %v2751
        %vm2758 = vmor %vm2756, %vm2757
        %v2759 = vsel %vm2758, %v2751, %v2755
        %v2760 = vand.u32 2147483647, %v1557
        %vm2761 = vcmp.eq.f32.partialorder %v2760, 8.507059e+37
        %v2762 = vand.u32 %v1557, 2147483648
        %v2763 = vor.u32 1.1754944e-38, %v2762
        %v2764 = vsel %vm2761, %v2763, %v2759
        %v2765 = vmul.f32 1.0, %v2764
        %v2766 = vrcp.pop %v1558
        %v2767 = vmul.f32 %v1558, %v2766
        %v2768 = vsub.f32 1.0, %v2767
        %v2769 = vmul.f32 %v2766, %v2768
        %v2770 = vadd.f32 %v2766, %v2769
        %vm2771 = vweird.f32 %v1558
        %vm2772 = vweird.f32 %v2766
        %vm2773 = vmor %vm2771, %vm2772
        %v2774 = vsel %vm2773, %v2766, %v2770
        %v2775 = vand.u32 2147483647, %v1558
        %vm2776 = vcmp.eq.f32.partialorder %v2775, 8.507059e+37
        %v2777 = vand.u32 %v1558, 2147483648
        %v2778 = vor.u32 1.1754944e-38, %v2777
        %v2779 = vsel %vm2776, %v2778, %v2774
        %v2780 = vmul.f32 1.0, %v2779
        %v2781 = vrcp.pop %v1559
        %v2782 = vmul.f32 %v1559, %v2781
        %v2783 = vsub.f32 1.0, %v2782
        %v2784 = vmul.f32 %v2781, %v2783
        %v2785 = vadd.f32 %v2781, %v2784
        %vm2786 = vweird.f32 %v1559
        %vm2787 = vweird.f32 %v2781
        %vm2788 = vmor %vm2786, %vm2787
        %v2789 = vsel %vm2788, %v2781, %v2785
        %v2790 = vand.u32 2147483647, %v1559
        %vm2791 = vcmp.eq.f32.partialorder %v2790, 8.507059e+37
        %v2792 = vand.u32 %v1559, 2147483648
        %v2793 = vor.u32 1.1754944e-38, %v2792
        %v2794 = vsel %vm2791, %v2793, %v2789
        %v2795 = vmul.f32 1.0, %v2794
        %v2796 = vrcp.pop %v1560
        %v2797 = vmul.f32 %v1560, %v2796
        %v2798 = vsub.f32 1.0, %v2797
        %v2799 = vmul.f32 %v2796, %v2798
        %v2800 = vadd.f32 %v2796, %v2799
        %vm2801 = vweird.f32 %v1560
        %vm2802 = vweird.f32 %v2796
        %vm2803 = vmor %vm2801, %vm2802
        %v2804 = vsel %vm2803, %v2796, %v2800
        %v2805 = vand.u32 2147483647, %v1560
        %vm2806 = vcmp.eq.f32.partialorder %v2805, 8.507059e+37
        %v2807 = vand.u32 %v1560, 2147483648
        %v2808 = vor.u32 1.1754944e-38, %v2807
        %v2809 = vsel %vm2806, %v2808, %v2804
        %v2810 = vmul.f32 1.0, %v2809
        %v2811 = vrcp.pop %v1561
        %v2812 = vmul.f32 %v1561, %v2811
        %v2813 = vsub.f32 1.0, %v2812
        %v2814 = vmul.f32 %v2811, %v2813
        %v2815 = vadd.f32 %v2811, %v2814
        %vm2816 = vweird.f32 %v1561
        %vm2817 = vweird.f32 %v2811
        %vm2818 = vmor %vm2816, %vm2817
        %v2819 = vsel %vm2818, %v2811, %v2815
        %v2820 = vand.u32 2147483647, %v1561
        %vm2821 = vcmp.eq.f32.partialorder %v2820, 8.507059e+37
        %v2822 = vand.u32 %v1561, 2147483648
        %v2823 = vor.u32 1.1754944e-38, %v2822
        %v2824 = vsel %vm2821, %v2823, %v2819
        %v2825 = vmul.f32 1.0, %v2824
        %v2826 = vrcp.pop %v1562
        %v2827 = vmul.f32 %v1562, %v2826
        %v2828 = vsub.f32 1.0, %v2827
        %v2829 = vmul.f32 %v2826, %v2828
        %v2830 = vadd.f32 %v2826, %v2829
        %vm2831 = vweird.f32 %v1562
        %vm2832 = vweird.f32 %v2826
        %vm2833 = vmor %vm2831, %vm2832
        %v2834 = vsel %vm2833, %v2826, %v2830
        %v2835 = vand.u32 2147483647, %v1562
        %vm2836 = vcmp.eq.f32.partialorder %v2835, 8.507059e+37
        %v2837 = vand.u32 %v1562, 2147483648
        %v2838 = vor.u32 1.1754944e-38, %v2837
        %v2839 = vsel %vm2836, %v2838, %v2834
        %v2840 = vmul.f32 1.0, %v2839
        %v2841 = vrcp.pop %v1563
        %v2842 = vmul.f32 %v1563, %v2841
        %v2843 = vsub.f32 1.0, %v2842
        %v2844 = vmul.f32 %v2841, %v2843
        %v2845 = vadd.f32 %v2841, %v2844
        %vm2846 = vweird.f32 %v1563
        %vm2847 = vweird.f32 %v2841
        %vm2848 = vmor %vm2846, %vm2847
        %v2849 = vsel %vm2848, %v2841, %v2845
        %v2850 = vand.u32 2147483647, %v1563
        %vm2851 = vcmp.eq.f32.partialorder %v2850, 8.507059e+37
        %v2852 = vand.u32 %v1563, 2147483648
        %v2853 = vor.u32 1.1754944e-38, %v2852
        %v2854 = vsel %vm2851, %v2853, %v2849
        %v2855 = vmul.f32 1.0, %v2854
        %v2856 = vrcp.pop %v1564
        %v2857 = vmul.f32 %v1564, %v2856
        %v2858 = vsub.f32 1.0, %v2857
        %v2859 = vmul.f32 %v2856, %v2858
        %v2860 = vadd.f32 %v2856, %v2859
        %vm2861 = vweird.f32 %v1564
        %vm2862 = vweird.f32 %v2856
        %vm2863 = vmor %vm2861, %vm2862
        %v2864 = vsel %vm2863, %v2856, %v2860
        %v2865 = vand.u32 2147483647, %v1564
        %vm2866 = vcmp.eq.f32.partialorder %v2865, 8.507059e+37
        %v2867 = vand.u32 %v1564, 2147483648
        %v2868 = vor.u32 1.1754944e-38, %v2867
        %v2869 = vsel %vm2866, %v2868, %v2864
        %v2870 = vmul.f32 1.0, %v2869
        %v2871 = vrcp.pop %v1565
        %v2872 = vmul.f32 %v1565, %v2871
        %v2873 = vsub.f32 1.0, %v2872
        %v2874 = vmul.f32 %v2871, %v2873
        %v2875 = vadd.f32 %v2871, %v2874
        %vm2876 = vweird.f32 %v1565
        %vm2877 = vweird.f32 %v2871
        %vm2878 = vmor %vm2876, %vm2877
        %v2879 = vsel %vm2878, %v2871, %v2875
        %v2880 = vand.u32 2147483647, %v1565
        %vm2881 = vcmp.eq.f32.partialorder %v2880, 8.507059e+37
        %v2882 = vand.u32 %v1565, 2147483648
        %v2883 = vor.u32 1.1754944e-38, %v2882
        %v2884 = vsel %vm2881, %v2883, %v2879
        %v2885 = vmul.f32 1.0, %v2884
        %v2886 = vrcp.pop %v1566
        %v2887 = vmul.f32 %v1566, %v2886
        %v2888 = vsub.f32 1.0, %v2887
        %v2889 = vmul.f32 %v2886, %v2888
        %v2890 = vadd.f32 %v2886, %v2889
        %vm2891 = vweird.f32 %v1566
        %vm2892 = vweird.f32 %v2886
        %vm2893 = vmor %vm2891, %vm2892
        %v2894 = vsel %vm2893, %v2886, %v2890
        %v2895 = vand.u32 2147483647, %v1566
        %vm2896 = vcmp.eq.f32.partialorder %v2895, 8.507059e+37
        %v2897 = vand.u32 %v1566, 2147483648
        %v2898 = vor.u32 1.1754944e-38, %v2897
        %v2899 = vsel %vm2896, %v2898, %v2894
        %v2900 = vmul.f32 1.0, %v2899
        %v2901 = vrcp.pop %v1567
        %v2902 = vmul.f32 %v1567, %v2901
        %v2903 = vsub.f32 1.0, %v2902
        %v2904 = vmul.f32 %v2901, %v2903
        %v2905 = vadd.f32 %v2901, %v2904
        %vm2906 = vweird.f32 %v1567
        %vm2907 = vweird.f32 %v2901
        %vm2908 = vmor %vm2906, %vm2907
        %v2909 = vsel %vm2908, %v2901, %v2905
        %v2910 = vand.u32 2147483647, %v1567
        %vm2911 = vcmp.eq.f32.partialorder %v2910, 8.507059e+37
        %v2912 = vand.u32 %v1567, 2147483648
        %v2913 = vor.u32 1.1754944e-38, %v2912
        %v2914 = vsel %vm2911, %v2913, %v2909
        %v2915 = vmul.f32 1.0, %v2914
        %v2916 = vrcp.pop %v1568
        %v2917 = vmul.f32 %v1568, %v2916
        %v2918 = vsub.f32 1.0, %v2917
        %v2919 = vmul.f32 %v2916, %v2918
        %v2920 = vadd.f32 %v2916, %v2919
        %vm2921 = vweird.f32 %v1568
        %vm2922 = vweird.f32 %v2916
        %vm2923 = vmor %vm2921, %vm2922
        %v2924 = vsel %vm2923, %v2916, %v2920
        %v2925 = vand.u32 2147483647, %v1568
        %vm2926 = vcmp.eq.f32.partialorder %v2925, 8.507059e+37
        %v2927 = vand.u32 %v1568, 2147483648
        %v2928 = vor.u32 1.1754944e-38, %v2927
        %v2929 = vsel %vm2926, %v2928, %v2924
        %v2930 = vmul.f32 1.0, %v2929
        %v2931 = vrcp.pop %v1569
        %v2932 = vmul.f32 %v1569, %v2931
        %v2933 = vsub.f32 1.0, %v2932
        %v2934 = vmul.f32 %v2931, %v2933
        %v2935 = vadd.f32 %v2931, %v2934
        %vm2936 = vweird.f32 %v1569
        %vm2937 = vweird.f32 %v2931
        %vm2938 = vmor %vm2936, %vm2937
        %v2939 = vsel %vm2938, %v2931, %v2935
        %v2940 = vand.u32 2147483647, %v1569
        %vm2941 = vcmp.eq.f32.partialorder %v2940, 8.507059e+37
        %v2942 = vand.u32 %v1569, 2147483648
        %v2943 = vor.u32 1.1754944e-38, %v2942
        %v2944 = vsel %vm2941, %v2943, %v2939
        %v2945 = vmul.f32 1.0, %v2944
        %v2946 = vrcp.pop %v1570
        %v2947 = vmul.f32 %v1570, %v2946
        %v2948 = vsub.f32 1.0, %v2947
        %v2949 = vmul.f32 %v2946, %v2948
        %v2950 = vadd.f32 %v2946, %v2949
        %vm2951 = vweird.f32 %v1570
        %vm2952 = vweird.f32 %v2946
        %vm2953 = vmor %vm2951, %vm2952
        %v2954 = vsel %vm2953, %v2946, %v2950
        %v2955 = vand.u32 2147483647, %v1570
        %vm2956 = vcmp.eq.f32.partialorder %v2955, 8.507059e+37
        %v2957 = vand.u32 %v1570, 2147483648
        %v2958 = vor.u32 1.1754944e-38, %v2957
        %v2959 = vsel %vm2956, %v2958, %v2954
        %v2960 = vmul.f32 1.0, %v2959
        %v2961 = vrcp.pop %v1571
        %v2962 = vmul.f32 %v1571, %v2961
        %v2963 = vsub.f32 1.0, %v2962
        %v2964 = vmul.f32 %v2961, %v2963
        %v2965 = vadd.f32 %v2961, %v2964
        %vm2966 = vweird.f32 %v1571
        %vm2967 = vweird.f32 %v2961
        %vm2968 = vmor %vm2966, %vm2967
        %v2969 = vsel %vm2968, %v2961, %v2965
        %v2970 = vand.u32 2147483647, %v1571
        %vm2971 = vcmp.eq.f32.partialorder %v2970, 8.507059e+37
        %v2972 = vand.u32 %v1571, 2147483648
        %v2973 = vor.u32 1.1754944e-38, %v2972
        %v2974 = vsel %vm2971, %v2973, %v2969
        %v2975 = vmul.f32 1.0, %v2974
        %v2976 = vrcp.pop %v1572
        %v2977 = vmul.f32 %v1572, %v2976
        %v2978 = vsub.f32 1.0, %v2977
        %v2979 = vmul.f32 %v2976, %v2978
        %v2980 = vadd.f32 %v2976, %v2979
        %vm2981 = vweird.f32 %v1572
        %vm2982 = vweird.f32 %v2976
        %vm2983 = vmor %vm2981, %vm2982
        %v2984 = vsel %vm2983, %v2976, %v2980
        %v2985 = vand.u32 2147483647, %v1572
        %vm2986 = vcmp.eq.f32.partialorder %v2985, 8.507059e+37
        %v2987 = vand.u32 %v1572, 2147483648
        %v2988 = vor.u32 1.1754944e-38, %v2987
        %v2989 = vsel %vm2986, %v2988, %v2984
        %v2990 = vmul.f32 1.0, %v2989
        %v2991 = vrcp.pop %v1573
        %v2992 = vmul.f32 %v1573, %v2991
        %v2993 = vsub.f32 1.0, %v2992
        %v2994 = vmul.f32 %v2991, %v2993
        %v2995 = vadd.f32 %v2991, %v2994
        %vm2996 = vweird.f32 %v1573
        %vm2997 = vweird.f32 %v2991
        %vm2998 = vmor %vm2996, %vm2997
        %v2999 = vsel %vm2998, %v2991, %v2995
        %v3000 = vand.u32 2147483647, %v1573
        %vm3001 = vcmp.eq.f32.partialorder %v3000, 8.507059e+37
        %v3002 = vand.u32 %v1573, 2147483648
        %v3003 = vor.u32 1.1754944e-38, %v3002
        %v3004 = vsel %vm3001, %v3003, %v2999
        %v3005 = vmul.f32 1.0, %v3004
        %v3006 = vrcp.pop %v1574
        %v3007 = vmul.f32 %v1574, %v3006
        %v3008 = vsub.f32 1.0, %v3007
        %v3009 = vmul.f32 %v3006, %v3008
        %v3010 = vadd.f32 %v3006, %v3009
        %vm3011 = vweird.f32 %v1574
        %vm3012 = vweird.f32 %v3006
        %vm3013 = vmor %vm3011, %vm3012
        %v3014 = vsel %vm3013, %v3006, %v3010
        %v3015 = vand.u32 2147483647, %v1574
        %vm3016 = vcmp.eq.f32.partialorder %v3015, 8.507059e+37
        %v3017 = vand.u32 %v1574, 2147483648
        %v3018 = vor.u32 1.1754944e-38, %v3017
        %v3019 = vsel %vm3016, %v3018, %v3014
        %v3020 = vmul.f32 1.0, %v3019
        %v3021 = vrcp.pop %v1575
        %v3022 = vmul.f32 %v1575, %v3021
        %v3023 = vsub.f32 1.0, %v3022
        %v3024 = vmul.f32 %v3021, %v3023
        %v3025 = vadd.f32 %v3021, %v3024
        %vm3026 = vweird.f32 %v1575
        %vm3027 = vweird.f32 %v3021
        %vm3028 = vmor %vm3026, %vm3027
        %v3029 = vsel %vm3028, %v3021, %v3025
        %v3030 = vand.u32 2147483647, %v1575
        %vm3031 = vcmp.eq.f32.partialorder %v3030, 8.507059e+37
        %v3032 = vand.u32 %v1575, 2147483648
        %v3033 = vor.u32 1.1754944e-38, %v3032
        %v3034 = vsel %vm3031, %v3033, %v3029
        %v3035 = vmul.f32 1.0, %v3034
        %v3036 = vrcp.pop %v1576
        %v3037 = vmul.f32 %v1576, %v3036
        %v3038 = vsub.f32 1.0, %v3037
        %v3039 = vmul.f32 %v3036, %v3038
        %v3040 = vadd.f32 %v3036, %v3039
        %vm3041 = vweird.f32 %v1576
        %vm3042 = vweird.f32 %v3036
        %vm3043 = vmor %vm3041, %vm3042
        %v3044 = vsel %vm3043, %v3036, %v3040
        %v3045 = vand.u32 2147483647, %v1576
        %vm3046 = vcmp.eq.f32.partialorder %v3045, 8.507059e+37
        %v3047 = vand.u32 %v1576, 2147483648
        %v3048 = vor.u32 1.1754944e-38, %v3047
        %v3049 = vsel %vm3046, %v3048, %v3044
        %v3050 = vmul.f32 1.0, %v3049
        %v3051 = vrcp.pop %v1577
        %v3052 = vmul.f32 %v1577, %v3051
        %v3053 = vsub.f32 1.0, %v3052
        %v3054 = vmul.f32 %v3051, %v3053
        %v3055 = vadd.f32 %v3051, %v3054
        %vm3056 = vweird.f32 %v1577
        %vm3057 = vweird.f32 %v3051
        %vm3058 = vmor %vm3056, %vm3057
        %v3059 = vsel %vm3058, %v3051, %v3055
        %v3060 = vand.u32 2147483647, %v1577
        %vm3061 = vcmp.eq.f32.partialorder %v3060, 8.507059e+37
        %v3062 = vand.u32 %v1577, 2147483648
        %v3063 = vor.u32 1.1754944e-38, %v3062
        %v3064 = vsel %vm3061, %v3063, %v3059
        %v3065 = vmul.f32 1.0, %v3064
        %v3066 = vrcp.pop %v1578
        %v3067 = vmul.f32 %v1578, %v3066
        %v3068 = vsub.f32 1.0, %v3067
        %v3069 = vmul.f32 %v3066, %v3068
        %v3070 = vadd.f32 %v3066, %v3069
        %vm3071 = vweird.f32 %v1578
        %vm3072 = vweird.f32 %v3066
        %vm3073 = vmor %vm3071, %vm3072
        %v3074 = vsel %vm3073, %v3066, %v3070
        %v3075 = vand.u32 2147483647, %v1578
        %vm3076 = vcmp.eq.f32.partialorder %v3075, 8.507059e+37
        %v3077 = vand.u32 %v1578, 2147483648
        %v3078 = vor.u32 1.1754944e-38, %v3077
        %v3079 = vsel %vm3076, %v3078, %v3074
        %v3080 = vmul.f32 1.0, %v3079
        %v3081 = vrcp.pop %v1579
        %v3082 = vmul.f32 %v1579, %v3081
        %v3083 = vsub.f32 1.0, %v3082
        %v3084 = vmul.f32 %v3081, %v3083
        %v3085 = vadd.f32 %v3081, %v3084
        %vm3086 = vweird.f32 %v1579
        %vm3087 = vweird.f32 %v3081
        %vm3088 = vmor %vm3086, %vm3087
        %v3089 = vsel %vm3088, %v3081, %v3085
        %v3090 = vand.u32 2147483647, %v1579
        %vm3091 = vcmp.eq.f32.partialorder %v3090, 8.507059e+37
        %v3092 = vand.u32 %v1579, 2147483648
        %v3093 = vor.u32 1.1754944e-38, %v3092
        %v3094 = vsel %vm3091, %v3093, %v3089
        %v3095 = vmul.f32 1.0, %v3094
        %v3096 = vrcp.pop %v1580
        %v3097 = vmul.f32 %v1580, %v3096
        %v3098 = vsub.f32 1.0, %v3097
        %v3099 = vmul.f32 %v3096, %v3098
        %v3100 = vadd.f32 %v3096, %v3099
        %vm3101 = vweird.f32 %v1580
        %vm3102 = vweird.f32 %v3096
        %vm3103 = vmor %vm3101, %vm3102
        %v3104 = vsel %vm3103, %v3096, %v3100
        %v3105 = vand.u32 2147483647, %v1580
        %vm3106 = vcmp.eq.f32.partialorder %v3105, 8.507059e+37
        %v3107 = vand.u32 %v1580, 2147483648
        %v3108 = vor.u32 1.1754944e-38, %v3107
        %v3109 = vsel %vm3106, %v3108, %v3104
        %v3110 = vmul.f32 1.0, %v3109
        %v3111 = vrcp.pop %v1581
        %v3112 = vmul.f32 %v1581, %v3111
        %v3113 = vsub.f32 1.0, %v3112
        %v3114 = vmul.f32 %v3111, %v3113
        %v3115 = vadd.f32 %v3111, %v3114
        %vm3116 = vweird.f32 %v1581
        %vm3117 = vweird.f32 %v3111
        %vm3118 = vmor %vm3116, %vm3117
        %v3119 = vsel %vm3118, %v3111, %v3115
        %v3120 = vand.u32 2147483647, %v1581
        %vm3121 = vcmp.eq.f32.partialorder %v3120, 8.507059e+37
        %v3122 = vand.u32 %v1581, 2147483648
        %v3123 = vor.u32 1.1754944e-38, %v3122
        %v3124 = vsel %vm3121, %v3123, %v3119
        %v3125 = vmul.f32 1.0, %v3124
        %v3126 = vrcp.pop %v1582
        %v3127 = vmul.f32 %v1582, %v3126
        %v3128 = vsub.f32 1.0, %v3127
        %v3129 = vmul.f32 %v3126, %v3128
        %v3130 = vadd.f32 %v3126, %v3129
        %vm3131 = vweird.f32 %v1582
        %vm3132 = vweird.f32 %v3126
        %vm3133 = vmor %vm3131, %vm3132
        %v3134 = vsel %vm3133, %v3126, %v3130
        %v3135 = vand.u32 2147483647, %v1582
        %vm3136 = vcmp.eq.f32.partialorder %v3135, 8.507059e+37
        %v3137 = vand.u32 %v1582, 2147483648
        %v3138 = vor.u32 1.1754944e-38, %v3137
        %v3139 = vsel %vm3136, %v3138, %v3134
        %v3140 = vmul.f32 1.0, %v3139
        %v3141 = vrcp.pop %v1583
        %v3142 = vmul.f32 %v1583, %v3141
        %v3143 = vsub.f32 1.0, %v3142
        %v3144 = vmul.f32 %v3141, %v3143
        %v3145 = vadd.f32 %v3141, %v3144
        %vm3146 = vweird.f32 %v1583
        %vm3147 = vweird.f32 %v3141
        %vm3148 = vmor %vm3146, %vm3147
        %v3149 = vsel %vm3148, %v3141, %v3145
        %v3150 = vand.u32 2147483647, %v1583
        %vm3151 = vcmp.eq.f32.partialorder %v3150, 8.507059e+37
        %v3152 = vand.u32 %v1583, 2147483648
        %v3153 = vor.u32 1.1754944e-38, %v3152
        %v3154 = vsel %vm3151, %v3153, %v3149
        %v3155 = vmul.f32 1.0, %v3154
        %v3156 = vrcp.pop %v1584
        %v3157 = vmul.f32 %v1584, %v3156
        %v3158 = vsub.f32 1.0, %v3157
        %v3159 = vmul.f32 %v3156, %v3158
        %v3160 = vadd.f32 %v3156, %v3159
        %vm3161 = vweird.f32 %v1584
        %vm3162 = vweird.f32 %v3156
        %vm3163 = vmor %vm3161, %vm3162
        %v3164 = vsel %vm3163, %v3156, %v3160
        %v3165 = vand.u32 2147483647, %v1584
        %vm3166 = vcmp.eq.f32.partialorder %v3165, 8.507059e+37
        %v3167 = vand.u32 %v1584, 2147483648
        %v3168 = vor.u32 1.1754944e-38, %v3167
        %v3169 = vsel %vm3166, %v3168, %v3164
        %v3170 = vmul.f32 1.0, %v3169
        %v3171 = vrcp.pop %v1585
        %v3172 = vmul.f32 %v1585, %v3171
        %v3173 = vsub.f32 1.0, %v3172
        %v3174 = vmul.f32 %v3171, %v3173
        %v3175 = vadd.f32 %v3171, %v3174
        %vm3176 = vweird.f32 %v1585
        %vm3177 = vweird.f32 %v3171
        %vm3178 = vmor %vm3176, %vm3177
        %v3179 = vsel %vm3178, %v3171, %v3175
        %v3180 = vand.u32 2147483647, %v1585
        %vm3181 = vcmp.eq.f32.partialorder %v3180, 8.507059e+37
        %v3182 = vand.u32 %v1585, 2147483648
        %v3183 = vor.u32 1.1754944e-38, %v3182
        %v3184 = vsel %vm3181, %v3183, %v3179
        %v3185 = vmul.f32 1.0, %v3184
        %v3186 = vrcp.pop %v1586
        %v3187 = vmul.f32 %v1586, %v3186
        %v3188 = vsub.f32 1.0, %v3187
        %v3189 = vmul.f32 %v3186, %v3188
        %v3190 = vadd.f32 %v3186, %v3189
        %vm3191 = vweird.f32 %v1586
        %vm3192 = vweird.f32 %v3186
        %vm3193 = vmor %vm3191, %vm3192
        %v3194 = vsel %vm3193, %v3186, %v3190
        %v3195 = vand.u32 2147483647, %v1586
        %vm3196 = vcmp.eq.f32.partialorder %v3195, 8.507059e+37
        %v3197 = vand.u32 %v1586, 2147483648
        %v3198 = vor.u32 1.1754944e-38, %v3197
        %v3199 = vsel %vm3196, %v3198, %v3194
        %v3200 = vmul.f32 1.0, %v3199
        %v3201 = vrcp.pop %v1587
        %v3202 = vmul.f32 %v1587, %v3201
        %v3203 = vsub.f32 1.0, %v3202
        %v3204 = vmul.f32 %v3201, %v3203
        %v3205 = vadd.f32 %v3201, %v3204
        %vm3206 = vweird.f32 %v1587
        %vm3207 = vweird.f32 %v3201
        %vm3208 = vmor %vm3206, %vm3207
        %v3209 = vsel %vm3208, %v3201, %v3205
        %v3210 = vand.u32 2147483647, %v1587
        %vm3211 = vcmp.eq.f32.partialorder %v3210, 8.507059e+37
        %v3212 = vand.u32 %v1587, 2147483648
        %v3213 = vor.u32 1.1754944e-38, %v3212
        %v3214 = vsel %vm3211, %v3213, %v3209
        %v3215 = vmul.f32 1.0, %v3214
        %v3216 = vrcp.pop %v1588
        %v3217 = vmul.f32 %v1588, %v3216
        %v3218 = vsub.f32 1.0, %v3217
        %v3219 = vmul.f32 %v3216, %v3218
        %v3220 = vadd.f32 %v3216, %v3219
        %vm3221 = vweird.f32 %v1588
        %vm3222 = vweird.f32 %v3216
        %vm3223 = vmor %vm3221, %vm3222
        %v3224 = vsel %vm3223, %v3216, %v3220
        %v3225 = vand.u32 2147483647, %v1588
        %vm3226 = vcmp.eq.f32.partialorder %v3225, 8.507059e+37
        %v3227 = vand.u32 %v1588, 2147483648
        %v3228 = vor.u32 1.1754944e-38, %v3227
        %v3229 = vsel %vm3226, %v3228, %v3224
        %v3230 = vmul.f32 1.0, %v3229
        %v3231 = vrcp.pop %v1589
        %v3232 = vmul.f32 %v1589, %v3231
        %v3233 = vsub.f32 1.0, %v3232
        %v3234 = vmul.f32 %v3231, %v3233
        %v3235 = vadd.f32 %v3231, %v3234
        %vm3236 = vweird.f32 %v1589
        %vm3237 = vweird.f32 %v3231
        %vm3238 = vmor %vm3236, %vm3237
        %v3239 = vsel %vm3238, %v3231, %v3235
        %v3240 = vand.u32 2147483647, %v1589
        %vm3241 = vcmp.eq.f32.partialorder %v3240, 8.507059e+37
        %v3242 = vand.u32 %v1589, 2147483648
        %v3243 = vor.u32 1.1754944e-38, %v3242
        %v3244 = vsel %vm3241, %v3243, %v3239
        %v3245 = vmul.f32 1.0, %v3244
        %v3246 = vrcp.pop %v1590
        %v3247 = vmul.f32 %v1590, %v3246
        %v3248 = vsub.f32 1.0, %v3247
        %v3249 = vmul.f32 %v3246, %v3248
        %v3250 = vadd.f32 %v3246, %v3249
        %vm3251 = vweird.f32 %v1590
        %vm3252 = vweird.f32 %v3246
        %vm3253 = vmor %vm3251, %vm3252
        %v3254 = vsel %vm3253, %v3246, %v3250
        %v3255 = vand.u32 2147483647, %v1590
        %vm3256 = vcmp.eq.f32.partialorder %v3255, 8.507059e+37
        %v3257 = vand.u32 %v1590, 2147483648
        %v3258 = vor.u32 1.1754944e-38, %v3257
        %v3259 = vsel %vm3256, %v3258, %v3254
        %v3260 = vmul.f32 1.0, %v3259
        %v3261 = vrcp.pop %v1591
        %v3262 = vmul.f32 %v1591, %v3261
        %v3263 = vsub.f32 1.0, %v3262
        %v3264 = vmul.f32 %v3261, %v3263
        %v3265 = vadd.f32 %v3261, %v3264
        %vm3266 = vweird.f32 %v1591
        %vm3267 = vweird.f32 %v3261
        %vm3268 = vmor %vm3266, %vm3267
        %v3269 = vsel %vm3268, %v3261, %v3265
        %v3270 = vand.u32 2147483647, %v1591
        %vm3271 = vcmp.eq.f32.partialorder %v3270, 8.507059e+37
        %v3272 = vand.u32 %v1591, 2147483648
        %v3273 = vor.u32 1.1754944e-38, %v3272
        %v3274 = vsel %vm3271, %v3273, %v3269
        %v3275 = vmul.f32 1.0, %v3274
        %v3276 = vrcp.pop %v1592
        %v3277 = vmul.f32 %v1592, %v3276
        %v3278 = vsub.f32 1.0, %v3277
        %v3279 = vmul.f32 %v3276, %v3278
        %v3280 = vadd.f32 %v3276, %v3279
        %vm3281 = vweird.f32 %v1592
        %vm3282 = vweird.f32 %v3276
        %vm3283 = vmor %vm3281, %vm3282
        %v3284 = vsel %vm3283, %v3276, %v3280
        %v3285 = vand.u32 2147483647, %v1592
        %vm3286 = vcmp.eq.f32.partialorder %v3285, 8.507059e+37
        %v3287 = vand.u32 %v1592, 2147483648
        %v3288 = vor.u32 1.1754944e-38, %v3287
        %v3289 = vsel %vm3286, %v3288, %v3284
        %v3290 = vmul.f32 1.0, %v3289
        %v3291 = vrcp.pop %v1593
        %v3292 = vmul.f32 %v1593, %v3291
        %v3293 = vsub.f32 1.0, %v3292
        %v3294 = vmul.f32 %v3291, %v3293
        %v3295 = vadd.f32 %v3291, %v3294
        %vm3296 = vweird.f32 %v1593
        %vm3297 = vweird.f32 %v3291
        %vm3298 = vmor %vm3296, %vm3297
        %v3299 = vsel %vm3298, %v3291, %v3295
        %v3300 = vand.u32 2147483647, %v1593
        %vm3301 = vcmp.eq.f32.partialorder %v3300, 8.507059e+37
        %v3302 = vand.u32 %v1593, 2147483648
        %v3303 = vor.u32 1.1754944e-38, %v3302
        %v3304 = vsel %vm3301, %v3303, %v3299
        %v3305 = vmul.f32 1.0, %v3304
        %v3306 = vrcp.pop %v1594
        %v3307 = vmul.f32 %v1594, %v3306
        %v3308 = vsub.f32 1.0, %v3307
        %v3309 = vmul.f32 %v3306, %v3308
        %v3310 = vadd.f32 %v3306, %v3309
        %vm3311 = vweird.f32 %v1594
        %vm3312 = vweird.f32 %v3306
        %vm3313 = vmor %vm3311, %vm3312
        %v3314 = vsel %vm3313, %v3306, %v3310
        %v3315 = vand.u32 2147483647, %v1594
        %vm3316 = vcmp.eq.f32.partialorder %v3315, 8.507059e+37
        %v3317 = vand.u32 %v1594, 2147483648
        %v3318 = vor.u32 1.1754944e-38, %v3317
        %v3319 = vsel %vm3316, %v3318, %v3314
        %v3320 = vmul.f32 1.0, %v3319
        %v3321 = vrcp.pop %v1595
        %v3322 = vmul.f32 %v1595, %v3321
        %v3323 = vsub.f32 1.0, %v3322
        %v3324 = vmul.f32 %v3321, %v3323
        %v3325 = vadd.f32 %v3321, %v3324
        %vm3326 = vweird.f32 %v1595
        %vm3327 = vweird.f32 %v3321
        %vm3328 = vmor %vm3326, %vm3327
        %v3329 = vsel %vm3328, %v3321, %v3325
        %v3330 = vand.u32 2147483647, %v1595
        %vm3331 = vcmp.eq.f32.partialorder %v3330, 8.507059e+37
        %v3332 = vand.u32 %v1595, 2147483648
        %v3333 = vor.u32 1.1754944e-38, %v3332
        %v3334 = vsel %vm3331, %v3333, %v3329
        %v3335 = vmul.f32 1.0, %v3334
        %v3336 = vrcp.pop %v1596
        %v3337 = vmul.f32 %v1596, %v3336
        %v3338 = vsub.f32 1.0, %v3337
        %v3339 = vmul.f32 %v3336, %v3338
        %v3340 = vadd.f32 %v3336, %v3339
        %vm3341 = vweird.f32 %v1596
        %vm3342 = vweird.f32 %v3336
        %vm3343 = vmor %vm3341, %vm3342
        %v3344 = vsel %vm3343, %v3336, %v3340
        %v3345 = vand.u32 2147483647, %v1596
        %vm3346 = vcmp.eq.f32.partialorder %v3345, 8.507059e+37
        %v3347 = vand.u32 %v1596, 2147483648
        %v3348 = vor.u32 1.1754944e-38, %v3347
        %v3349 = vsel %vm3346, %v3348, %v3344
        %v3350 = vmul.f32 1.0, %v3349
        %v3351 = vrcp.pop %v1597
        %v3352 = vmul.f32 %v1597, %v3351
        %v3353 = vsub.f32 1.0, %v3352
        %v3354 = vmul.f32 %v3351, %v3353
        %v3355 = vadd.f32 %v3351, %v3354
        %vm3356 = vweird.f32 %v1597
        %vm3357 = vweird.f32 %v3351
        %vm3358 = vmor %vm3356, %vm3357
        %v3359 = vsel %vm3358, %v3351, %v3355
        %v3360 = vand.u32 2147483647, %v1597
        %vm3361 = vcmp.eq.f32.partialorder %v3360, 8.507059e+37
        %v3362 = vand.u32 %v1597, 2147483648
        %v3363 = vor.u32 1.1754944e-38, %v3362
        %v3364 = vsel %vm3361, %v3363, %v3359
        %v3365 = vmul.f32 1.0, %v3364
        %v3366 = vrcp.pop %v1598
        %v3367 = vmul.f32 %v1598, %v3366
        %v3368 = vsub.f32 1.0, %v3367
        %v3369 = vmul.f32 %v3366, %v3368
        %v3370 = vadd.f32 %v3366, %v3369
        %vm3371 = vweird.f32 %v1598
        %vm3372 = vweird.f32 %v3366
        %vm3373 = vmor %vm3371, %vm3372
        %v3374 = vsel %vm3373, %v3366, %v3370
        %v3375 = vand.u32 2147483647, %v1598
        %vm3376 = vcmp.eq.f32.partialorder %v3375, 8.507059e+37
        %v3377 = vand.u32 %v1598, 2147483648
        %v3378 = vor.u32 1.1754944e-38, %v3377
        %v3379 = vsel %vm3376, %v3378, %v3374
        %v3380 = vmul.f32 1.0, %v3379
        %v3381 = vrcp.pop %v1599
        %v3382 = vmul.f32 %v1599, %v3381
        %v3383 = vsub.f32 1.0, %v3382
        %v3384 = vmul.f32 %v3381, %v3383
        %v3385 = vadd.f32 %v3381, %v3384
        %vm3386 = vweird.f32 %v1599
        %vm3387 = vweird.f32 %v3381
        %vm3388 = vmor %vm3386, %vm3387
        %v3389 = vsel %vm3388, %v3381, %v3385
        %v3390 = vand.u32 2147483647, %v1599
        %vm3391 = vcmp.eq.f32.partialorder %v3390, 8.507059e+37
        %v3392 = vand.u32 %v1599, 2147483648
        %v3393 = vor.u32 1.1754944e-38, %v3392
        %v3394 = vsel %vm3391, %v3393, %v3389
        %v3395 = vmul.f32 1.0, %v3394
        %v3396 = vrcp.pop %v1600
        %v3397 = vmul.f32 %v1600, %v3396
        %v3398 = vsub.f32 1.0, %v3397
        %v3399 = vmul.f32 %v3396, %v3398
        %v3400 = vadd.f32 %v3396, %v3399
        %vm3401 = vweird.f32 %v1600
        %vm3402 = vweird.f32 %v3396
        %vm3403 = vmor %vm3401, %vm3402
        %v3404 = vsel %vm3403, %v3396, %v3400
        %v3405 = vand.u32 2147483647, %v1600
        %vm3406 = vcmp.eq.f32.partialorder %v3405, 8.507059e+37
        %v3407 = vand.u32 %v1600, 2147483648
        %v3408 = vor.u32 1.1754944e-38, %v3407
        %v3409 = vsel %vm3406, %v3408, %v3404
        %v3410 = vmul.f32 1.0, %v3409
        %v3411 = vrcp.pop %v1601
        %v3412 = vmul.f32 %v1601, %v3411
        %v3413 = vsub.f32 1.0, %v3412
        %v3414 = vmul.f32 %v3411, %v3413
        %v3415 = vadd.f32 %v3411, %v3414
        %vm3416 = vweird.f32 %v1601
        %vm3417 = vweird.f32 %v3411
        %vm3418 = vmor %vm3416, %vm3417
        %v3419 = vsel %vm3418, %v3411, %v3415
        %v3420 = vand.u32 2147483647, %v1601
        %vm3421 = vcmp.eq.f32.partialorder %v3420, 8.507059e+37
        %v3422 = vand.u32 %v1601, 2147483648
        %v3423 = vor.u32 1.1754944e-38, %v3422
        %v3424 = vsel %vm3421, %v3423, %v3419
        %v3425 = vmul.f32 1.0, %v3424
        %v3426 = vrcp.pop %v1602
        %v3427 = vmul.f32 %v1602, %v3426
        %v3428 = vsub.f32 1.0, %v3427
        %v3429 = vmul.f32 %v3426, %v3428
        %v3430 = vadd.f32 %v3426, %v3429
        %vm3431 = vweird.f32 %v1602
        %vm3432 = vweird.f32 %v3426
        %vm3433 = vmor %vm3431, %vm3432
        %v3434 = vsel %vm3433, %v3426, %v3430
        %v3435 = vand.u32 2147483647, %v1602
        %vm3436 = vcmp.eq.f32.partialorder %v3435, 8.507059e+37
        %v3437 = vand.u32 %v1602, 2147483648
        %v3438 = vor.u32 1.1754944e-38, %v3437
        %v3439 = vsel %vm3436, %v3438, %v3434
        %v3440 = vmul.f32 1.0, %v3439
        %v3441 = vrcp.pop %v1603
        %v3442 = vmul.f32 %v1603, %v3441
        %v3443 = vsub.f32 1.0, %v3442
        %v3444 = vmul.f32 %v3441, %v3443
        %v3445 = vadd.f32 %v3441, %v3444
        %vm3446 = vweird.f32 %v1603
        %vm3447 = vweird.f32 %v3441
        %vm3448 = vmor %vm3446, %vm3447
        %v3449 = vsel %vm3448, %v3441, %v3445
        %v3450 = vand.u32 2147483647, %v1603
        %vm3451 = vcmp.eq.f32.partialorder %v3450, 8.507059e+37
        %v3452 = vand.u32 %v1603, 2147483648
        %v3453 = vor.u32 1.1754944e-38, %v3452
        %v3454 = vsel %vm3451, %v3453, %v3449
        %v3455 = vmul.f32 1.0, %v3454
        %v3456 = vrcp.pop %v1604
        %v3457 = vmul.f32 %v1604, %v3456
        %v3458 = vsub.f32 1.0, %v3457
        %v3459 = vmul.f32 %v3456, %v3458
        %v3460 = vadd.f32 %v3456, %v3459
        %vm3461 = vweird.f32 %v1604
        %vm3462 = vweird.f32 %v3456
        %vm3463 = vmor %vm3461, %vm3462
        %v3464 = vsel %vm3463, %v3456, %v3460
        %v3465 = vand.u32 2147483647, %v1604
        %vm3466 = vcmp.eq.f32.partialorder %v3465, 8.507059e+37
        %v3467 = vand.u32 %v1604, 2147483648
        %v3468 = vor.u32 1.1754944e-38, %v3467
        %v3469 = vsel %vm3466, %v3468, %v3464
        %v3470 = vmul.f32 1.0, %v3469
        %v3471 = vrcp.pop %v1605
        %v3472 = vmul.f32 %v1605, %v3471
        %v3473 = vsub.f32 1.0, %v3472
        %v3474 = vmul.f32 %v3471, %v3473
        %v3475 = vadd.f32 %v3471, %v3474
        %vm3476 = vweird.f32 %v1605
        %vm3477 = vweird.f32 %v3471
        %vm3478 = vmor %vm3476, %vm3477
        %v3479 = vsel %vm3478, %v3471, %v3475
        %v3480 = vand.u32 2147483647, %v1605
        %vm3481 = vcmp.eq.f32.partialorder %v3480, 8.507059e+37
        %v3482 = vand.u32 %v1605, 2147483648
        %v3483 = vor.u32 1.1754944e-38, %v3482
        %v3484 = vsel %vm3481, %v3483, %v3479
        %v3485 = vmul.f32 1.0, %v3484
        %v3486 = vrcp.pop %v1606
        %v3487 = vmul.f32 %v1606, %v3486
        %v3488 = vsub.f32 1.0, %v3487
        %v3489 = vmul.f32 %v3486, %v3488
        %v3490 = vadd.f32 %v3486, %v3489
        %vm3491 = vweird.f32 %v1606
        %vm3492 = vweird.f32 %v3486
        %vm3493 = vmor %vm3491, %vm3492
        %v3494 = vsel %vm3493, %v3486, %v3490
        %v3495 = vand.u32 2147483647, %v1606
        %vm3496 = vcmp.eq.f32.partialorder %v3495, 8.507059e+37
        %v3497 = vand.u32 %v1606, 2147483648
        %v3498 = vor.u32 1.1754944e-38, %v3497
        %v3499 = vsel %vm3496, %v3498, %v3494
        %v3500 = vmul.f32 1.0, %v3499
        %v3501 = vrcp.pop %v1607
        %v3502 = vmul.f32 %v1607, %v3501
        %v3503 = vsub.f32 1.0, %v3502
        %v3504 = vmul.f32 %v3501, %v3503
        %v3505 = vadd.f32 %v3501, %v3504
        %vm3506 = vweird.f32 %v1607
        %vm3507 = vweird.f32 %v3501
        %vm3508 = vmor %vm3506, %vm3507
        %v3509 = vsel %vm3508, %v3501, %v3505
        %v3510 = vand.u32 2147483647, %v1607
        %vm3511 = vcmp.eq.f32.partialorder %v3510, 8.507059e+37
        %v3512 = vand.u32 %v1607, 2147483648
        %v3513 = vor.u32 1.1754944e-38, %v3512
        %v3514 = vsel %vm3511, %v3513, %v3509
        %v3515 = vmul.f32 1.0, %v3514
        %v3516 = vrcp.pop %v1608
        %v3517 = vmul.f32 %v1608, %v3516
        %v3518 = vsub.f32 1.0, %v3517
        %v3519 = vmul.f32 %v3516, %v3518
        %v3520 = vadd.f32 %v3516, %v3519
        %vm3521 = vweird.f32 %v1608
        %vm3522 = vweird.f32 %v3516
        %vm3523 = vmor %vm3521, %vm3522
        %v3524 = vsel %vm3523, %v3516, %v3520
        %v3525 = vand.u32 2147483647, %v1608
        %vm3526 = vcmp.eq.f32.partialorder %v3525, 8.507059e+37
        %v3527 = vand.u32 %v1608, 2147483648
        %v3528 = vor.u32 1.1754944e-38, %v3527
        %v3529 = vsel %vm3526, %v3528, %v3524
        %v3530 = vmul.f32 1.0, %v3529
        %v3531 = vrcp.pop %v1609
        %v3532 = vmul.f32 %v1609, %v3531
        %v3533 = vsub.f32 1.0, %v3532
        %v3534 = vmul.f32 %v3531, %v3533
        %v3535 = vadd.f32 %v3531, %v3534
        %vm3536 = vweird.f32 %v1609
        %vm3537 = vweird.f32 %v3531
        %vm3538 = vmor %vm3536, %vm3537
        %v3539 = vsel %vm3538, %v3531, %v3535
        %v3540 = vand.u32 2147483647, %v1609
        %vm3541 = vcmp.eq.f32.partialorder %v3540, 8.507059e+37
        %v3542 = vand.u32 %v1609, 2147483648
        %v3543 = vor.u32 1.1754944e-38, %v3542
        %v3544 = vsel %vm3541, %v3543, %v3539
        %v3545 = vmul.f32 1.0, %v3544
        %v3546 = vrcp.pop %v1610
        %v3547 = vmul.f32 %v1610, %v3546
        %v3548 = vsub.f32 1.0, %v3547
        %v3549 = vmul.f32 %v3546, %v3548
        %v3550 = vadd.f32 %v3546, %v3549
        %vm3551 = vweird.f32 %v1610
        %vm3552 = vweird.f32 %v3546
        %vm3553 = vmor %vm3551, %vm3552
        %v3554 = vsel %vm3553, %v3546, %v3550
        %v3555 = vand.u32 2147483647, %v1610
        %vm3556 = vcmp.eq.f32.partialorder %v3555, 8.507059e+37
        %v3557 = vand.u32 %v1610, 2147483648
        %v3558 = vor.u32 1.1754944e-38, %v3557
        %v3559 = vsel %vm3556, %v3558, %v3554
        %v3560 = vmul.f32 1.0, %v3559
        %v3561 = vrcp.pop %v1611
        %v3562 = vmul.f32 %v1611, %v3561
        %v3563 = vsub.f32 1.0, %v3562
        %v3564 = vmul.f32 %v3561, %v3563
        %v3565 = vadd.f32 %v3561, %v3564
        %vm3566 = vweird.f32 %v1611
        %vm3567 = vweird.f32 %v3561
        %vm3568 = vmor %vm3566, %vm3567
        %v3569 = vsel %vm3568, %v3561, %v3565
        %v3570 = vand.u32 2147483647, %v1611
        %vm3571 = vcmp.eq.f32.partialorder %v3570, 8.507059e+37
        %v3572 = vand.u32 %v1611, 2147483648
        %v3573 = vor.u32 1.1754944e-38, %v3572
        %v3574 = vsel %vm3571, %v3573, %v3569
        %v3575 = vmul.f32 1.0, %v3574
        %v3576 = vrcp.pop %v1612
        %v3577 = vmul.f32 %v1612, %v3576
        %v3578 = vsub.f32 1.0, %v3577
        %v3579 = vmul.f32 %v3576, %v3578
        %v3580 = vadd.f32 %v3576, %v3579
        %vm3581 = vweird.f32 %v1612
        %vm3582 = vweird.f32 %v3576
        %vm3583 = vmor %vm3581, %vm3582
        %v3584 = vsel %vm3583, %v3576, %v3580
        %v3585 = vand.u32 2147483647, %v1612
        %vm3586 = vcmp.eq.f32.partialorder %v3585, 8.507059e+37
        %v3587 = vand.u32 %v1612, 2147483648
        %v3588 = vor.u32 1.1754944e-38, %v3587
        %v3589 = vsel %vm3586, %v3588, %v3584
        %v3590 = vmul.f32 1.0, %v3589
        %v3591 = vrcp.pop %v1613
        %v3592 = vmul.f32 %v1613, %v3591
        %v3593 = vsub.f32 1.0, %v3592
        %v3594 = vmul.f32 %v3591, %v3593
        %v3595 = vadd.f32 %v3591, %v3594
        %vm3596 = vweird.f32 %v1613
        %vm3597 = vweird.f32 %v3591
        %vm3598 = vmor %vm3596, %vm3597
        %v3599 = vsel %vm3598, %v3591, %v3595
        %v3600 = vand.u32 2147483647, %v1613
        %vm3601 = vcmp.eq.f32.partialorder %v3600, 8.507059e+37
        %v3602 = vand.u32 %v1613, 2147483648
        %v3603 = vor.u32 1.1754944e-38, %v3602
        %v3604 = vsel %vm3601, %v3603, %v3599
        %v3605 = vmul.f32 1.0, %v3604
        %v3606 = vrcp.pop %v1614
        %v3607 = vmul.f32 %v1614, %v3606
        %v3608 = vsub.f32 1.0, %v3607
        %v3609 = vmul.f32 %v3606, %v3608
        %v3610 = vadd.f32 %v3606, %v3609
        %vm3611 = vweird.f32 %v1614
        %vm3612 = vweird.f32 %v3606
        %vm3613 = vmor %vm3611, %vm3612
        %v3614 = vsel %vm3613, %v3606, %v3610
        %v3615 = vand.u32 2147483647, %v1614
        %vm3616 = vcmp.eq.f32.partialorder %v3615, 8.507059e+37
        %v3617 = vand.u32 %v1614, 2147483648
        %v3618 = vor.u32 1.1754944e-38, %v3617
        %v3619 = vsel %vm3616, %v3618, %v3614
        %v3620 = vmul.f32 1.0, %v3619
        %v3621 = vrcp.pop %v1615
        %v3622 = vmul.f32 %v1615, %v3621
        %v3623 = vsub.f32 1.0, %v3622
        %v3624 = vmul.f32 %v3621, %v3623
        %v3625 = vadd.f32 %v3621, %v3624
        %vm3626 = vweird.f32 %v1615
        %vm3627 = vweird.f32 %v3621
        %vm3628 = vmor %vm3626, %vm3627
        %v3629 = vsel %vm3628, %v3621, %v3625
        %v3630 = vand.u32 2147483647, %v1615
        %vm3631 = vcmp.eq.f32.partialorder %v3630, 8.507059e+37
        %v3632 = vand.u32 %v1615, 2147483648
        %v3633 = vor.u32 1.1754944e-38, %v3632
        %v3634 = vsel %vm3631, %v3633, %v3629
        %v3635 = vmul.f32 1.0, %v3634
        %v3636 = vrcp.pop %v1616
        %v3637 = vmul.f32 %v1616, %v3636
        %v3638 = vsub.f32 1.0, %v3637
        %v3639 = vmul.f32 %v3636, %v3638
        %v3640 = vadd.f32 %v3636, %v3639
        %vm3641 = vweird.f32 %v1616
        %vm3642 = vweird.f32 %v3636
        %vm3643 = vmor %vm3641, %vm3642
        %v3644 = vsel %vm3643, %v3636, %v3640
        %v3645 = vand.u32 2147483647, %v1616
        %vm3646 = vcmp.eq.f32.partialorder %v3645, 8.507059e+37
        %v3647 = vand.u32 %v1616, 2147483648
        %v3648 = vor.u32 1.1754944e-38, %v3647
        %v3649 = vsel %vm3646, %v3648, %v3644
        %v3650 = vmul.f32 1.0, %v3649
        %v3651 = vrcp.pop %v1617
        %v3652 = vmul.f32 %v1617, %v3651
        %v3653 = vsub.f32 1.0, %v3652
        %v3654 = vmul.f32 %v3651, %v3653
        %v3655 = vadd.f32 %v3651, %v3654
        %vm3656 = vweird.f32 %v1617
        %vm3657 = vweird.f32 %v3651
        %vm3658 = vmor %vm3656, %vm3657
        %v3659 = vsel %vm3658, %v3651, %v3655
        %v3660 = vand.u32 2147483647, %v1617
        %vm3661 = vcmp.eq.f32.partialorder %v3660, 8.507059e+37
        %v3662 = vand.u32 %v1617, 2147483648
        %v3663 = vor.u32 1.1754944e-38, %v3662
        %v3664 = vsel %vm3661, %v3663, %v3659
        %v3665 = vmul.f32 1.0, %v3664
        %v3666 = vrcp.pop %v1618
        %v3667 = vmul.f32 %v1618, %v3666
        %v3668 = vsub.f32 1.0, %v3667
        %v3669 = vmul.f32 %v3666, %v3668
        %v3670 = vadd.f32 %v3666, %v3669
        %vm3671 = vweird.f32 %v1618
        %vm3672 = vweird.f32 %v3666
        %vm3673 = vmor %vm3671, %vm3672
        %v3674 = vsel %vm3673, %v3666, %v3670
        %v3675 = vand.u32 2147483647, %v1618
        %vm3676 = vcmp.eq.f32.partialorder %v3675, 8.507059e+37
        %v3677 = vand.u32 %v1618, 2147483648
        %v3678 = vor.u32 1.1754944e-38, %v3677
        %v3679 = vsel %vm3676, %v3678, %v3674
        %v3680 = vmul.f32 1.0, %v3679
        %v3681 = vrcp.pop %v1619
        %v3682 = vmul.f32 %v1619, %v3681
        %v3683 = vsub.f32 1.0, %v3682
        %v3684 = vmul.f32 %v3681, %v3683
        %v3685 = vadd.f32 %v3681, %v3684
        %vm3686 = vweird.f32 %v1619
        %vm3687 = vweird.f32 %v3681
        %vm3688 = vmor %vm3686, %vm3687
        %v3689 = vsel %vm3688, %v3681, %v3685
        %v3690 = vand.u32 2147483647, %v1619
        %vm3691 = vcmp.eq.f32.partialorder %v3690, 8.507059e+37
        %v3692 = vand.u32 %v1619, 2147483648
        %v3693 = vor.u32 1.1754944e-38, %v3692
        %v3694 = vsel %vm3691, %v3693, %v3689
        %v3695 = vmul.f32 1.0, %v3694
        %v3696 = vrcp.pop %v1620
        %v3697 = vmul.f32 %v1620, %v3696
        %v3698 = vsub.f32 1.0, %v3697
        %v3699 = vmul.f32 %v3696, %v3698
        %v3700 = vadd.f32 %v3696, %v3699
        %vm3701 = vweird.f32 %v1620
        %vm3702 = vweird.f32 %v3696
        %vm3703 = vmor %vm3701, %vm3702
        %v3704 = vsel %vm3703, %v3696, %v3700
        %v3705 = vand.u32 2147483647, %v1620
        %vm3706 = vcmp.eq.f32.partialorder %v3705, 8.507059e+37
        %v3707 = vand.u32 %v1620, 2147483648
        %v3708 = vor.u32 1.1754944e-38, %v3707
        %v3709 = vsel %vm3706, %v3708, %v3704
        %v3710 = vmul.f32 1.0, %v3709
        %v3711 = vrcp.pop %v1621
        %v3712 = vmul.f32 %v1621, %v3711
        %v3713 = vsub.f32 1.0, %v3712
        %v3714 = vmul.f32 %v3711, %v3713
        %v3715 = vadd.f32 %v3711, %v3714
        %vm3716 = vweird.f32 %v1621
        %vm3717 = vweird.f32 %v3711
        %vm3718 = vmor %vm3716, %vm3717
        %v3719 = vsel %vm3718, %v3711, %v3715
        %v3720 = vand.u32 2147483647, %v1621
        %vm3721 = vcmp.eq.f32.partialorder %v3720, 8.507059e+37
        %v3722 = vand.u32 %v1621, 2147483648
        %v3723 = vor.u32 1.1754944e-38, %v3722
        %v3724 = vsel %vm3721, %v3723, %v3719
        %v3725 = vmul.f32 1.0, %v3724
        %v3726 = vrcp.pop %v1622
        %v3727 = vmul.f32 %v1622, %v3726
        %v3728 = vsub.f32 1.0, %v3727
        %v3729 = vmul.f32 %v3726, %v3728
        %v3730 = vadd.f32 %v3726, %v3729
        %vm3731 = vweird.f32 %v1622
        %vm3732 = vweird.f32 %v3726
        %vm3733 = vmor %vm3731, %vm3732
        %v3734 = vsel %vm3733, %v3726, %v3730
        %v3735 = vand.u32 2147483647, %v1622
        %vm3736 = vcmp.eq.f32.partialorder %v3735, 8.507059e+37
        %v3737 = vand.u32 %v1622, 2147483648
        %v3738 = vor.u32 1.1754944e-38, %v3737
        %v3739 = vsel %vm3736, %v3738, %v3734
        %v3740 = vmul.f32 1.0, %v3739
        %v3741 = vrcp.pop %v1623
        %v3742 = vmul.f32 %v1623, %v3741
        %v3743 = vsub.f32 1.0, %v3742
        %v3744 = vmul.f32 %v3741, %v3743
        %v3745 = vadd.f32 %v3741, %v3744
        %vm3746 = vweird.f32 %v1623
        %vm3747 = vweird.f32 %v3741
        %vm3748 = vmor %vm3746, %vm3747
        %v3749 = vsel %vm3748, %v3741, %v3745
        %v3750 = vand.u32 2147483647, %v1623
        %vm3751 = vcmp.eq.f32.partialorder %v3750, 8.507059e+37
        %v3752 = vand.u32 %v1623, 2147483648
        %v3753 = vor.u32 1.1754944e-38, %v3752
        %v3754 = vsel %vm3751, %v3753, %v3749
        %v3755 = vmul.f32 1.0, %v3754
        %v3756 = vrcp.pop %v1624
        %v3757 = vmul.f32 %v1624, %v3756
        %v3758 = vsub.f32 1.0, %v3757
        %v3759 = vmul.f32 %v3756, %v3758
        %v3760 = vadd.f32 %v3756, %v3759
        %vm3761 = vweird.f32 %v1624
        %vm3762 = vweird.f32 %v3756
        %vm3763 = vmor %vm3761, %vm3762
        %v3764 = vsel %vm3763, %v3756, %v3760
        %v3765 = vand.u32 2147483647, %v1624
        %vm3766 = vcmp.eq.f32.partialorder %v3765, 8.507059e+37
        %v3767 = vand.u32 %v1624, 2147483648
        %v3768 = vor.u32 1.1754944e-38, %v3767
        %v3769 = vsel %vm3766, %v3768, %v3764
        %v3770 = vmul.f32 1.0, %v3769
        %v3771 = vrcp.pop %v1625
        %v3772 = vmul.f32 %v1625, %v3771
        %v3773 = vsub.f32 1.0, %v3772
        %v3774 = vmul.f32 %v3771, %v3773
        %v3775 = vadd.f32 %v3771, %v3774
        %vm3776 = vweird.f32 %v1625
        %vm3777 = vweird.f32 %v3771
        %vm3778 = vmor %vm3776, %vm3777
        %v3779 = vsel %vm3778, %v3771, %v3775
        %v3780 = vand.u32 2147483647, %v1625
        %vm3781 = vcmp.eq.f32.partialorder %v3780, 8.507059e+37
        %v3782 = vand.u32 %v1625, 2147483648
        %v3783 = vor.u32 1.1754944e-38, %v3782
        %v3784 = vsel %vm3781, %v3783, %v3779
        %v3785 = vmul.f32 1.0, %v3784
        %v3786 = vrcp.pop %v1626
        %v3787 = vmul.f32 %v1626, %v3786
        %v3788 = vsub.f32 1.0, %v3787
        %v3789 = vmul.f32 %v3786, %v3788
        %v3790 = vadd.f32 %v3786, %v3789
        %vm3791 = vweird.f32 %v1626
        %vm3792 = vweird.f32 %v3786
        %vm3793 = vmor %vm3791, %vm3792
        %v3794 = vsel %vm3793, %v3786, %v3790
        %v3795 = vand.u32 2147483647, %v1626
        %vm3796 = vcmp.eq.f32.partialorder %v3795, 8.507059e+37
        %v3797 = vand.u32 %v1626, 2147483648
        %v3798 = vor.u32 1.1754944e-38, %v3797
        %v3799 = vsel %vm3796, %v3798, %v3794
        %v3800 = vmul.f32 1.0, %v3799
        %v3801 = vrcp.pop %v1627
        %v3802 = vmul.f32 %v1627, %v3801
        %v3803 = vsub.f32 1.0, %v3802
        %v3804 = vmul.f32 %v3801, %v3803
        %v3805 = vadd.f32 %v3801, %v3804
        %vm3806 = vweird.f32 %v1627
        %vm3807 = vweird.f32 %v3801
        %vm3808 = vmor %vm3806, %vm3807
        %v3809 = vsel %vm3808, %v3801, %v3805
        %v3810 = vand.u32 2147483647, %v1627
        %vm3811 = vcmp.eq.f32.partialorder %v3810, 8.507059e+37
        %v3812 = vand.u32 %v1627, 2147483648
        %v3813 = vor.u32 1.1754944e-38, %v3812
        %v3814 = vsel %vm3811, %v3813, %v3809
        %v3815 = vmul.f32 1.0, %v3814
        %v3816 = vrcp.pop %v1628
        %v3817 = vmul.f32 %v1628, %v3816
        %v3818 = vsub.f32 1.0, %v3817
        %v3819 = vmul.f32 %v3816, %v3818
        %v3820 = vadd.f32 %v3816, %v3819
        %vm3821 = vweird.f32 %v1628
        %vm3822 = vweird.f32 %v3816
        %vm3823 = vmor %vm3821, %vm3822
        %v3824 = vsel %vm3823, %v3816, %v3820
        %v3825 = vand.u32 2147483647, %v1628
        %vm3826 = vcmp.eq.f32.partialorder %v3825, 8.507059e+37
        %v3827 = vand.u32 %v1628, 2147483648
        %v3828 = vor.u32 1.1754944e-38, %v3827
        %v3829 = vsel %vm3826, %v3828, %v3824
        %v3830 = vmul.f32 1.0, %v3829
        %v3831 = vrcp.pop %v1629
        %v3832 = vmul.f32 %v1629, %v3831
        %v3833 = vsub.f32 1.0, %v3832
        %v3834 = vmul.f32 %v3831, %v3833
        %v3835 = vadd.f32 %v3831, %v3834
        %vm3836 = vweird.f32 %v1629
        %vm3837 = vweird.f32 %v3831
        %vm3838 = vmor %vm3836, %vm3837
        %v3839 = vsel %vm3838, %v3831, %v3835
        %v3840 = vand.u32 2147483647, %v1629
        %vm3841 = vcmp.eq.f32.partialorder %v3840, 8.507059e+37
        %v3842 = vand.u32 %v1629, 2147483648
        %v3843 = vor.u32 1.1754944e-38, %v3842
        %v3844 = vsel %vm3841, %v3843, %v3839
        %v3845 = vmul.f32 1.0, %v3844
        %v3846 = vrcp.pop %v1630
        %v3847 = vmul.f32 %v1630, %v3846
        %v3848 = vsub.f32 1.0, %v3847
        %v3849 = vmul.f32 %v3846, %v3848
        %v3850 = vadd.f32 %v3846, %v3849
        %vm3851 = vweird.f32 %v1630
        %vm3852 = vweird.f32 %v3846
        %vm3853 = vmor %vm3851, %vm3852
        %v3854 = vsel %vm3853, %v3846, %v3850
        %v3855 = vand.u32 2147483647, %v1630
        %vm3856 = vcmp.eq.f32.partialorder %v3855, 8.507059e+37
        %v3857 = vand.u32 %v1630, 2147483648
        %v3858 = vor.u32 1.1754944e-38, %v3857
        %v3859 = vsel %vm3856, %v3858, %v3854
        %v3860 = vmul.f32 1.0, %v3859
        %v3861 = vrcp.pop %v1631
        %v3862 = vmul.f32 %v1631, %v3861
        %v3863 = vsub.f32 1.0, %v3862
        %v3864 = vmul.f32 %v3861, %v3863
        %v3865 = vadd.f32 %v3861, %v3864
        %vm3866 = vweird.f32 %v1631
        %vm3867 = vweird.f32 %v3861
        %vm3868 = vmor %vm3866, %vm3867
        %v3869 = vsel %vm3868, %v3861, %v3865
        %v3870 = vand.u32 2147483647, %v1631
        %vm3871 = vcmp.eq.f32.partialorder %v3870, 8.507059e+37
        %v3872 = vand.u32 %v1631, 2147483648
        %v3873 = vor.u32 1.1754944e-38, %v3872
        %v3874 = vsel %vm3871, %v3873, %v3869
        %v3875 = vmul.f32 1.0, %v3874
        %v3876 = vrcp.pop %v1632
        %v3877 = vmul.f32 %v1632, %v3876
        %v3878 = vsub.f32 1.0, %v3877
        %v3879 = vmul.f32 %v3876, %v3878
        %v3880 = vadd.f32 %v3876, %v3879
        %vm3881 = vweird.f32 %v1632
        %vm3882 = vweird.f32 %v3876
        %vm3883 = vmor %vm3881, %vm3882
        %v3884 = vsel %vm3883, %v3876, %v3880
        %v3885 = vand.u32 2147483647, %v1632
        %vm3886 = vcmp.eq.f32.partialorder %v3885, 8.507059e+37
        %v3887 = vand.u32 %v1632, 2147483648
        %v3888 = vor.u32 1.1754944e-38, %v3887
        %v3889 = vsel %vm3886, %v3888, %v3884
        %v3890 = vmul.f32 1.0, %v3889
        %v3891 = vrcp.pop %v1633
        %v3892 = vmul.f32 %v1633, %v3891
        %v3893 = vsub.f32 1.0, %v3892
        %v3894 = vmul.f32 %v3891, %v3893
        %v3895 = vadd.f32 %v3891, %v3894
        %vm3896 = vweird.f32 %v1633
        %vm3897 = vweird.f32 %v3891
        %vm3898 = vmor %vm3896, %vm3897
        %v3899 = vsel %vm3898, %v3891, %v3895
        %v3900 = vand.u32 2147483647, %v1633
        %vm3901 = vcmp.eq.f32.partialorder %v3900, 8.507059e+37
        %v3902 = vand.u32 %v1633, 2147483648
        %v3903 = vor.u32 1.1754944e-38, %v3902
        %v3904 = vsel %vm3901, %v3903, %v3899
        %v3905 = vmul.f32 1.0, %v3904
        %v3906 = vrcp.pop %v1634
        %v3907 = vmul.f32 %v1634, %v3906
        %v3908 = vsub.f32 1.0, %v3907
        %v3909 = vmul.f32 %v3906, %v3908
        %v3910 = vadd.f32 %v3906, %v3909
        %vm3911 = vweird.f32 %v1634
        %vm3912 = vweird.f32 %v3906
        %vm3913 = vmor %vm3911, %vm3912
        %v3914 = vsel %vm3913, %v3906, %v3910
        %v3915 = vand.u32 2147483647, %v1634
        %vm3916 = vcmp.eq.f32.partialorder %v3915, 8.507059e+37
        %v3917 = vand.u32 %v1634, 2147483648
        %v3918 = vor.u32 1.1754944e-38, %v3917
        %v3919 = vsel %vm3916, %v3918, %v3914
        %v3920 = vmul.f32 1.0, %v3919
        %v3921 = vrcp.pop %v1635
        %v3922 = vmul.f32 %v1635, %v3921
        %v3923 = vsub.f32 1.0, %v3922
        %v3924 = vmul.f32 %v3921, %v3923
        %v3925 = vadd.f32 %v3921, %v3924
        %vm3926 = vweird.f32 %v1635
        %vm3927 = vweird.f32 %v3921
        %vm3928 = vmor %vm3926, %vm3927
        %v3929 = vsel %vm3928, %v3921, %v3925
        %v3930 = vand.u32 2147483647, %v1635
        %vm3931 = vcmp.eq.f32.partialorder %v3930, 8.507059e+37
        %v3932 = vand.u32 %v1635, 2147483648
        %v3933 = vor.u32 1.1754944e-38, %v3932
        %v3934 = vsel %vm3931, %v3933, %v3929
        %v3935 = vmul.f32 1.0, %v3934
        %v3936 = vrcp.pop %v1636
        %v3937 = vmul.f32 %v1636, %v3936
        %v3938 = vsub.f32 1.0, %v3937
        %v3939 = vmul.f32 %v3936, %v3938
        %v3940 = vadd.f32 %v3936, %v3939
        %vm3941 = vweird.f32 %v1636
        %vm3942 = vweird.f32 %v3936
        %vm3943 = vmor %vm3941, %vm3942
        %v3944 = vsel %vm3943, %v3936, %v3940
        %v3945 = vand.u32 2147483647, %v1636
        %vm3946 = vcmp.eq.f32.partialorder %v3945, 8.507059e+37
        %v3947 = vand.u32 %v1636, 2147483648
        %v3948 = vor.u32 1.1754944e-38, %v3947
        %v3949 = vsel %vm3946, %v3948, %v3944
        %v3950 = vmul.f32 1.0, %v3949
        %v3951 = vrcp.pop %v1637
        %v3952 = vmul.f32 %v1637, %v3951
        %v3953 = vsub.f32 1.0, %v3952
        %v3954 = vmul.f32 %v3951, %v3953
        %v3955 = vadd.f32 %v3951, %v3954
        %vm3956 = vweird.f32 %v1637
        %vm3957 = vweird.f32 %v3951
        %vm3958 = vmor %vm3956, %vm3957
        %v3959 = vsel %vm3958, %v3951, %v3955
        %v3960 = vand.u32 2147483647, %v1637
        %vm3961 = vcmp.eq.f32.partialorder %v3960, 8.507059e+37
        %v3962 = vand.u32 %v1637, 2147483648
        %v3963 = vor.u32 1.1754944e-38, %v3962
        %v3964 = vsel %vm3961, %v3963, %v3959
        %v3965 = vmul.f32 1.0, %v3964
        %v3966 = vrcp.pop %v1638
        %v3967 = vmul.f32 %v1638, %v3966
        %v3968 = vsub.f32 1.0, %v3967
        %v3969 = vmul.f32 %v3966, %v3968
        %v3970 = vadd.f32 %v3966, %v3969
        %vm3971 = vweird.f32 %v1638
        %vm3972 = vweird.f32 %v3966
        %vm3973 = vmor %vm3971, %vm3972
        %v3974 = vsel %vm3973, %v3966, %v3970
        %v3975 = vand.u32 2147483647, %v1638
        %vm3976 = vcmp.eq.f32.partialorder %v3975, 8.507059e+37
        %v3977 = vand.u32 %v1638, 2147483648
        %v3978 = vor.u32 1.1754944e-38, %v3977
        %v3979 = vsel %vm3976, %v3978, %v3974
        %v3980 = vmul.f32 1.0, %v3979
        %v3981 = vrcp.pop %v1639
        %v3982 = vmul.f32 %v1639, %v3981
        %v3983 = vsub.f32 1.0, %v3982
        %v3984 = vmul.f32 %v3981, %v3983
        %v3985 = vadd.f32 %v3981, %v3984
        %vm3986 = vweird.f32 %v1639
        %vm3987 = vweird.f32 %v3981
        %vm3988 = vmor %vm3986, %vm3987
        %v3989 = vsel %vm3988, %v3981, %v3985
        %v3990 = vand.u32 2147483647, %v1639
        %vm3991 = vcmp.eq.f32.partialorder %v3990, 8.507059e+37
        %v3992 = vand.u32 %v1639, 2147483648
        %v3993 = vor.u32 1.1754944e-38, %v3992
        %v3994 = vsel %vm3991, %v3993, %v3989
        %v3995 = vmul.f32 1.0, %v3994
        %v3996 = vrcp.pop %v1640
        %v3997 = vmul.f32 %v1640, %v3996
        %v3998 = vsub.f32 1.0, %v3997
        %v3999 = vmul.f32 %v3996, %v3998
        %v4000 = vadd.f32 %v3996, %v3999
        %vm4001 = vweird.f32 %v1640
        %vm4002 = vweird.f32 %v3996
        %vm4003 = vmor %vm4001, %vm4002
        %v4004 = vsel %vm4003, %v3996, %v4000
        %v4005 = vand.u32 2147483647, %v1640
        %vm4006 = vcmp.eq.f32.partialorder %v4005, 8.507059e+37
        %v4007 = vand.u32 %v1640, 2147483648
        %v4008 = vor.u32 1.1754944e-38, %v4007
        %v4009 = vsel %vm4006, %v4008, %v4004
        %v4010 = vmul.f32 1.0, %v4009
        %v4011 = vrcp.pop %v1641
        %v4012 = vmul.f32 %v1641, %v4011
        %v4013 = vsub.f32 1.0, %v4012
        %v4014 = vmul.f32 %v4011, %v4013
        %v4015 = vadd.f32 %v4011, %v4014
        %vm4016 = vweird.f32 %v1641
        %vm4017 = vweird.f32 %v4011
        %vm4018 = vmor %vm4016, %vm4017
        %v4019 = vsel %vm4018, %v4011, %v4015
        %v4020 = vand.u32 2147483647, %v1641
        %vm4021 = vcmp.eq.f32.partialorder %v4020, 8.507059e+37
        %v4022 = vand.u32 %v1641, 2147483648
        %v4023 = vor.u32 1.1754944e-38, %v4022
        %v4024 = vsel %vm4021, %v4023, %v4019
        %v4025 = vmul.f32 1.0, %v4024
        %v4026 = vrcp.pop %v1642
        %v4027 = vmul.f32 %v1642, %v4026
        %v4028 = vsub.f32 1.0, %v4027
        %v4029 = vmul.f32 %v4026, %v4028
        %v4030 = vadd.f32 %v4026, %v4029
        %vm4031 = vweird.f32 %v1642
        %vm4032 = vweird.f32 %v4026
        %vm4033 = vmor %vm4031, %vm4032
        %v4034 = vsel %vm4033, %v4026, %v4030
        %v4035 = vand.u32 2147483647, %v1642
        %vm4036 = vcmp.eq.f32.partialorder %v4035, 8.507059e+37
        %v4037 = vand.u32 %v1642, 2147483648
        %v4038 = vor.u32 1.1754944e-38, %v4037
        %v4039 = vsel %vm4036, %v4038, %v4034
        %v4040 = vmul.f32 1.0, %v4039
        %v4041 = vrcp.pop %v1643
        %v4042 = vmul.f32 %v1643, %v4041
        %v4043 = vsub.f32 1.0, %v4042
        %v4044 = vmul.f32 %v4041, %v4043
        %v4045 = vadd.f32 %v4041, %v4044
        %vm4046 = vweird.f32 %v1643
        %vm4047 = vweird.f32 %v4041
        %vm4048 = vmor %vm4046, %vm4047
        %v4049 = vsel %vm4048, %v4041, %v4045
        %v4050 = vand.u32 2147483647, %v1643
        %vm4051 = vcmp.eq.f32.partialorder %v4050, 8.507059e+37
        %v4052 = vand.u32 %v1643, 2147483648
        %v4053 = vor.u32 1.1754944e-38, %v4052
        %v4054 = vsel %vm4051, %v4053, %v4049
        %v4055 = vmul.f32 1.0, %v4054
        %v4056 = vrcp.pop %v1644
        %v4057 = vmul.f32 %v1644, %v4056
        %v4058 = vsub.f32 1.0, %v4057
        %v4059 = vmul.f32 %v4056, %v4058
        %v4060 = vadd.f32 %v4056, %v4059
        %vm4061 = vweird.f32 %v1644
        %vm4062 = vweird.f32 %v4056
        %vm4063 = vmor %vm4061, %vm4062
        %v4064 = vsel %vm4063, %v4056, %v4060
        %v4065 = vand.u32 2147483647, %v1644
        %vm4066 = vcmp.eq.f32.partialorder %v4065, 8.507059e+37
        %v4067 = vand.u32 %v1644, 2147483648
        %v4068 = vor.u32 1.1754944e-38, %v4067
        %v4069 = vsel %vm4066, %v4068, %v4064
        %v4070 = vmul.f32 1.0, %v4069
        %v4071 = vrcp.pop %v1645
        %v4072 = vmul.f32 %v1645, %v4071
        %v4073 = vsub.f32 1.0, %v4072
        %v4074 = vmul.f32 %v4071, %v4073
        %v4075 = vadd.f32 %v4071, %v4074
        %vm4076 = vweird.f32 %v1645
        %vm4077 = vweird.f32 %v4071
        %vm4078 = vmor %vm4076, %vm4077
        %v4079 = vsel %vm4078, %v4071, %v4075
        %v4080 = vand.u32 2147483647, %v1645
        %vm4081 = vcmp.eq.f32.partialorder %v4080, 8.507059e+37
        %v4082 = vand.u32 %v1645, 2147483648
        %v4083 = vor.u32 1.1754944e-38, %v4082
        %v4084 = vsel %vm4081, %v4083, %v4079
        %v4085 = vmul.f32 1.0, %v4084
        %v4086 = vrcp.pop %v1646
        %v4087 = vmul.f32 %v1646, %v4086
        %v4088 = vsub.f32 1.0, %v4087
        %v4089 = vmul.f32 %v4086, %v4088
        %v4090 = vadd.f32 %v4086, %v4089
        %vm4091 = vweird.f32 %v1646
        %vm4092 = vweird.f32 %v4086
        %vm4093 = vmor %vm4091, %vm4092
        %v4094 = vsel %vm4093, %v4086, %v4090
        %v4095 = vand.u32 2147483647, %v1646
        %vm4096 = vcmp.eq.f32.partialorder %v4095, 8.507059e+37
        %v4097 = vand.u32 %v1646, 2147483648
        %v4098 = vor.u32 1.1754944e-38, %v4097
        %v4099 = vsel %vm4096, %v4098, %v4094
        %v4100 = vmul.f32 1.0, %v4099
        %v4101 = vrcp.pop %v1647
        %v4102 = vmul.f32 %v1647, %v4101
        %v4103 = vsub.f32 1.0, %v4102
        %v4104 = vmul.f32 %v4101, %v4103
        %v4105 = vadd.f32 %v4101, %v4104
        %vm4106 = vweird.f32 %v1647
        %vm4107 = vweird.f32 %v4101
        %vm4108 = vmor %vm4106, %vm4107
        %v4109 = vsel %vm4108, %v4101, %v4105
        %v4110 = vand.u32 2147483647, %v1647
        %vm4111 = vcmp.eq.f32.partialorder %v4110, 8.507059e+37
        %v4112 = vand.u32 %v1647, 2147483648
        %v4113 = vor.u32 1.1754944e-38, %v4112
        %v4114 = vsel %vm4111, %v4113, %v4109
        %v4115 = vmul.f32 1.0, %v4114
        %v4116 = vrcp.pop %v1648
        %v4117 = vmul.f32 %v1648, %v4116
        %v4118 = vsub.f32 1.0, %v4117
        %v4119 = vmul.f32 %v4116, %v4118
        %v4120 = vadd.f32 %v4116, %v4119
        %vm4121 = vweird.f32 %v1648
        %vm4122 = vweird.f32 %v4116
        %vm4123 = vmor %vm4121, %vm4122
        %v4124 = vsel %vm4123, %v4116, %v4120
        %v4125 = vand.u32 2147483647, %v1648
        %vm4126 = vcmp.eq.f32.partialorder %v4125, 8.507059e+37
        %v4127 = vand.u32 %v1648, 2147483648
        %v4128 = vor.u32 1.1754944e-38, %v4127
        %v4129 = vsel %vm4126, %v4128, %v4124
        %v4130 = vmul.f32 1.0, %v4129
        %v4131 = vrcp.pop %v1649
        %v4132 = vmul.f32 %v1649, %v4131
        %v4133 = vsub.f32 1.0, %v4132
        %v4134 = vmul.f32 %v4131, %v4133
        %v4135 = vadd.f32 %v4131, %v4134
        %vm4136 = vweird.f32 %v1649
        %vm4137 = vweird.f32 %v4131
        %vm4138 = vmor %vm4136, %vm4137
        %v4139 = vsel %vm4138, %v4131, %v4135
        %v4140 = vand.u32 2147483647, %v1649
        %vm4141 = vcmp.eq.f32.partialorder %v4140, 8.507059e+37
        %v4142 = vand.u32 %v1649, 2147483648
        %v4143 = vor.u32 1.1754944e-38, %v4142
        %v4144 = vsel %vm4141, %v4143, %v4139
        %v4145 = vmul.f32 1.0, %v4144
        %v4146 = vrcp.pop %v1650
        %v4147 = vmul.f32 %v1650, %v4146
        %v4148 = vsub.f32 1.0, %v4147
        %v4149 = vmul.f32 %v4146, %v4148
        %v4150 = vadd.f32 %v4146, %v4149
        %vm4151 = vweird.f32 %v1650
        %vm4152 = vweird.f32 %v4146
        %vm4153 = vmor %vm4151, %vm4152
        %v4154 = vsel %vm4153, %v4146, %v4150
        %v4155 = vand.u32 2147483647, %v1650
        %vm4156 = vcmp.eq.f32.partialorder %v4155, 8.507059e+37
        %v4157 = vand.u32 %v1650, 2147483648
        %v4158 = vor.u32 1.1754944e-38, %v4157
        %v4159 = vsel %vm4156, %v4158, %v4154
        %v4160 = vmul.f32 1.0, %v4159
        %v4161 = vrcp.pop %v1651
        %v4162 = vmul.f32 %v1651, %v4161
        %v4163 = vsub.f32 1.0, %v4162
        %v4164 = vmul.f32 %v4161, %v4163
        %v4165 = vadd.f32 %v4161, %v4164
        %vm4166 = vweird.f32 %v1651
        %vm4167 = vweird.f32 %v4161
        %vm4168 = vmor %vm4166, %vm4167
        %v4169 = vsel %vm4168, %v4161, %v4165
        %v4170 = vand.u32 2147483647, %v1651
        %vm4171 = vcmp.eq.f32.partialorder %v4170, 8.507059e+37
        %v4172 = vand.u32 %v1651, 2147483648
        %v4173 = vor.u32 1.1754944e-38, %v4172
        %v4174 = vsel %vm4171, %v4173, %v4169
        %v4175 = vmul.f32 1.0, %v4174
        %v4176 = vrcp.pop %v1652
        %v4177 = vmul.f32 %v1652, %v4176
        %v4178 = vsub.f32 1.0, %v4177
        %v4179 = vmul.f32 %v4176, %v4178
        %v4180 = vadd.f32 %v4176, %v4179
        %vm4181 = vweird.f32 %v1652
        %vm4182 = vweird.f32 %v4176
        %vm4183 = vmor %vm4181, %vm4182
        %v4184 = vsel %vm4183, %v4176, %v4180
        %v4185 = vand.u32 2147483647, %v1652
        %vm4186 = vcmp.eq.f32.partialorder %v4185, 8.507059e+37
        %v4187 = vand.u32 %v1652, 2147483648
        %v4188 = vor.u32 1.1754944e-38, %v4187
        %v4189 = vsel %vm4186, %v4188, %v4184
        %v4190 = vmul.f32 1.0, %v4189
        %v4191 = vrcp.pop %v1653
        %v4192 = vmul.f32 %v1653, %v4191
        %v4193 = vsub.f32 1.0, %v4192
        %v4194 = vmul.f32 %v4191, %v4193
        %v4195 = vadd.f32 %v4191, %v4194
        %vm4196 = vweird.f32 %v1653
        %vm4197 = vweird.f32 %v4191
        %vm4198 = vmor %vm4196, %vm4197
        %v4199 = vsel %vm4198, %v4191, %v4195
        %v4200 = vand.u32 2147483647, %v1653
        %vm4201 = vcmp.eq.f32.partialorder %v4200, 8.507059e+37
        %v4202 = vand.u32 %v1653, 2147483648
        %v4203 = vor.u32 1.1754944e-38, %v4202
        %v4204 = vsel %vm4201, %v4203, %v4199
        %v4205 = vmul.f32 1.0, %v4204
        %v4206 = vrcp.pop %v1654
        %v4207 = vmul.f32 %v1654, %v4206
        %v4208 = vsub.f32 1.0, %v4207
        %v4209 = vmul.f32 %v4206, %v4208
        %v4210 = vadd.f32 %v4206, %v4209
        %vm4211 = vweird.f32 %v1654
        %vm4212 = vweird.f32 %v4206
        %vm4213 = vmor %vm4211, %vm4212
        %v4214 = vsel %vm4213, %v4206, %v4210
        %v4215 = vand.u32 2147483647, %v1654
        %vm4216 = vcmp.eq.f32.partialorder %v4215, 8.507059e+37
        %v4217 = vand.u32 %v1654, 2147483648
        %v4218 = vor.u32 1.1754944e-38, %v4217
        %v4219 = vsel %vm4216, %v4218, %v4214
        %v4220 = vmul.f32 1.0, %v4219
        %v4221 = vrcp.pop %v1655
        %v4222 = vmul.f32 %v1655, %v4221
        %v4223 = vsub.f32 1.0, %v4222
        %v4224 = vmul.f32 %v4221, %v4223
        %v4225 = vadd.f32 %v4221, %v4224
        %vm4226 = vweird.f32 %v1655
        %vm4227 = vweird.f32 %v4221
        %vm4228 = vmor %vm4226, %vm4227
        %v4229 = vsel %vm4228, %v4221, %v4225
        %v4230 = vand.u32 2147483647, %v1655
        %vm4231 = vcmp.eq.f32.partialorder %v4230, 8.507059e+37
        %v4232 = vand.u32 %v1655, 2147483648
        %v4233 = vor.u32 1.1754944e-38, %v4232
        %v4234 = vsel %vm4231, %v4233, %v4229
        %v4235 = vmul.f32 1.0, %v4234
        %v4236 = vrcp.pop %v1656
        %v4237 = vmul.f32 %v1656, %v4236
        %v4238 = vsub.f32 1.0, %v4237
        %v4239 = vmul.f32 %v4236, %v4238
        %v4240 = vadd.f32 %v4236, %v4239
        %vm4241 = vweird.f32 %v1656
        %vm4242 = vweird.f32 %v4236
        %vm4243 = vmor %vm4241, %vm4242
        %v4244 = vsel %vm4243, %v4236, %v4240
        %v4245 = vand.u32 2147483647, %v1656
        %vm4246 = vcmp.eq.f32.partialorder %v4245, 8.507059e+37
        %v4247 = vand.u32 %v1656, 2147483648
        %v4248 = vor.u32 1.1754944e-38, %v4247
        %v4249 = vsel %vm4246, %v4248, %v4244
        %v4250 = vmul.f32 1.0, %v4249
        %v4251 = vrcp.pop %v1657
        %v4252 = vmul.f32 %v1657, %v4251
        %v4253 = vsub.f32 1.0, %v4252
        %v4254 = vmul.f32 %v4251, %v4253
        %v4255 = vadd.f32 %v4251, %v4254
        %vm4256 = vweird.f32 %v1657
        %vm4257 = vweird.f32 %v4251
        %vm4258 = vmor %vm4256, %vm4257
        %v4259 = vsel %vm4258, %v4251, %v4255
        %v4260 = vand.u32 2147483647, %v1657
        %vm4261 = vcmp.eq.f32.partialorder %v4260, 8.507059e+37
        %v4262 = vand.u32 %v1657, 2147483648
        %v4263 = vor.u32 1.1754944e-38, %v4262
        %v4264 = vsel %vm4261, %v4263, %v4259
        %v4265 = vmul.f32 1.0, %v4264
        %v4266 = vrcp.pop %v1658
        %v4267 = vmul.f32 %v1658, %v4266
        %v4268 = vsub.f32 1.0, %v4267
        %v4269 = vmul.f32 %v4266, %v4268
        %v4270 = vadd.f32 %v4266, %v4269
        %vm4271 = vweird.f32 %v1658
        %vm4272 = vweird.f32 %v4266
        %vm4273 = vmor %vm4271, %vm4272
        %v4274 = vsel %vm4273, %v4266, %v4270
        %v4275 = vand.u32 2147483647, %v1658
        %vm4276 = vcmp.eq.f32.partialorder %v4275, 8.507059e+37
        %v4277 = vand.u32 %v1658, 2147483648
        %v4278 = vor.u32 1.1754944e-38, %v4277
        %v4279 = vsel %vm4276, %v4278, %v4274
        %v4280 = vmul.f32 1.0, %v4279
        %v4281 = vrcp.pop %v1659
        %v4282 = vmul.f32 %v1659, %v4281
        %v4283 = vsub.f32 1.0, %v4282
        %v4284 = vmul.f32 %v4281, %v4283
        %v4285 = vadd.f32 %v4281, %v4284
        %vm4286 = vweird.f32 %v1659
        %vm4287 = vweird.f32 %v4281
        %vm4288 = vmor %vm4286, %vm4287
        %v4289 = vsel %vm4288, %v4281, %v4285
        %v4290 = vand.u32 2147483647, %v1659
        %vm4291 = vcmp.eq.f32.partialorder %v4290, 8.507059e+37
        %v4292 = vand.u32 %v1659, 2147483648
        %v4293 = vor.u32 1.1754944e-38, %v4292
        %v4294 = vsel %vm4291, %v4293, %v4289
        %v4295 = vmul.f32 1.0, %v4294
        %v4296 = vrcp.pop %v1660
        %v4297 = vmul.f32 %v1660, %v4296
        %v4298 = vsub.f32 1.0, %v4297
        %v4299 = vmul.f32 %v4296, %v4298
        %v4300 = vadd.f32 %v4296, %v4299
        %vm4301 = vweird.f32 %v1660
        %vm4302 = vweird.f32 %v4296
        %vm4303 = vmor %vm4301, %vm4302
        %v4304 = vsel %vm4303, %v4296, %v4300
        %v4305 = vand.u32 2147483647, %v1660
        %vm4306 = vcmp.eq.f32.partialorder %v4305, 8.507059e+37
        %v4307 = vand.u32 %v1660, 2147483648
        %v4308 = vor.u32 1.1754944e-38, %v4307
        %v4309 = vsel %vm4306, %v4308, %v4304
        %v4310 = vmul.f32 1.0, %v4309
        %v4311 = vrcp.pop %v1661
        %v4312 = vmul.f32 %v1661, %v4311
        %v4313 = vsub.f32 1.0, %v4312
        %v4314 = vmul.f32 %v4311, %v4313
        %v4315 = vadd.f32 %v4311, %v4314
        %vm4316 = vweird.f32 %v1661
        %vm4317 = vweird.f32 %v4311
        %vm4318 = vmor %vm4316, %vm4317
        %v4319 = vsel %vm4318, %v4311, %v4315
        %v4320 = vand.u32 2147483647, %v1661
        %vm4321 = vcmp.eq.f32.partialorder %v4320, 8.507059e+37
        %v4322 = vand.u32 %v1661, 2147483648
        %v4323 = vor.u32 1.1754944e-38, %v4322
        %v4324 = vsel %vm4321, %v4323, %v4319
        %v4325 = vmul.f32 1.0, %v4324
        %v4326 = vrcp.pop %v1662
        %v4327 = vmul.f32 %v1662, %v4326
        %v4328 = vsub.f32 1.0, %v4327
        %v4329 = vmul.f32 %v4326, %v4328
        %v4330 = vadd.f32 %v4326, %v4329
        %vm4331 = vweird.f32 %v1662
        %vm4332 = vweird.f32 %v4326
        %vm4333 = vmor %vm4331, %vm4332
        %v4334 = vsel %vm4333, %v4326, %v4330
        %v4335 = vand.u32 2147483647, %v1662
        %vm4336 = vcmp.eq.f32.partialorder %v4335, 8.507059e+37
        %v4337 = vand.u32 %v1662, 2147483648
        %v4338 = vor.u32 1.1754944e-38, %v4337
        %v4339 = vsel %vm4336, %v4338, %v4334
        %v4340 = vmul.f32 1.0, %v4339
        %v4341 = vrcp.pop %v1663
        %v4342 = vmul.f32 %v1663, %v4341
        %v4343 = vsub.f32 1.0, %v4342
        %v4344 = vmul.f32 %v4341, %v4343
        %v4345 = vadd.f32 %v4341, %v4344
        %vm4346 = vweird.f32 %v1663
        %vm4347 = vweird.f32 %v4341
        %vm4348 = vmor %vm4346, %vm4347
        %v4349 = vsel %vm4348, %v4341, %v4345
        %v4350 = vand.u32 2147483647, %v1663
        %vm4351 = vcmp.eq.f32.partialorder %v4350, 8.507059e+37
        %v4352 = vand.u32 %v1663, 2147483648
        %v4353 = vor.u32 1.1754944e-38, %v4352
        %v4354 = vsel %vm4351, %v4353, %v4349
        %v4355 = vmul.f32 1.0, %v4354
        %v4356 = vrcp.pop %v1664
        %v4357 = vmul.f32 %v1664, %v4356
        %v4358 = vsub.f32 1.0, %v4357
        %v4359 = vmul.f32 %v4356, %v4358
        %v4360 = vadd.f32 %v4356, %v4359
        %vm4361 = vweird.f32 %v1664
        %vm4362 = vweird.f32 %v4356
        %vm4363 = vmor %vm4361, %vm4362
        %v4364 = vsel %vm4363, %v4356, %v4360
        %v4365 = vand.u32 2147483647, %v1664
        %vm4366 = vcmp.eq.f32.partialorder %v4365, 8.507059e+37
        %v4367 = vand.u32 %v1664, 2147483648
        %v4368 = vor.u32 1.1754944e-38, %v4367
        %v4369 = vsel %vm4366, %v4368, %v4364
        %v4370 = vmul.f32 1.0, %v4369
        %v4371 = vrcp.pop %v1665
        %v4372 = vmul.f32 %v1665, %v4371
        %v4373 = vsub.f32 1.0, %v4372
        %v4374 = vmul.f32 %v4371, %v4373
        %v4375 = vadd.f32 %v4371, %v4374
        %vm4376 = vweird.f32 %v1665
        %vm4377 = vweird.f32 %v4371
        %vm4378 = vmor %vm4376, %vm4377
        %v4379 = vsel %vm4378, %v4371, %v4375
        %v4380 = vand.u32 2147483647, %v1665
        %vm4381 = vcmp.eq.f32.partialorder %v4380, 8.507059e+37
        %v4382 = vand.u32 %v1665, 2147483648
        %v4383 = vor.u32 1.1754944e-38, %v4382
        %v4384 = vsel %vm4381, %v4383, %v4379
        %v4385 = vmul.f32 1.0, %v4384
        %v4386 = vrcp.pop %v1666
        %v4387 = vmul.f32 %v1666, %v4386
        %v4388 = vsub.f32 1.0, %v4387
        %v4389 = vmul.f32 %v4386, %v4388
        %v4390 = vadd.f32 %v4386, %v4389
        %vm4391 = vweird.f32 %v1666
        %vm4392 = vweird.f32 %v4386
        %vm4393 = vmor %vm4391, %vm4392
        %v4394 = vsel %vm4393, %v4386, %v4390
        %v4395 = vand.u32 2147483647, %v1666
        %vm4396 = vcmp.eq.f32.partialorder %v4395, 8.507059e+37
        %v4397 = vand.u32 %v1666, 2147483648
        %v4398 = vor.u32 1.1754944e-38, %v4397
        %v4399 = vsel %vm4396, %v4398, %v4394
        %v4400 = vmul.f32 1.0, %v4399
        %v4401 = vrcp.pop %v1667
        %v4402 = vmul.f32 %v1667, %v4401
        %v4403 = vsub.f32 1.0, %v4402
        %v4404 = vmul.f32 %v4401, %v4403
        %v4405 = vadd.f32 %v4401, %v4404
        %vm4406 = vweird.f32 %v1667
        %vm4407 = vweird.f32 %v4401
        %vm4408 = vmor %vm4406, %vm4407
        %v4409 = vsel %vm4408, %v4401, %v4405
        %v4410 = vand.u32 2147483647, %v1667
        %vm4411 = vcmp.eq.f32.partialorder %v4410, 8.507059e+37
        %v4412 = vand.u32 %v1667, 2147483648
        %v4413 = vor.u32 1.1754944e-38, %v4412
        %v4414 = vsel %vm4411, %v4413, %v4409
        %v4415 = vmul.f32 1.0, %v4414
        %v4416 = vrcp.pop %v1668
        %v4417 = vmul.f32 %v1668, %v4416
        %v4418 = vsub.f32 1.0, %v4417
        %v4419 = vmul.f32 %v4416, %v4418
        %v4420 = vadd.f32 %v4416, %v4419
        %vm4421 = vweird.f32 %v1668
        %vm4422 = vweird.f32 %v4416
        %vm4423 = vmor %vm4421, %vm4422
        %v4424 = vsel %vm4423, %v4416, %v4420
        %v4425 = vand.u32 2147483647, %v1668
        %vm4426 = vcmp.eq.f32.partialorder %v4425, 8.507059e+37
        %v4427 = vand.u32 %v1668, 2147483648
        %v4428 = vor.u32 1.1754944e-38, %v4427
        %v4429 = vsel %vm4426, %v4428, %v4424
        %v4430 = vmul.f32 1.0, %v4429
        %v4431 = vrcp.pop %v1669
        %v4432 = vmul.f32 %v1669, %v4431
        %v4433 = vsub.f32 1.0, %v4432
        %v4434 = vmul.f32 %v4431, %v4433
        %v4435 = vadd.f32 %v4431, %v4434
        %vm4436 = vweird.f32 %v1669
        %vm4437 = vweird.f32 %v4431
        %vm4438 = vmor %vm4436, %vm4437
        %v4439 = vsel %vm4438, %v4431, %v4435
        %v4440 = vand.u32 2147483647, %v1669
        %vm4441 = vcmp.eq.f32.partialorder %v4440, 8.507059e+37
        %v4442 = vand.u32 %v1669, 2147483648
        %v4443 = vor.u32 1.1754944e-38, %v4442
        %v4444 = vsel %vm4441, %v4443, %v4439
        %v4445 = vmul.f32 1.0, %v4444
        %v4446 = vrcp.pop %v1670
        %v4447 = vmul.f32 %v1670, %v4446
        %v4448 = vsub.f32 1.0, %v4447
        %v4449 = vmul.f32 %v4446, %v4448
        %v4450 = vadd.f32 %v4446, %v4449
        %vm4451 = vweird.f32 %v1670
        %vm4452 = vweird.f32 %v4446
        %vm4453 = vmor %vm4451, %vm4452
        %v4454 = vsel %vm4453, %v4446, %v4450
        %v4455 = vand.u32 2147483647, %v1670
        %vm4456 = vcmp.eq.f32.partialorder %v4455, 8.507059e+37
        %v4457 = vand.u32 %v1670, 2147483648
        %v4458 = vor.u32 1.1754944e-38, %v4457
        %v4459 = vsel %vm4456, %v4458, %v4454
        %v4460 = vmul.f32 1.0, %v4459
        %v4461 = vrcp.pop %v1671
        %v4462 = vmul.f32 %v1671, %v4461
        %v4463 = vsub.f32 1.0, %v4462
        %v4464 = vmul.f32 %v4461, %v4463
        %v4465 = vadd.f32 %v4461, %v4464
        %vm4466 = vweird.f32 %v1671
        %vm4467 = vweird.f32 %v4461
        %vm4468 = vmor %vm4466, %vm4467
        %v4469 = vsel %vm4468, %v4461, %v4465
        %v4470 = vand.u32 2147483647, %v1671
        %vm4471 = vcmp.eq.f32.partialorder %v4470, 8.507059e+37
        %v4472 = vand.u32 %v1671, 2147483648
        %v4473 = vor.u32 1.1754944e-38, %v4472
        %v4474 = vsel %vm4471, %v4473, %v4469
        %v4475 = vmul.f32 1.0, %v4474
        %v4476 = vrcp.pop %v1672
        %v4477 = vmul.f32 %v1672, %v4476
        %v4478 = vsub.f32 1.0, %v4477
        %v4479 = vmul.f32 %v4476, %v4478
        %v4480 = vadd.f32 %v4476, %v4479
        %vm4481 = vweird.f32 %v1672
        %vm4482 = vweird.f32 %v4476
        %vm4483 = vmor %vm4481, %vm4482
        %v4484 = vsel %vm4483, %v4476, %v4480
        %v4485 = vand.u32 2147483647, %v1672
        %vm4486 = vcmp.eq.f32.partialorder %v4485, 8.507059e+37
        %v4487 = vand.u32 %v1672, 2147483648
        %v4488 = vor.u32 1.1754944e-38, %v4487
        %v4489 = vsel %vm4486, %v4488, %v4484
        %v4490 = vmul.f32 1.0, %v4489
        %v4491 = vrcp.pop %v1673
        %v4492 = vmul.f32 %v1673, %v4491
        %v4493 = vsub.f32 1.0, %v4492
        %v4494 = vmul.f32 %v4491, %v4493
        %v4495 = vadd.f32 %v4491, %v4494
        %vm4496 = vweird.f32 %v1673
        %vm4497 = vweird.f32 %v4491
        %vm4498 = vmor %vm4496, %vm4497
        %v4499 = vsel %vm4498, %v4491, %v4495
        %v4500 = vand.u32 2147483647, %v1673
        %vm4501 = vcmp.eq.f32.partialorder %v4500, 8.507059e+37
        %v4502 = vand.u32 %v1673, 2147483648
        %v4503 = vor.u32 1.1754944e-38, %v4502
        %v4504 = vsel %vm4501, %v4503, %v4499
        %v4505 = vmul.f32 1.0, %v4504
        %v4506 = vrcp.pop %v1674
        %v4507 = vmul.f32 %v1674, %v4506
        %v4508 = vsub.f32 1.0, %v4507
        %v4509 = vmul.f32 %v4506, %v4508
        %v4510 = vadd.f32 %v4506, %v4509
        %vm4511 = vweird.f32 %v1674
        %vm4512 = vweird.f32 %v4506
        %vm4513 = vmor %vm4511, %vm4512
        %v4514 = vsel %vm4513, %v4506, %v4510
        %v4515 = vand.u32 2147483647, %v1674
        %vm4516 = vcmp.eq.f32.partialorder %v4515, 8.507059e+37
        %v4517 = vand.u32 %v1674, 2147483648
        %v4518 = vor.u32 1.1754944e-38, %v4517
        %v4519 = vsel %vm4516, %v4518, %v4514
        %v4520 = vmul.f32 1.0, %v4519
        %v4521 = vrcp.pop %v1675
        %v4522 = vmul.f32 %v1675, %v4521
        %v4523 = vsub.f32 1.0, %v4522
        %v4524 = vmul.f32 %v4521, %v4523
        %v4525 = vadd.f32 %v4521, %v4524
        %vm4526 = vweird.f32 %v1675
        %vm4527 = vweird.f32 %v4521
        %vm4528 = vmor %vm4526, %vm4527
        %v4529 = vsel %vm4528, %v4521, %v4525
        %v4530 = vand.u32 2147483647, %v1675
        %vm4531 = vcmp.eq.f32.partialorder %v4530, 8.507059e+37
        %v4532 = vand.u32 %v1675, 2147483648
        %v4533 = vor.u32 1.1754944e-38, %v4532
        %v4534 = vsel %vm4531, %v4533, %v4529
        %v4535 = vmul.f32 1.0, %v4534
        %v4536 = vrcp.pop %v1676
        %v4537 = vmul.f32 %v1676, %v4536
        %v4538 = vsub.f32 1.0, %v4537
        %v4539 = vmul.f32 %v4536, %v4538
        %v4540 = vadd.f32 %v4536, %v4539
        %vm4541 = vweird.f32 %v1676
        %vm4542 = vweird.f32 %v4536
        %vm4543 = vmor %vm4541, %vm4542
        %v4544 = vsel %vm4543, %v4536, %v4540
        %v4545 = vand.u32 2147483647, %v1676
        %vm4546 = vcmp.eq.f32.partialorder %v4545, 8.507059e+37
        %v4547 = vand.u32 %v1676, 2147483648
        %v4548 = vor.u32 1.1754944e-38, %v4547
        %v4549 = vsel %vm4546, %v4548, %v4544
        %v4550 = vmul.f32 1.0, %v4549
        %v4551 = vrcp.pop %v1677
        %v4552 = vmul.f32 %v1677, %v4551
        %v4553 = vsub.f32 1.0, %v4552
        %v4554 = vmul.f32 %v4551, %v4553
        %v4555 = vadd.f32 %v4551, %v4554
        %vm4556 = vweird.f32 %v1677
        %vm4557 = vweird.f32 %v4551
        %vm4558 = vmor %vm4556, %vm4557
        %v4559 = vsel %vm4558, %v4551, %v4555
        %v4560 = vand.u32 2147483647, %v1677
        %vm4561 = vcmp.eq.f32.partialorder %v4560, 8.507059e+37
        %v4562 = vand.u32 %v1677, 2147483648
        %v4563 = vor.u32 1.1754944e-38, %v4562
        %v4564 = vsel %vm4561, %v4563, %v4559
        %v4565 = vmul.f32 1.0, %v4564
        %v4566 = vrcp.pop %v1678
        %v4567 = vmul.f32 %v1678, %v4566
        %v4568 = vsub.f32 1.0, %v4567
        %v4569 = vmul.f32 %v4566, %v4568
        %v4570 = vadd.f32 %v4566, %v4569
        %vm4571 = vweird.f32 %v1678
        %vm4572 = vweird.f32 %v4566
        %vm4573 = vmor %vm4571, %vm4572
        %v4574 = vsel %vm4573, %v4566, %v4570
        %v4575 = vand.u32 2147483647, %v1678
        %vm4576 = vcmp.eq.f32.partialorder %v4575, 8.507059e+37
        %v4577 = vand.u32 %v1678, 2147483648
        %v4578 = vor.u32 1.1754944e-38, %v4577
        %v4579 = vsel %vm4576, %v4578, %v4574
        %v4580 = vmul.f32 1.0, %v4579
        %v4581 = vrcp.pop %v1679
        %v4582 = vmul.f32 %v1679, %v4581
        %v4583 = vsub.f32 1.0, %v4582
        %v4584 = vmul.f32 %v4581, %v4583
        %v4585 = vadd.f32 %v4581, %v4584
        %vm4586 = vweird.f32 %v1679
        %vm4587 = vweird.f32 %v4581
        %vm4588 = vmor %vm4586, %vm4587
        %v4589 = vsel %vm4588, %v4581, %v4585
        %v4590 = vand.u32 2147483647, %v1679
        %vm4591 = vcmp.eq.f32.partialorder %v4590, 8.507059e+37
        %v4592 = vand.u32 %v1679, 2147483648
        %v4593 = vor.u32 1.1754944e-38, %v4592
        %v4594 = vsel %vm4591, %v4593, %v4589
        %v4595 = vmul.f32 1.0, %v4594
        %v4596 = vrcp.pop %v1680
        %v4597 = vmul.f32 %v1680, %v4596
        %v4598 = vsub.f32 1.0, %v4597
        %v4599 = vmul.f32 %v4596, %v4598
        %v4600 = vadd.f32 %v4596, %v4599
        %vm4601 = vweird.f32 %v1680
        %vm4602 = vweird.f32 %v4596
        %vm4603 = vmor %vm4601, %vm4602
        %v4604 = vsel %vm4603, %v4596, %v4600
        %v4605 = vand.u32 2147483647, %v1680
        %vm4606 = vcmp.eq.f32.partialorder %v4605, 8.507059e+37
        %v4607 = vand.u32 %v1680, 2147483648
        %v4608 = vor.u32 1.1754944e-38, %v4607
        %v4609 = vsel %vm4606, %v4608, %v4604
        %v4610 = vmul.f32 1.0, %v4609
        %v4611 = vrcp.pop %v1681
        %v4612 = vmul.f32 %v1681, %v4611
        %v4613 = vsub.f32 1.0, %v4612
        %v4614 = vmul.f32 %v4611, %v4613
        %v4615 = vadd.f32 %v4611, %v4614
        %vm4616 = vweird.f32 %v1681
        %vm4617 = vweird.f32 %v4611
        %vm4618 = vmor %vm4616, %vm4617
        %v4619 = vsel %vm4618, %v4611, %v4615
        %v4620 = vand.u32 2147483647, %v1681
        %vm4621 = vcmp.eq.f32.partialorder %v4620, 8.507059e+37
        %v4622 = vand.u32 %v1681, 2147483648
        %v4623 = vor.u32 1.1754944e-38, %v4622
        %v4624 = vsel %vm4621, %v4623, %v4619
        %v4625 = vmul.f32 1.0, %v4624
        %v4626 = vrcp.pop %v1682
        %v4627 = vmul.f32 %v1682, %v4626
        %v4628 = vsub.f32 1.0, %v4627
        %v4629 = vmul.f32 %v4626, %v4628
        %v4630 = vadd.f32 %v4626, %v4629
        %vm4631 = vweird.f32 %v1682
        %vm4632 = vweird.f32 %v4626
        %vm4633 = vmor %vm4631, %vm4632
        %v4634 = vsel %vm4633, %v4626, %v4630
        %v4635 = vand.u32 2147483647, %v1682
        %vm4636 = vcmp.eq.f32.partialorder %v4635, 8.507059e+37
        %v4637 = vand.u32 %v1682, 2147483648
        %v4638 = vor.u32 1.1754944e-38, %v4637
        %v4639 = vsel %vm4636, %v4638, %v4634
        %v4640 = vmul.f32 1.0, %v4639
        %v4641 = vrcp.pop %v1683
        %v4642 = vmul.f32 %v1683, %v4641
        %v4643 = vsub.f32 1.0, %v4642
        %v4644 = vmul.f32 %v4641, %v4643
        %v4645 = vadd.f32 %v4641, %v4644
        %vm4646 = vweird.f32 %v1683
        %vm4647 = vweird.f32 %v4641
        %vm4648 = vmor %vm4646, %vm4647
        %v4649 = vsel %vm4648, %v4641, %v4645
        %v4650 = vand.u32 2147483647, %v1683
        %vm4651 = vcmp.eq.f32.partialorder %v4650, 8.507059e+37
        %v4652 = vand.u32 %v1683, 2147483648
        %v4653 = vor.u32 1.1754944e-38, %v4652
        %v4654 = vsel %vm4651, %v4653, %v4649
        %v4655 = vmul.f32 1.0, %v4654
        %v4656 = vrcp.pop %v1684
        %v4657 = vmul.f32 %v1684, %v4656
        %v4658 = vsub.f32 1.0, %v4657
        %v4659 = vmul.f32 %v4656, %v4658
        %v4660 = vadd.f32 %v4656, %v4659
        %vm4661 = vweird.f32 %v1684
        %vm4662 = vweird.f32 %v4656
        %vm4663 = vmor %vm4661, %vm4662
        %v4664 = vsel %vm4663, %v4656, %v4660
        %v4665 = vand.u32 2147483647, %v1684
        %vm4666 = vcmp.eq.f32.partialorder %v4665, 8.507059e+37
        %v4667 = vand.u32 %v1684, 2147483648
        %v4668 = vor.u32 1.1754944e-38, %v4667
        %v4669 = vsel %vm4666, %v4668, %v4664
        %v4670 = vmul.f32 1.0, %v4669
        %v4671 = vrcp.pop %v1685
        %v4672 = vmul.f32 %v1685, %v4671
        %v4673 = vsub.f32 1.0, %v4672
        %v4674 = vmul.f32 %v4671, %v4673
        %v4675 = vadd.f32 %v4671, %v4674
        %vm4676 = vweird.f32 %v1685
        %vm4677 = vweird.f32 %v4671
        %vm4678 = vmor %vm4676, %vm4677
        %v4679 = vsel %vm4678, %v4671, %v4675
        %v4680 = vand.u32 2147483647, %v1685
        %vm4681 = vcmp.eq.f32.partialorder %v4680, 8.507059e+37
        %v4682 = vand.u32 %v1685, 2147483648
        %v4683 = vor.u32 1.1754944e-38, %v4682
        %v4684 = vsel %vm4681, %v4683, %v4679
        %v4685 = vmul.f32 1.0, %v4684
        %v4686 = vrcp.pop %v1686
        %v4687 = vmul.f32 %v1686, %v4686
        %v4688 = vsub.f32 1.0, %v4687
        %v4689 = vmul.f32 %v4686, %v4688
        %v4690 = vadd.f32 %v4686, %v4689
        %vm4691 = vweird.f32 %v1686
        %vm4692 = vweird.f32 %v4686
        %vm4693 = vmor %vm4691, %vm4692
        %v4694 = vsel %vm4693, %v4686, %v4690
        %v4695 = vand.u32 2147483647, %v1686
        %vm4696 = vcmp.eq.f32.partialorder %v4695, 8.507059e+37
        %v4697 = vand.u32 %v1686, 2147483648
        %v4698 = vor.u32 1.1754944e-38, %v4697
        %v4699 = vsel %vm4696, %v4698, %v4694
        %v4700 = vmul.f32 1.0, %v4699
        %v4701 = vrcp.pop %v1687
        %v4702 = vmul.f32 %v1687, %v4701
        %v4703 = vsub.f32 1.0, %v4702
        %v4704 = vmul.f32 %v4701, %v4703
        %v4705 = vadd.f32 %v4701, %v4704
        %vm4706 = vweird.f32 %v1687
        %vm4707 = vweird.f32 %v4701
        %vm4708 = vmor %vm4706, %vm4707
        %v4709 = vsel %vm4708, %v4701, %v4705
        %v4710 = vand.u32 2147483647, %v1687
        %vm4711 = vcmp.eq.f32.partialorder %v4710, 8.507059e+37
        %v4712 = vand.u32 %v1687, 2147483648
        %v4713 = vor.u32 1.1754944e-38, %v4712
        %v4714 = vsel %vm4711, %v4713, %v4709
        %v4715 = vmul.f32 1.0, %v4714
        %v4716 = vrcp.pop %v1688
        %v4717 = vmul.f32 %v1688, %v4716
        %v4718 = vsub.f32 1.0, %v4717
        %v4719 = vmul.f32 %v4716, %v4718
        %v4720 = vadd.f32 %v4716, %v4719
        %vm4721 = vweird.f32 %v1688
        %vm4722 = vweird.f32 %v4716
        %vm4723 = vmor %vm4721, %vm4722
        %v4724 = vsel %vm4723, %v4716, %v4720
        %v4725 = vand.u32 2147483647, %v1688
        %vm4726 = vcmp.eq.f32.partialorder %v4725, 8.507059e+37
        %v4727 = vand.u32 %v1688, 2147483648
        %v4728 = vor.u32 1.1754944e-38, %v4727
        %v4729 = vsel %vm4726, %v4728, %v4724
        %v4730 = vmul.f32 1.0, %v4729
        %v4731 = vrcp.pop %v1689
        %v4732 = vmul.f32 %v1689, %v4731
        %v4733 = vsub.f32 1.0, %v4732
        %v4734 = vmul.f32 %v4731, %v4733
        %v4735 = vadd.f32 %v4731, %v4734
        %vm4736 = vweird.f32 %v1689
        %vm4737 = vweird.f32 %v4731
        %vm4738 = vmor %vm4736, %vm4737
        %v4739 = vsel %vm4738, %v4731, %v4735
        %v4740 = vand.u32 2147483647, %v1689
        %vm4741 = vcmp.eq.f32.partialorder %v4740, 8.507059e+37
        %v4742 = vand.u32 %v1689, 2147483648
        %v4743 = vor.u32 1.1754944e-38, %v4742
        %v4744 = vsel %vm4741, %v4743, %v4739
        %v4745 = vmul.f32 1.0, %v4744
        %v4746 = vrcp.pop %v1690
        %v4747 = vmul.f32 %v1690, %v4746
        %v4748 = vsub.f32 1.0, %v4747
        %v4749 = vmul.f32 %v4746, %v4748
        %v4750 = vadd.f32 %v4746, %v4749
        %vm4751 = vweird.f32 %v1690
        %vm4752 = vweird.f32 %v4746
        %vm4753 = vmor %vm4751, %vm4752
        %v4754 = vsel %vm4753, %v4746, %v4750
        %v4755 = vand.u32 2147483647, %v1690
        %vm4756 = vcmp.eq.f32.partialorder %v4755, 8.507059e+37
        %v4757 = vand.u32 %v1690, 2147483648
        %v4758 = vor.u32 1.1754944e-38, %v4757
        %v4759 = vsel %vm4756, %v4758, %v4754
        %v4760 = vmul.f32 1.0, %v4759
        %v4761 = vrcp.pop %v1691
        %v4762 = vmul.f32 %v1691, %v4761
        %v4763 = vsub.f32 1.0, %v4762
        %v4764 = vmul.f32 %v4761, %v4763
        %v4765 = vadd.f32 %v4761, %v4764
        %vm4766 = vweird.f32 %v1691
        %vm4767 = vweird.f32 %v4761
        %vm4768 = vmor %vm4766, %vm4767
        %v4769 = vsel %vm4768, %v4761, %v4765
        %v4770 = vand.u32 2147483647, %v1691
        %vm4771 = vcmp.eq.f32.partialorder %v4770, 8.507059e+37
        %v4772 = vand.u32 %v1691, 2147483648
        %v4773 = vor.u32 1.1754944e-38, %v4772
        %v4774 = vsel %vm4771, %v4773, %v4769
        %v4775 = vmul.f32 1.0, %v4774
        %v4776 = vrcp.pop %v1692
        %v4777 = vmul.f32 %v1692, %v4776
        %v4778 = vsub.f32 1.0, %v4777
        %v4779 = vmul.f32 %v4776, %v4778
        %v4780 = vadd.f32 %v4776, %v4779
        %vm4781 = vweird.f32 %v1692
        %vm4782 = vweird.f32 %v4776
        %vm4783 = vmor %vm4781, %vm4782
        %v4784 = vsel %vm4783, %v4776, %v4780
        %v4785 = vand.u32 2147483647, %v1692
        %vm4786 = vcmp.eq.f32.partialorder %v4785, 8.507059e+37
        %v4787 = vand.u32 %v1692, 2147483648
        %v4788 = vor.u32 1.1754944e-38, %v4787
        %v4789 = vsel %vm4786, %v4788, %v4784
        %v4790 = vmul.f32 1.0, %v4789
        %v4791 = vrcp.pop %v1693
        %v4792 = vmul.f32 %v1693, %v4791
        %v4793 = vsub.f32 1.0, %v4792
        %v4794 = vmul.f32 %v4791, %v4793
        %v4795 = vadd.f32 %v4791, %v4794
        %vm4796 = vweird.f32 %v1693
        %vm4797 = vweird.f32 %v4791
        %vm4798 = vmor %vm4796, %vm4797
        %v4799 = vsel %vm4798, %v4791, %v4795
        %v4800 = vand.u32 2147483647, %v1693
        %vm4801 = vcmp.eq.f32.partialorder %v4800, 8.507059e+37
        %v4802 = vand.u32 %v1693, 2147483648
        %v4803 = vor.u32 1.1754944e-38, %v4802
        %v4804 = vsel %vm4801, %v4803, %v4799
        %v4805 = vmul.f32 1.0, %v4804
        %v4806 = vrcp.pop %v1694
        %v4807 = vmul.f32 %v1694, %v4806
        %v4808 = vsub.f32 1.0, %v4807
        %v4809 = vmul.f32 %v4806, %v4808
        %v4810 = vadd.f32 %v4806, %v4809
        %vm4811 = vweird.f32 %v1694
        %vm4812 = vweird.f32 %v4806
        %vm4813 = vmor %vm4811, %vm4812
        %v4814 = vsel %vm4813, %v4806, %v4810
        %v4815 = vand.u32 2147483647, %v1694
        %vm4816 = vcmp.eq.f32.partialorder %v4815, 8.507059e+37
        %v4817 = vand.u32 %v1694, 2147483648
        %v4818 = vor.u32 1.1754944e-38, %v4817
        %v4819 = vsel %vm4816, %v4818, %v4814
        %v4820 = vmul.f32 1.0, %v4819
        %v4821 = vrcp.pop %v1695
        %v4822 = vmul.f32 %v1695, %v4821
        %v4823 = vsub.f32 1.0, %v4822
        %v4824 = vmul.f32 %v4821, %v4823
        %v4825 = vadd.f32 %v4821, %v4824
        %vm4826 = vweird.f32 %v1695
        %vm4827 = vweird.f32 %v4821
        %vm4828 = vmor %vm4826, %vm4827
        %v4829 = vsel %vm4828, %v4821, %v4825
        %v4830 = vand.u32 2147483647, %v1695
        %vm4831 = vcmp.eq.f32.partialorder %v4830, 8.507059e+37
        %v4832 = vand.u32 %v1695, 2147483648
        %v4833 = vor.u32 1.1754944e-38, %v4832
        %v4834 = vsel %vm4831, %v4833, %v4829
        %v4835 = vmul.f32 1.0, %v4834
        %v4836 = vrcp.pop %v1696
        %v4837 = vmul.f32 %v1696, %v4836
        %v4838 = vsub.f32 1.0, %v4837
        %v4839 = vmul.f32 %v4836, %v4838
        %v4840 = vadd.f32 %v4836, %v4839
        %vm4841 = vweird.f32 %v1696
        %vm4842 = vweird.f32 %v4836
        %vm4843 = vmor %vm4841, %vm4842
        %v4844 = vsel %vm4843, %v4836, %v4840
        %v4845 = vand.u32 2147483647, %v1696
        %vm4846 = vcmp.eq.f32.partialorder %v4845, 8.507059e+37
        %v4847 = vand.u32 %v1696, 2147483648
        %v4848 = vor.u32 1.1754944e-38, %v4847
        %v4849 = vsel %vm4846, %v4848, %v4844
        %v4850 = vmul.f32 1.0, %v4849
        %v4851 = vrcp.pop %v1697
        %v4852 = vmul.f32 %v1697, %v4851
        %v4853 = vsub.f32 1.0, %v4852
        %v4854 = vmul.f32 %v4851, %v4853
        %v4855 = vadd.f32 %v4851, %v4854
        %vm4856 = vweird.f32 %v1697
        %vm4857 = vweird.f32 %v4851
        %vm4858 = vmor %vm4856, %vm4857
        %v4859 = vsel %vm4858, %v4851, %v4855
        %v4860 = vand.u32 2147483647, %v1697
        %vm4861 = vcmp.eq.f32.partialorder %v4860, 8.507059e+37
        %v4862 = vand.u32 %v1697, 2147483648
        %v4863 = vor.u32 1.1754944e-38, %v4862
        %v4864 = vsel %vm4861, %v4863, %v4859
        %v4865 = vmul.f32 1.0, %v4864
        %v4866 = vrcp.pop %v1698
        %v4867 = vmul.f32 %v1698, %v4866
        %v4868 = vsub.f32 1.0, %v4867
        %v4869 = vmul.f32 %v4866, %v4868
        %v4870 = vadd.f32 %v4866, %v4869
        %vm4871 = vweird.f32 %v1698
        %vm4872 = vweird.f32 %v4866
        %vm4873 = vmor %vm4871, %vm4872
        %v4874 = vsel %vm4873, %v4866, %v4870
        %v4875 = vand.u32 2147483647, %v1698
        %vm4876 = vcmp.eq.f32.partialorder %v4875, 8.507059e+37
        %v4877 = vand.u32 %v1698, 2147483648
        %v4878 = vor.u32 1.1754944e-38, %v4877
        %v4879 = vsel %vm4876, %v4878, %v4874
        %v4880 = vmul.f32 1.0, %v4879
        %v4881 = vrcp.pop %v1699
        %v4882 = vmul.f32 %v1699, %v4881
        %v4883 = vsub.f32 1.0, %v4882
        %v4884 = vmul.f32 %v4881, %v4883
        %v4885 = vadd.f32 %v4881, %v4884
        %vm4886 = vweird.f32 %v1699
        %vm4887 = vweird.f32 %v4881
        %vm4888 = vmor %vm4886, %vm4887
        %v4889 = vsel %vm4888, %v4881, %v4885
        %v4890 = vand.u32 2147483647, %v1699
        %vm4891 = vcmp.eq.f32.partialorder %v4890, 8.507059e+37
        %v4892 = vand.u32 %v1699, 2147483648
        %v4893 = vor.u32 1.1754944e-38, %v4892
        %v4894 = vsel %vm4891, %v4893, %v4889
        %v4895 = vmul.f32 1.0, %v4894
        %v4896 = vrcp.pop %v1700
        %v4897 = vmul.f32 %v1700, %v4896
        %v4898 = vsub.f32 1.0, %v4897
        %v4899 = vmul.f32 %v4896, %v4898
        %v4900 = vadd.f32 %v4896, %v4899
        %vm4901 = vweird.f32 %v1700
        %vm4902 = vweird.f32 %v4896
        %vm4903 = vmor %vm4901, %vm4902
        %v4904 = vsel %vm4903, %v4896, %v4900
        %v4905 = vand.u32 2147483647, %v1700
        %vm4906 = vcmp.eq.f32.partialorder %v4905, 8.507059e+37
        %v4907 = vand.u32 %v1700, 2147483648
        %v4908 = vor.u32 1.1754944e-38, %v4907
        %v4909 = vsel %vm4906, %v4908, %v4904
        %v4910 = vmul.f32 1.0, %v4909
        %v4911 = vrcp.pop %v1701
        %v4912 = vmul.f32 %v1701, %v4911
        %v4913 = vsub.f32 1.0, %v4912
        %v4914 = vmul.f32 %v4911, %v4913
        %v4915 = vadd.f32 %v4911, %v4914
        %vm4916 = vweird.f32 %v1701
        %vm4917 = vweird.f32 %v4911
        %vm4918 = vmor %vm4916, %vm4917
        %v4919 = vsel %vm4918, %v4911, %v4915
        %v4920 = vand.u32 2147483647, %v1701
        %vm4921 = vcmp.eq.f32.partialorder %v4920, 8.507059e+37
        %v4922 = vand.u32 %v1701, 2147483648
        %v4923 = vor.u32 1.1754944e-38, %v4922
        %v4924 = vsel %vm4921, %v4923, %v4919
        %v4925 = vmul.f32 1.0, %v4924
        %v4926 = vrcp.pop %v1702
        %v4927 = vmul.f32 %v1702, %v4926
        %v4928 = vsub.f32 1.0, %v4927
        %v4929 = vmul.f32 %v4926, %v4928
        %v4930 = vadd.f32 %v4926, %v4929
        %vm4931 = vweird.f32 %v1702
        %vm4932 = vweird.f32 %v4926
        %vm4933 = vmor %vm4931, %vm4932
        %v4934 = vsel %vm4933, %v4926, %v4930
        %v4935 = vand.u32 2147483647, %v1702
        %vm4936 = vcmp.eq.f32.partialorder %v4935, 8.507059e+37
        %v4937 = vand.u32 %v1702, 2147483648
        %v4938 = vor.u32 1.1754944e-38, %v4937
        %v4939 = vsel %vm4936, %v4938, %v4934
        %v4940 = vmul.f32 1.0, %v4939
        %v4941 = vrcp.pop %v1703
        %v4942 = vmul.f32 %v1703, %v4941
        %v4943 = vsub.f32 1.0, %v4942
        %v4944 = vmul.f32 %v4941, %v4943
        %v4945 = vadd.f32 %v4941, %v4944
        %vm4946 = vweird.f32 %v1703
        %vm4947 = vweird.f32 %v4941
        %vm4948 = vmor %vm4946, %vm4947
        %v4949 = vsel %vm4948, %v4941, %v4945
        %v4950 = vand.u32 2147483647, %v1703
        %vm4951 = vcmp.eq.f32.partialorder %v4950, 8.507059e+37
        %v4952 = vand.u32 %v1703, 2147483648
        %v4953 = vor.u32 1.1754944e-38, %v4952
        %v4954 = vsel %vm4951, %v4953, %v4949
        %v4955 = vmul.f32 1.0, %v4954
        %v4956 = vrcp.pop %v1704
        %v4957 = vmul.f32 %v1704, %v4956
        %v4958 = vsub.f32 1.0, %v4957
        %v4959 = vmul.f32 %v4956, %v4958
        %v4960 = vadd.f32 %v4956, %v4959
        %vm4961 = vweird.f32 %v1704
        %vm4962 = vweird.f32 %v4956
        %vm4963 = vmor %vm4961, %vm4962
        %v4964 = vsel %vm4963, %v4956, %v4960
        %v4965 = vand.u32 2147483647, %v1704
        %vm4966 = vcmp.eq.f32.partialorder %v4965, 8.507059e+37
        %v4967 = vand.u32 %v1704, 2147483648
        %v4968 = vor.u32 1.1754944e-38, %v4967
        %v4969 = vsel %vm4966, %v4968, %v4964
        %v4970 = vmul.f32 1.0, %v4969
        %v4971 = vrcp.pop %v1705
        %v4972 = vmul.f32 %v1705, %v4971
        %v4973 = vsub.f32 1.0, %v4972
        %v4974 = vmul.f32 %v4971, %v4973
        %v4975 = vadd.f32 %v4971, %v4974
        %vm4976 = vweird.f32 %v1705
        %vm4977 = vweird.f32 %v4971
        %vm4978 = vmor %vm4976, %vm4977
        %v4979 = vsel %vm4978, %v4971, %v4975
        %v4980 = vand.u32 2147483647, %v1705
        %vm4981 = vcmp.eq.f32.partialorder %v4980, 8.507059e+37
        %v4982 = vand.u32 %v1705, 2147483648
        %v4983 = vor.u32 1.1754944e-38, %v4982
        %v4984 = vsel %vm4981, %v4983, %v4979
        %v4985 = vmul.f32 1.0, %v4984
        %v4986 = vrcp.pop %v1706
        %v4987 = vmul.f32 %v1706, %v4986
        %v4988 = vsub.f32 1.0, %v4987
        %v4989 = vmul.f32 %v4986, %v4988
        %v4990 = vadd.f32 %v4986, %v4989
        %vm4991 = vweird.f32 %v1706
        %vm4992 = vweird.f32 %v4986
        %vm4993 = vmor %vm4991, %vm4992
        %v4994 = vsel %vm4993, %v4986, %v4990
        %v4995 = vand.u32 2147483647, %v1706
        %vm4996 = vcmp.eq.f32.partialorder %v4995, 8.507059e+37
        %v4997 = vand.u32 %v1706, 2147483648
        %v4998 = vor.u32 1.1754944e-38, %v4997
        %v4999 = vsel %vm4996, %v4998, %v4994
        %v5000 = vmul.f32 1.0, %v4999
        %v5001 = vrcp.pop %v1707
        %v5002 = vmul.f32 %v1707, %v5001
        %v5003 = vsub.f32 1.0, %v5002
        %v5004 = vmul.f32 %v5001, %v5003
        %v5005 = vadd.f32 %v5001, %v5004
        %vm5006 = vweird.f32 %v1707
        %vm5007 = vweird.f32 %v5001
        %vm5008 = vmor %vm5006, %vm5007
        %v5009 = vsel %vm5008, %v5001, %v5005
        %v5010 = vand.u32 2147483647, %v1707
        %vm5011 = vcmp.eq.f32.partialorder %v5010, 8.507059e+37
        %v5012 = vand.u32 %v1707, 2147483648
        %v5013 = vor.u32 1.1754944e-38, %v5012
        %v5014 = vsel %vm5011, %v5013, %v5009
        %v5015 = vmul.f32 1.0, %v5014
        %v5016 = vrcp.pop %v1708
        %v5017 = vmul.f32 %v1708, %v5016
        %v5018 = vsub.f32 1.0, %v5017
        %v5019 = vmul.f32 %v5016, %v5018
        %v5020 = vadd.f32 %v5016, %v5019
        %vm5021 = vweird.f32 %v1708
        %vm5022 = vweird.f32 %v5016
        %vm5023 = vmor %vm5021, %vm5022
        %v5024 = vsel %vm5023, %v5016, %v5020
        %v5025 = vand.u32 2147483647, %v1708
        %vm5026 = vcmp.eq.f32.partialorder %v5025, 8.507059e+37
        %v5027 = vand.u32 %v1708, 2147483648
        %v5028 = vor.u32 1.1754944e-38, %v5027
        %v5029 = vsel %vm5026, %v5028, %v5024
        %v5030 = vmul.f32 1.0, %v5029
        %v5031 = vrcp.pop %v1709
        %v5032 = vmul.f32 %v1709, %v5031
        %v5033 = vsub.f32 1.0, %v5032
        %v5034 = vmul.f32 %v5031, %v5033
        %v5035 = vadd.f32 %v5031, %v5034
        %vm5036 = vweird.f32 %v1709
        %vm5037 = vweird.f32 %v5031
        %vm5038 = vmor %vm5036, %vm5037
        %v5039 = vsel %vm5038, %v5031, %v5035
        %v5040 = vand.u32 2147483647, %v1709
        %vm5041 = vcmp.eq.f32.partialorder %v5040, 8.507059e+37
        %v5042 = vand.u32 %v1709, 2147483648
        %v5043 = vor.u32 1.1754944e-38, %v5042
        %v5044 = vsel %vm5041, %v5043, %v5039
        %v5045 = vmul.f32 1.0, %v5044
        %v5046 = vrcp.pop %v1710
        %v5047 = vmul.f32 %v1710, %v5046
        %v5048 = vsub.f32 1.0, %v5047
        %v5049 = vmul.f32 %v5046, %v5048
        %v5050 = vadd.f32 %v5046, %v5049
        %vm5051 = vweird.f32 %v1710
        %vm5052 = vweird.f32 %v5046
        %vm5053 = vmor %vm5051, %vm5052
        %v5054 = vsel %vm5053, %v5046, %v5050
        %v5055 = vand.u32 2147483647, %v1710
        %vm5056 = vcmp.eq.f32.partialorder %v5055, 8.507059e+37
        %v5057 = vand.u32 %v1710, 2147483648
        %v5058 = vor.u32 1.1754944e-38, %v5057
        %v5059 = vsel %vm5056, %v5058, %v5054
        %v5060 = vmul.f32 1.0, %v5059
        %v5061 = vrcp.pop %v1711
        %v5062 = vmul.f32 %v1711, %v5061
        %v5063 = vsub.f32 1.0, %v5062
        %v5064 = vmul.f32 %v5061, %v5063
        %v5065 = vadd.f32 %v5061, %v5064
        %vm5066 = vweird.f32 %v1711
        %vm5067 = vweird.f32 %v5061
        %vm5068 = vmor %vm5066, %vm5067
        %v5069 = vsel %vm5068, %v5061, %v5065
        %v5070 = vand.u32 2147483647, %v1711
        %vm5071 = vcmp.eq.f32.partialorder %v5070, 8.507059e+37
        %v5072 = vand.u32 %v1711, 2147483648
        %v5073 = vor.u32 1.1754944e-38, %v5072
        %v5074 = vsel %vm5071, %v5073, %v5069
        %v5075 = vmul.f32 1.0, %v5074
        %v5076 = vrcp.pop %v1712
        %v5077 = vmul.f32 %v1712, %v5076
        %v5078 = vsub.f32 1.0, %v5077
        %v5079 = vmul.f32 %v5076, %v5078
        %v5080 = vadd.f32 %v5076, %v5079
        %vm5081 = vweird.f32 %v1712
        %vm5082 = vweird.f32 %v5076
        %vm5083 = vmor %vm5081, %vm5082
        %v5084 = vsel %vm5083, %v5076, %v5080
        %v5085 = vand.u32 2147483647, %v1712
        %vm5086 = vcmp.eq.f32.partialorder %v5085, 8.507059e+37
        %v5087 = vand.u32 %v1712, 2147483648
        %v5088 = vor.u32 1.1754944e-38, %v5087
        %v5089 = vsel %vm5086, %v5088, %v5084
        %v5090 = vmul.f32 1.0, %v5089
        %v5091 = vrcp.pop %v1713
        %v5092 = vmul.f32 %v1713, %v5091
        %v5093 = vsub.f32 1.0, %v5092
        %v5094 = vmul.f32 %v5091, %v5093
        %v5095 = vadd.f32 %v5091, %v5094
        %vm5096 = vweird.f32 %v1713
        %vm5097 = vweird.f32 %v5091
        %vm5098 = vmor %vm5096, %vm5097
        %v5099 = vsel %vm5098, %v5091, %v5095
        %v5100 = vand.u32 2147483647, %v1713
        %vm5101 = vcmp.eq.f32.partialorder %v5100, 8.507059e+37
        %v5102 = vand.u32 %v1713, 2147483648
        %v5103 = vor.u32 1.1754944e-38, %v5102
        %v5104 = vsel %vm5101, %v5103, %v5099
        %v5105 = vmul.f32 1.0, %v5104
        %v5106 = vrcp.pop %v1714
        %v5107 = vmul.f32 %v1714, %v5106
        %v5108 = vsub.f32 1.0, %v5107
        %v5109 = vmul.f32 %v5106, %v5108
        %v5110 = vadd.f32 %v5106, %v5109
        %vm5111 = vweird.f32 %v1714
        %vm5112 = vweird.f32 %v5106
        %vm5113 = vmor %vm5111, %vm5112
        %v5114 = vsel %vm5113, %v5106, %v5110
        %v5115 = vand.u32 2147483647, %v1714
        %vm5116 = vcmp.eq.f32.partialorder %v5115, 8.507059e+37
        %v5117 = vand.u32 %v1714, 2147483648
        %v5118 = vor.u32 1.1754944e-38, %v5117
        %v5119 = vsel %vm5116, %v5118, %v5114
        %v5120 = vmul.f32 1.0, %v5119
        %v5121 = vrcp.pop %v1715
        %v5122 = vmul.f32 %v1715, %v5121
        %v5123 = vsub.f32 1.0, %v5122
        %v5124 = vmul.f32 %v5121, %v5123
        %v5125 = vadd.f32 %v5121, %v5124
        %vm5126 = vweird.f32 %v1715
        %vm5127 = vweird.f32 %v5121
        %vm5128 = vmor %vm5126, %vm5127
        %v5129 = vsel %vm5128, %v5121, %v5125
        %v5130 = vand.u32 2147483647, %v1715
        %vm5131 = vcmp.eq.f32.partialorder %v5130, 8.507059e+37
        %v5132 = vand.u32 %v1715, 2147483648
        %v5133 = vor.u32 1.1754944e-38, %v5132
        %v5134 = vsel %vm5131, %v5133, %v5129
        %v5135 = vmul.f32 1.0, %v5134
        %v5136 = vrcp.pop %v1716
        %v5137 = vmul.f32 %v1716, %v5136
        %v5138 = vsub.f32 1.0, %v5137
        %v5139 = vmul.f32 %v5136, %v5138
        %v5140 = vadd.f32 %v5136, %v5139
        %vm5141 = vweird.f32 %v1716
        %vm5142 = vweird.f32 %v5136
        %vm5143 = vmor %vm5141, %vm5142
        %v5144 = vsel %vm5143, %v5136, %v5140
        %v5145 = vand.u32 2147483647, %v1716
        %vm5146 = vcmp.eq.f32.partialorder %v5145, 8.507059e+37
        %v5147 = vand.u32 %v1716, 2147483648
        %v5148 = vor.u32 1.1754944e-38, %v5147
        %v5149 = vsel %vm5146, %v5148, %v5144
        %v5150 = vmul.f32 1.0, %v5149
        %v5151 = vrcp.pop %v1717
        %v5152 = vmul.f32 %v1717, %v5151
        %v5153 = vsub.f32 1.0, %v5152
        %v5154 = vmul.f32 %v5151, %v5153
        %v5155 = vadd.f32 %v5151, %v5154
        %vm5156 = vweird.f32 %v1717
        %vm5157 = vweird.f32 %v5151
        %vm5158 = vmor %vm5156, %vm5157
        %v5159 = vsel %vm5158, %v5151, %v5155
        %v5160 = vand.u32 2147483647, %v1717
        %vm5161 = vcmp.eq.f32.partialorder %v5160, 8.507059e+37
        %v5162 = vand.u32 %v1717, 2147483648
        %v5163 = vor.u32 1.1754944e-38, %v5162
        %v5164 = vsel %vm5161, %v5163, %v5159
        %v5165 = vmul.f32 1.0, %v5164
        %v5166 = vrcp.pop %v1718
        %v5167 = vmul.f32 %v1718, %v5166
        %v5168 = vsub.f32 1.0, %v5167
        %v5169 = vmul.f32 %v5166, %v5168
        %v5170 = vadd.f32 %v5166, %v5169
        %vm5171 = vweird.f32 %v1718
        %vm5172 = vweird.f32 %v5166
        %vm5173 = vmor %vm5171, %vm5172
        %v5174 = vsel %vm5173, %v5166, %v5170
        %v5175 = vand.u32 2147483647, %v1718
        %vm5176 = vcmp.eq.f32.partialorder %v5175, 8.507059e+37
        %v5177 = vand.u32 %v1718, 2147483648
        %v5178 = vor.u32 1.1754944e-38, %v5177
        %v5179 = vsel %vm5176, %v5178, %v5174
        %v5180 = vmul.f32 1.0, %v5179
        %v5181 = vrcp.pop %v1719
        %v5182 = vmul.f32 %v1719, %v5181
        %v5183 = vsub.f32 1.0, %v5182
        %v5184 = vmul.f32 %v5181, %v5183
        %v5185 = vadd.f32 %v5181, %v5184
        %vm5186 = vweird.f32 %v1719
        %vm5187 = vweird.f32 %v5181
        %vm5188 = vmor %vm5186, %vm5187
        %v5189 = vsel %vm5188, %v5181, %v5185
        %v5190 = vand.u32 2147483647, %v1719
        %vm5191 = vcmp.eq.f32.partialorder %v5190, 8.507059e+37
        %v5192 = vand.u32 %v1719, 2147483648
        %v5193 = vor.u32 1.1754944e-38, %v5192
        %v5194 = vsel %vm5191, %v5193, %v5189
        %v5195 = vmul.f32 1.0, %v5194
        %v5196 = vrcp.pop %v1720
        %v5197 = vmul.f32 %v1720, %v5196
        %v5198 = vsub.f32 1.0, %v5197
        %v5199 = vmul.f32 %v5196, %v5198
        %v5200 = vadd.f32 %v5196, %v5199
        %vm5201 = vweird.f32 %v1720
        %vm5202 = vweird.f32 %v5196
        %vm5203 = vmor %vm5201, %vm5202
        %v5204 = vsel %vm5203, %v5196, %v5200
        %v5205 = vand.u32 2147483647, %v1720
        %vm5206 = vcmp.eq.f32.partialorder %v5205, 8.507059e+37
        %v5207 = vand.u32 %v1720, 2147483648
        %v5208 = vor.u32 1.1754944e-38, %v5207
        %v5209 = vsel %vm5206, %v5208, %v5204
        %v5210 = vmul.f32 1.0, %v5209
        %v5211 = vrcp.pop %v1721
        %v5212 = vmul.f32 %v1721, %v5211
        %v5213 = vsub.f32 1.0, %v5212
        %v5214 = vmul.f32 %v5211, %v5213
        %v5215 = vadd.f32 %v5211, %v5214
        %vm5216 = vweird.f32 %v1721
        %vm5217 = vweird.f32 %v5211
        %vm5218 = vmor %vm5216, %vm5217
        %v5219 = vsel %vm5218, %v5211, %v5215
        %v5220 = vand.u32 2147483647, %v1721
        %vm5221 = vcmp.eq.f32.partialorder %v5220, 8.507059e+37
        %v5222 = vand.u32 %v1721, 2147483648
        %v5223 = vor.u32 1.1754944e-38, %v5222
        %v5224 = vsel %vm5221, %v5223, %v5219
        %v5225 = vmul.f32 1.0, %v5224
        %v5226 = vrcp.pop %v1722
        %v5227 = vmul.f32 %v1722, %v5226
        %v5228 = vsub.f32 1.0, %v5227
        %v5229 = vmul.f32 %v5226, %v5228
        %v5230 = vadd.f32 %v5226, %v5229
        %vm5231 = vweird.f32 %v1722
        %vm5232 = vweird.f32 %v5226
        %vm5233 = vmor %vm5231, %vm5232
        %v5234 = vsel %vm5233, %v5226, %v5230
        %v5235 = vand.u32 2147483647, %v1722
        %vm5236 = vcmp.eq.f32.partialorder %v5235, 8.507059e+37
        %v5237 = vand.u32 %v1722, 2147483648
        %v5238 = vor.u32 1.1754944e-38, %v5237
        %v5239 = vsel %vm5236, %v5238, %v5234
        %v5240 = vmul.f32 1.0, %v5239
        %v5241 = vrcp.pop %v1723
        %v5242 = vmul.f32 %v1723, %v5241
        %v5243 = vsub.f32 1.0, %v5242
        %v5244 = vmul.f32 %v5241, %v5243
        %v5245 = vadd.f32 %v5241, %v5244
        %vm5246 = vweird.f32 %v1723
        %vm5247 = vweird.f32 %v5241
        %vm5248 = vmor %vm5246, %vm5247
        %v5249 = vsel %vm5248, %v5241, %v5245
        %v5250 = vand.u32 2147483647, %v1723
        %vm5251 = vcmp.eq.f32.partialorder %v5250, 8.507059e+37
        %v5252 = vand.u32 %v1723, 2147483648
        %v5253 = vor.u32 1.1754944e-38, %v5252
        %v5254 = vsel %vm5251, %v5253, %v5249
        %v5255 = vmul.f32 1.0, %v5254
        %v5256 = vrcp.pop %v1724
        %v5257 = vmul.f32 %v1724, %v5256
        %v5258 = vsub.f32 1.0, %v5257
        %v5259 = vmul.f32 %v5256, %v5258
        %v5260 = vadd.f32 %v5256, %v5259
        %vm5261 = vweird.f32 %v1724
        %vm5262 = vweird.f32 %v5256
        %vm5263 = vmor %vm5261, %vm5262
        %v5264 = vsel %vm5263, %v5256, %v5260
        %v5265 = vand.u32 2147483647, %v1724
        %vm5266 = vcmp.eq.f32.partialorder %v5265, 8.507059e+37
        %v5267 = vand.u32 %v1724, 2147483648
        %v5268 = vor.u32 1.1754944e-38, %v5267
        %v5269 = vsel %vm5266, %v5268, %v5264
        %v5270 = vmul.f32 1.0, %v5269
        %v5271 = vrcp.pop %v1725
        %v5272 = vmul.f32 %v1725, %v5271
        %v5273 = vsub.f32 1.0, %v5272
        %v5274 = vmul.f32 %v5271, %v5273
        %v5275 = vadd.f32 %v5271, %v5274
        %vm5276 = vweird.f32 %v1725
        %vm5277 = vweird.f32 %v5271
        %vm5278 = vmor %vm5276, %vm5277
        %v5279 = vsel %vm5278, %v5271, %v5275
        %v5280 = vand.u32 2147483647, %v1725
        %vm5281 = vcmp.eq.f32.partialorder %v5280, 8.507059e+37
        %v5282 = vand.u32 %v1725, 2147483648
        %v5283 = vor.u32 1.1754944e-38, %v5282
        %v5284 = vsel %vm5281, %v5283, %v5279
        %v5285 = vmul.f32 1.0, %v5284
        %v5286 = vrcp.pop %v1726
        %v5287 = vmul.f32 %v1726, %v5286
        %v5288 = vsub.f32 1.0, %v5287
        %v5289 = vmul.f32 %v5286, %v5288
        %v5290 = vadd.f32 %v5286, %v5289
        %vm5291 = vweird.f32 %v1726
        %vm5292 = vweird.f32 %v5286
        %vm5293 = vmor %vm5291, %vm5292
        %v5294 = vsel %vm5293, %v5286, %v5290
        %v5295 = vand.u32 2147483647, %v1726
        %vm5296 = vcmp.eq.f32.partialorder %v5295, 8.507059e+37
        %v5297 = vand.u32 %v1726, 2147483648
        %v5298 = vor.u32 1.1754944e-38, %v5297
        %v5299 = vsel %vm5296, %v5298, %v5294
        %v5300 = vmul.f32 1.0, %v5299
        %v5301 = vrcp.pop %v1727
        %v5302 = vmul.f32 %v1727, %v5301
        %v5303 = vsub.f32 1.0, %v5302
        %v5304 = vmul.f32 %v5301, %v5303
        %v5305 = vadd.f32 %v5301, %v5304
        %vm5306 = vweird.f32 %v1727
        %vm5307 = vweird.f32 %v5301
        %vm5308 = vmor %vm5306, %vm5307
        %v5309 = vsel %vm5308, %v5301, %v5305
        %v5310 = vand.u32 2147483647, %v1727
        %vm5311 = vcmp.eq.f32.partialorder %v5310, 8.507059e+37
        %v5312 = vand.u32 %v1727, 2147483648
        %v5313 = vor.u32 1.1754944e-38, %v5312
        %v5314 = vsel %vm5311, %v5313, %v5309
        %v5315 = vmul.f32 1.0, %v5314
        %v5316 = vrcp.pop %v1728
        %v5317 = vmul.f32 %v1728, %v5316
        %v5318 = vsub.f32 1.0, %v5317
        %v5319 = vmul.f32 %v5316, %v5318
        %v5320 = vadd.f32 %v5316, %v5319
        %vm5321 = vweird.f32 %v1728
        %vm5322 = vweird.f32 %v5316
        %vm5323 = vmor %vm5321, %vm5322
        %v5324 = vsel %vm5323, %v5316, %v5320
        %v5325 = vand.u32 2147483647, %v1728
        %vm5326 = vcmp.eq.f32.partialorder %v5325, 8.507059e+37
        %v5327 = vand.u32 %v1728, 2147483648
        %v5328 = vor.u32 1.1754944e-38, %v5327
        %v5329 = vsel %vm5326, %v5328, %v5324
        %v5330 = vmul.f32 1.0, %v5329
        %v5331 = vrcp.pop %v1729
        %v5332 = vmul.f32 %v1729, %v5331
        %v5333 = vsub.f32 1.0, %v5332
        %v5334 = vmul.f32 %v5331, %v5333
        %v5335 = vadd.f32 %v5331, %v5334
        %vm5336 = vweird.f32 %v1729
        %vm5337 = vweird.f32 %v5331
        %vm5338 = vmor %vm5336, %vm5337
        %v5339 = vsel %vm5338, %v5331, %v5335
        %v5340 = vand.u32 2147483647, %v1729
        %vm5341 = vcmp.eq.f32.partialorder %v5340, 8.507059e+37
        %v5342 = vand.u32 %v1729, 2147483648
        %v5343 = vor.u32 1.1754944e-38, %v5342
        %v5344 = vsel %vm5341, %v5343, %v5339
        %v5345 = vmul.f32 1.0, %v5344
        %v5346 = vrcp.pop %v1730
        %v5347 = vmul.f32 %v1730, %v5346
        %v5348 = vsub.f32 1.0, %v5347
        %v5349 = vmul.f32 %v5346, %v5348
        %v5350 = vadd.f32 %v5346, %v5349
        %vm5351 = vweird.f32 %v1730
        %vm5352 = vweird.f32 %v5346
        %vm5353 = vmor %vm5351, %vm5352
        %v5354 = vsel %vm5353, %v5346, %v5350
        %v5355 = vand.u32 2147483647, %v1730
        %vm5356 = vcmp.eq.f32.partialorder %v5355, 8.507059e+37
        %v5357 = vand.u32 %v1730, 2147483648
        %v5358 = vor.u32 1.1754944e-38, %v5357
        %v5359 = vsel %vm5356, %v5358, %v5354
        %v5360 = vmul.f32 1.0, %v5359
        %v5361 = vrcp.pop %v1731
        %v5362 = vmul.f32 %v1731, %v5361
        %v5363 = vsub.f32 1.0, %v5362
        %v5364 = vmul.f32 %v5361, %v5363
        %v5365 = vadd.f32 %v5361, %v5364
        %vm5366 = vweird.f32 %v1731
        %vm5367 = vweird.f32 %v5361
        %vm5368 = vmor %vm5366, %vm5367
        %v5369 = vsel %vm5368, %v5361, %v5365
        %v5370 = vand.u32 2147483647, %v1731
        %vm5371 = vcmp.eq.f32.partialorder %v5370, 8.507059e+37
        %v5372 = vand.u32 %v1731, 2147483648
        %v5373 = vor.u32 1.1754944e-38, %v5372
        %v5374 = vsel %vm5371, %v5373, %v5369
        %v5375 = vmul.f32 1.0, %v5374
        %v5376 = vrcp.pop %v1732
        %v5377 = vmul.f32 %v1732, %v5376
        %v5378 = vsub.f32 1.0, %v5377
        %v5379 = vmul.f32 %v5376, %v5378
        %v5380 = vadd.f32 %v5376, %v5379
        %vm5381 = vweird.f32 %v1732
        %vm5382 = vweird.f32 %v5376
        %vm5383 = vmor %vm5381, %vm5382
        %v5384 = vsel %vm5383, %v5376, %v5380
        %v5385 = vand.u32 2147483647, %v1732
        %vm5386 = vcmp.eq.f32.partialorder %v5385, 8.507059e+37
        %v5387 = vand.u32 %v1732, 2147483648
        %v5388 = vor.u32 1.1754944e-38, %v5387
        %v5389 = vsel %vm5386, %v5388, %v5384
        %v5390 = vmul.f32 1.0, %v5389
        %v5391 = vrcp.pop %v1733
        %v5392 = vmul.f32 %v1733, %v5391
        %v5393 = vsub.f32 1.0, %v5392
        %v5394 = vmul.f32 %v5391, %v5393
        %v5395 = vadd.f32 %v5391, %v5394
        %vm5396 = vweird.f32 %v1733
        %vm5397 = vweird.f32 %v5391
        %vm5398 = vmor %vm5396, %vm5397
        %v5399 = vsel %vm5398, %v5391, %v5395
        %v5400 = vand.u32 2147483647, %v1733
        %vm5401 = vcmp.eq.f32.partialorder %v5400, 8.507059e+37
        %v5402 = vand.u32 %v1733, 2147483648
        %v5403 = vor.u32 1.1754944e-38, %v5402
        %v5404 = vsel %vm5401, %v5403, %v5399
        %v5405 = vmul.f32 1.0, %v5404
        %v5406 = vrcp.pop %v1734
        %v5407 = vmul.f32 %v1734, %v5406
        %v5408 = vsub.f32 1.0, %v5407
        %v5409 = vmul.f32 %v5406, %v5408
        %v5410 = vadd.f32 %v5406, %v5409
        %vm5411 = vweird.f32 %v1734
        %vm5412 = vweird.f32 %v5406
        %vm5413 = vmor %vm5411, %vm5412
        %v5414 = vsel %vm5413, %v5406, %v5410
        %v5415 = vand.u32 2147483647, %v1734
        %vm5416 = vcmp.eq.f32.partialorder %v5415, 8.507059e+37
        %v5417 = vand.u32 %v1734, 2147483648
        %v5418 = vor.u32 1.1754944e-38, %v5417
        %v5419 = vsel %vm5416, %v5418, %v5414
        %v5420 = vmul.f32 1.0, %v5419
        %v5421 = vrcp.pop %v1735
        %v5422 = vmul.f32 %v1735, %v5421
        %v5423 = vsub.f32 1.0, %v5422
        %v5424 = vmul.f32 %v5421, %v5423
        %v5425 = vadd.f32 %v5421, %v5424
        %vm5426 = vweird.f32 %v1735
        %vm5427 = vweird.f32 %v5421
        %vm5428 = vmor %vm5426, %vm5427
        %v5429 = vsel %vm5428, %v5421, %v5425
        %v5430 = vand.u32 2147483647, %v1735
        %vm5431 = vcmp.eq.f32.partialorder %v5430, 8.507059e+37
        %v5432 = vand.u32 %v1735, 2147483648
        %v5433 = vor.u32 1.1754944e-38, %v5432
        %v5434 = vsel %vm5431, %v5433, %v5429
        %v5435 = vmul.f32 1.0, %v5434
        %v5436 = vrcp.pop %v1736
        %v5437 = vmul.f32 %v1736, %v5436
        %v5438 = vsub.f32 1.0, %v5437
        %v5439 = vmul.f32 %v5436, %v5438
        %v5440 = vadd.f32 %v5436, %v5439
        %vm5441 = vweird.f32 %v1736
        %vm5442 = vweird.f32 %v5436
        %vm5443 = vmor %vm5441, %vm5442
        %v5444 = vsel %vm5443, %v5436, %v5440
        %v5445 = vand.u32 2147483647, %v1736
        %vm5446 = vcmp.eq.f32.partialorder %v5445, 8.507059e+37
        %v5447 = vand.u32 %v1736, 2147483648
        %v5448 = vor.u32 1.1754944e-38, %v5447
        %v5449 = vsel %vm5446, %v5448, %v5444
        %v5450 = vmul.f32 1.0, %v5449
        %v5451 = vrcp.pop %v1737
        %v5452 = vmul.f32 %v1737, %v5451
        %v5453 = vsub.f32 1.0, %v5452
        %v5454 = vmul.f32 %v5451, %v5453
        %v5455 = vadd.f32 %v5451, %v5454
        %vm5456 = vweird.f32 %v1737
        %vm5457 = vweird.f32 %v5451
        %vm5458 = vmor %vm5456, %vm5457
        %v5459 = vsel %vm5458, %v5451, %v5455
        %v5460 = vand.u32 2147483647, %v1737
        %vm5461 = vcmp.eq.f32.partialorder %v5460, 8.507059e+37
        %v5462 = vand.u32 %v1737, 2147483648
        %v5463 = vor.u32 1.1754944e-38, %v5462
        %v5464 = vsel %vm5461, %v5463, %v5459
        %v5465 = vmul.f32 1.0, %v5464
        %v5466 = vrcp.pop %v1738
        %v5467 = vmul.f32 %v1738, %v5466
        %v5468 = vsub.f32 1.0, %v5467
        %v5469 = vmul.f32 %v5466, %v5468
        %v5470 = vadd.f32 %v5466, %v5469
        %vm5471 = vweird.f32 %v1738
        %vm5472 = vweird.f32 %v5466
        %vm5473 = vmor %vm5471, %vm5472
        %v5474 = vsel %vm5473, %v5466, %v5470
        %v5475 = vand.u32 2147483647, %v1738
        %vm5476 = vcmp.eq.f32.partialorder %v5475, 8.507059e+37
        %v5477 = vand.u32 %v1738, 2147483648
        %v5478 = vor.u32 1.1754944e-38, %v5477
        %v5479 = vsel %vm5476, %v5478, %v5474
        %v5480 = vmul.f32 1.0, %v5479
        %v5481 = vrcp.pop %v1739
        %v5482 = vmul.f32 %v1739, %v5481
        %v5483 = vsub.f32 1.0, %v5482
        %v5484 = vmul.f32 %v5481, %v5483
        %v5485 = vadd.f32 %v5481, %v5484
        %vm5486 = vweird.f32 %v1739
        %vm5487 = vweird.f32 %v5481
        %vm5488 = vmor %vm5486, %vm5487
        %v5489 = vsel %vm5488, %v5481, %v5485
        %v5490 = vand.u32 2147483647, %v1739
        %vm5491 = vcmp.eq.f32.partialorder %v5490, 8.507059e+37
        %v5492 = vand.u32 %v1739, 2147483648
        %v5493 = vor.u32 1.1754944e-38, %v5492
        %v5494 = vsel %vm5491, %v5493, %v5489
        %v5495 = vmul.f32 1.0, %v5494
        %v5496 = vrcp.pop %v1740
        %v5497 = vmul.f32 %v1740, %v5496
        %v5498 = vsub.f32 1.0, %v5497
        %v5499 = vmul.f32 %v5496, %v5498
        %v5500 = vadd.f32 %v5496, %v5499
        %vm5501 = vweird.f32 %v1740
        %vm5502 = vweird.f32 %v5496
        %vm5503 = vmor %vm5501, %vm5502
        %v5504 = vsel %vm5503, %v5496, %v5500
        %v5505 = vand.u32 2147483647, %v1740
        %vm5506 = vcmp.eq.f32.partialorder %v5505, 8.507059e+37
        %v5507 = vand.u32 %v1740, 2147483648
        %v5508 = vor.u32 1.1754944e-38, %v5507
        %v5509 = vsel %vm5506, %v5508, %v5504
        %v5510 = vmul.f32 1.0, %v5509
        %v5511 = vrcp.pop %v1741
        %v5512 = vmul.f32 %v1741, %v5511
        %v5513 = vsub.f32 1.0, %v5512
        %v5514 = vmul.f32 %v5511, %v5513
        %v5515 = vadd.f32 %v5511, %v5514
        %vm5516 = vweird.f32 %v1741
        %vm5517 = vweird.f32 %v5511
        %vm5518 = vmor %vm5516, %vm5517
        %v5519 = vsel %vm5518, %v5511, %v5515
        %v5520 = vand.u32 2147483647, %v1741
        %vm5521 = vcmp.eq.f32.partialorder %v5520, 8.507059e+37
        %v5522 = vand.u32 %v1741, 2147483648
        %v5523 = vor.u32 1.1754944e-38, %v5522
        %v5524 = vsel %vm5521, %v5523, %v5519
        %v5525 = vmul.f32 1.0, %v5524
        %v5526 = vrcp.pop %v1742
        %v5527 = vmul.f32 %v1742, %v5526
        %v5528 = vsub.f32 1.0, %v5527
        %v5529 = vmul.f32 %v5526, %v5528
        %v5530 = vadd.f32 %v5526, %v5529
        %vm5531 = vweird.f32 %v1742
        %vm5532 = vweird.f32 %v5526
        %vm5533 = vmor %vm5531, %vm5532
        %v5534 = vsel %vm5533, %v5526, %v5530
        %v5535 = vand.u32 2147483647, %v1742
        %vm5536 = vcmp.eq.f32.partialorder %v5535, 8.507059e+37
        %v5537 = vand.u32 %v1742, 2147483648
        %v5538 = vor.u32 1.1754944e-38, %v5537
        %v5539 = vsel %vm5536, %v5538, %v5534
        %v5540 = vmul.f32 1.0, %v5539
        %v5541 = vrcp.pop %v1743
        %v5542 = vmul.f32 %v1743, %v5541
        %v5543 = vsub.f32 1.0, %v5542
        %v5544 = vmul.f32 %v5541, %v5543
        %v5545 = vadd.f32 %v5541, %v5544
        %vm5546 = vweird.f32 %v1743
        %vm5547 = vweird.f32 %v5541
        %vm5548 = vmor %vm5546, %vm5547
        %v5549 = vsel %vm5548, %v5541, %v5545
        %v5550 = vand.u32 2147483647, %v1743
        %vm5551 = vcmp.eq.f32.partialorder %v5550, 8.507059e+37
        %v5552 = vand.u32 %v1743, 2147483648
        %v5553 = vor.u32 1.1754944e-38, %v5552
        %v5554 = vsel %vm5551, %v5553, %v5549
        %v5555 = vmul.f32 1.0, %v5554
        %v5556 = vrcp.pop %v1744
        %v5557 = vmul.f32 %v1744, %v5556
        %v5558 = vsub.f32 1.0, %v5557
        %v5559 = vmul.f32 %v5556, %v5558
        %v5560 = vadd.f32 %v5556, %v5559
        %vm5561 = vweird.f32 %v1744
        %vm5562 = vweird.f32 %v5556
        %vm5563 = vmor %vm5561, %vm5562
        %v5564 = vsel %vm5563, %v5556, %v5560
        %v5565 = vand.u32 2147483647, %v1744
        %vm5566 = vcmp.eq.f32.partialorder %v5565, 8.507059e+37
        %v5567 = vand.u32 %v1744, 2147483648
        %v5568 = vor.u32 1.1754944e-38, %v5567
        %v5569 = vsel %vm5566, %v5568, %v5564
        %v5570 = vmul.f32 1.0, %v5569
        %v5571 = vrcp.pop %v1745
        %v5572 = vmul.f32 %v1745, %v5571
        %v5573 = vsub.f32 1.0, %v5572
        %v5574 = vmul.f32 %v5571, %v5573
        %v5575 = vadd.f32 %v5571, %v5574
        %vm5576 = vweird.f32 %v1745
        %vm5577 = vweird.f32 %v5571
        %vm5578 = vmor %vm5576, %vm5577
        %v5579 = vsel %vm5578, %v5571, %v5575
        %v5580 = vand.u32 2147483647, %v1745
        %vm5581 = vcmp.eq.f32.partialorder %v5580, 8.507059e+37
        %v5582 = vand.u32 %v1745, 2147483648
        %v5583 = vor.u32 1.1754944e-38, %v5582
        %v5584 = vsel %vm5581, %v5583, %v5579
        %v5585 = vmul.f32 1.0, %v5584
        %v5586 = vsub.f32 %v1760, %v466
        %v5587 = vsub.f32 %v1775, %v467
        %v5588 = vsub.f32 %v1790, %v468
        %v5589 = vsub.f32 %v1805, %v469
        %v5590 = vsub.f32 %v1820, %v470
        %v5591 = vsub.f32 %v1835, %v471
        %v5592 = vsub.f32 %v1850, %v472
        %v5593 = vsub.f32 %v1865, %v473
        %v5594 = vsub.f32 %v1880, %v474
        %v5595 = vsub.f32 %v1895, %v475
        %v5596 = vsub.f32 %v1910, %v476
        %v5597 = vsub.f32 %v1925, %v477
        %v5598 = vsub.f32 %v1940, %v478
        %v5599 = vsub.f32 %v1955, %v479
        %v5600 = vsub.f32 %v1970, %v480
        %v5601 = vsub.f32 %v1985, %v481
        %v5602 = vsub.f32 %v2000, %v482
        %v5603 = vsub.f32 %v2015, %v483
        %v5604 = vsub.f32 %v2030, %v484
        %v5605 = vsub.f32 %v2045, %v485
        %v5606 = vsub.f32 %v2060, %v486
        %v5607 = vsub.f32 %v2075, %v487
        %v5608 = vsub.f32 %v2090, %v488
        %v5609 = vsub.f32 %v2105, %v489
        %v5610 = vsub.f32 %v2120, %v490
        %v5611 = vsub.f32 %v2135, %v491
        %v5612 = vsub.f32 %v2150, %v492
        %v5613 = vsub.f32 %v2165, %v493
        %v5614 = vsub.f32 %v2180, %v494
        %v5615 = vsub.f32 %v2195, %v495
        %v5616 = vsub.f32 %v2210, %v496
        %v5617 = vsub.f32 %v2225, %v497
        %v5618 = vsub.f32 %v2240, %v498
        %v5619 = vsub.f32 %v2255, %v499
        %v5620 = vsub.f32 %v2270, %v500
        %v5621 = vsub.f32 %v2285, %v501
        %v5622 = vsub.f32 %v2300, %v502
        %v5623 = vsub.f32 %v2315, %v503
        %v5624 = vsub.f32 %v2330, %v504
        %v5625 = vsub.f32 %v2345, %v505
        %v5626 = vsub.f32 %v2360, %v506
        %v5627 = vsub.f32 %v2375, %v507
        %v5628 = vsub.f32 %v2390, %v508
        %v5629 = vsub.f32 %v2405, %v509
        %v5630 = vsub.f32 %v2420, %v510
        %v5631 = vsub.f32 %v2435, %v511
        %v5632 = vsub.f32 %v2450, %v512
        %v5633 = vsub.f32 %v2465, %v513
        %v5634 = vsub.f32 %v2480, %v514
        %v5635 = vsub.f32 %v2495, %v515
        %v5636 = vsub.f32 %v2510, %v516
        %v5637 = vsub.f32 %v2525, %v517
        %v5638 = vsub.f32 %v2540, %v518
        %v5639 = vsub.f32 %v2555, %v519
        %v5640 = vsub.f32 %v2570, %v520
        %v5641 = vsub.f32 %v2585, %v521
        %v5642 = vsub.f32 %v2600, %v522
        %v5643 = vsub.f32 %v2615, %v523
        %v5644 = vsub.f32 %v2630, %v524
        %v5645 = vsub.f32 %v2645, %v525
        %v5646 = vsub.f32 %v2660, %v526
        %v5647 = vsub.f32 %v2675, %v527
        %v5648 = vsub.f32 %v2690, %v528
        %v5649 = vsub.f32 %v2705, %v529
        %v5650 = vsub.f32 %v2720, %v530
        %v5651 = vsub.f32 %v2735, %v531
        %v5652 = vsub.f32 %v2750, %v532
        %v5653 = vsub.f32 %v2765, %v533
        %v5654 = vsub.f32 %v2780, %v534
        %v5655 = vsub.f32 %v2795, %v535
        %v5656 = vsub.f32 %v2810, %v536
        %v5657 = vsub.f32 %v2825, %v537
        %v5658 = vsub.f32 %v2840, %v538
        %v5659 = vsub.f32 %v2855, %v539
        %v5660 = vsub.f32 %v2870, %v540
        %v5661 = vsub.f32 %v2885, %v541
        %v5662 = vsub.f32 %v2900, %v542
        %v5663 = vsub.f32 %v2915, %v543
        %v5664 = vsub.f32 %v2930, %v544
        %v5665 = vsub.f32 %v2945, %v545
        %v5666 = vsub.f32 %v2960, %v546
        %v5667 = vsub.f32 %v2975, %v547
        %v5668 = vsub.f32 %v2990, %v548
        %v5669 = vsub.f32 %v3005, %v549
        %v5670 = vsub.f32 %v3020, %v550
        %v5671 = vsub.f32 %v3035, %v551
        %v5672 = vsub.f32 %v3050, %v552
        %v5673 = vsub.f32 %v3065, %v553
        %v5674 = vsub.f32 %v3080, %v554
        %v5675 = vsub.f32 %v3095, %v555
        %v5676 = vsub.f32 %v3110, %v556
        %v5677 = vsub.f32 %v3125, %v557
        %v5678 = vsub.f32 %v3140, %v558
        %v5679 = vsub.f32 %v3155, %v559
        %v5680 = vsub.f32 %v3170, %v560
        %v5681 = vsub.f32 %v3185, %v561
        %v5682 = vsub.f32 %v3200, %v562
        %v5683 = vsub.f32 %v3215, %v563
        %v5684 = vsub.f32 %v3230, %v564
        %v5685 = vsub.f32 %v3245, %v565
        %v5686 = vsub.f32 %v3260, %v566
        %v5687 = vsub.f32 %v3275, %v567
        %v5688 = vsub.f32 %v3290, %v568
        %v5689 = vsub.f32 %v3305, %v569
        %v5690 = vsub.f32 %v3320, %v570
        %v5691 = vsub.f32 %v3335, %v571
        %v5692 = vsub.f32 %v3350, %v572
        %v5693 = vsub.f32 %v3365, %v573
        %v5694 = vsub.f32 %v3380, %v574
        %v5695 = vsub.f32 %v3395, %v575
        %v5696 = vsub.f32 %v3410, %v576
        %v5697 = vsub.f32 %v3425, %v577
        %v5698 = vsub.f32 %v3440, %v578
        %v5699 = vsub.f32 %v3455, %v579
        %v5700 = vsub.f32 %v3470, %v580
        %v5701 = vsub.f32 %v3485, %v581
        %v5702 = vsub.f32 %v3500, %v582
        %v5703 = vsub.f32 %v3515, %v583
        %v5704 = vsub.f32 %v3530, %v584
        %v5705 = vsub.f32 %v3545, %v585
        %v5706 = vsub.f32 %v3560, %v586
        %v5707 = vsub.f32 %v3575, %v587
        %v5708 = vsub.f32 %v3590, %v588
        %v5709 = vsub.f32 %v3605, %v589
        %v5710 = vsub.f32 %v3620, %v590
        %v5711 = vsub.f32 %v3635, %v591
        %v5712 = vsub.f32 %v3650, %v592
        %v5713 = vsub.f32 %v3665, %v593
        %v5714 = vsub.f32 %v3680, %v594
        %v5715 = vsub.f32 %v3695, %v595
        %v5716 = vsub.f32 %v3710, %v596
        %v5717 = vsub.f32 %v3725, %v597
        %v5718 = vsub.f32 %v3740, %v598
        %v5719 = vsub.f32 %v3755, %v599
        %v5720 = vsub.f32 %v3770, %v600
        %v5721 = vsub.f32 %v3785, %v601
        %v5722 = vsub.f32 %v3800, %v602
        %v5723 = vsub.f32 %v3815, %v603
        %v5724 = vsub.f32 %v3830, %v604
        %v5725 = vsub.f32 %v3845, %v605
        %v5726 = vsub.f32 %v3860, %v606
        %v5727 = vsub.f32 %v3875, %v607
        %v5728 = vsub.f32 %v3890, %v608
        %v5729 = vsub.f32 %v3905, %v609
        %v5730 = vsub.f32 %v3920, %v610
        %v5731 = vsub.f32 %v3935, %v611
        %v5732 = vsub.f32 %v3950, %v612
        %v5733 = vsub.f32 %v3965, %v613
        %v5734 = vsub.f32 %v3980, %v614
        %v5735 = vsub.f32 %v3995, %v615
        %v5736 = vsub.f32 %v4010, %v616
        %v5737 = vsub.f32 %v4025, %v617
        %v5738 = vsub.f32 %v4040, %v618
        %v5739 = vsub.f32 %v4055, %v619
        %v5740 = vsub.f32 %v4070, %v620
        %v5741 = vsub.f32 %v4085, %v621
        %v5742 = vsub.f32 %v4100, %v622
        %v5743 = vsub.f32 %v4115, %v623
        %v5744 = vsub.f32 %v4130, %v624
        %v5745 = vsub.f32 %v4145, %v625
        %v5746 = vsub.f32 %v4160, %v626
        %v5747 = vsub.f32 %v4175, %v627
        %v5748 = vsub.f32 %v4190, %v628
        %v5749 = vsub.f32 %v4205, %v629
        %v5750 = vsub.f32 %v4220, %v630
        %v5751 = vsub.f32 %v4235, %v631
        %v5752 = vsub.f32 %v4250, %v632
        %v5753 = vsub.f32 %v4265, %v633
        %v5754 = vsub.f32 %v4280, %v634
        %v5755 = vsub.f32 %v4295, %v635
        %v5756 = vsub.f32 %v4310, %v636
        %v5757 = vsub.f32 %v4325, %v637
        %v5758 = vsub.f32 %v4340, %v638
        %v5759 = vsub.f32 %v4355, %v639
        %v5760 = vsub.f32 %v4370, %v640
        %v5761 = vsub.f32 %v4385, %v641
        %v5762 = vsub.f32 %v4400, %v642
        %v5763 = vsub.f32 %v4415, %v643
        %v5764 = vsub.f32 %v4430, %v644
        %v5765 = vsub.f32 %v4445, %v645
        %v5766 = vsub.f32 %v4460, %v646
        %v5767 = vsub.f32 %v4475, %v647
        %v5768 = vsub.f32 %v4490, %v648
        %v5769 = vsub.f32 %v4505, %v649
        %v5770 = vsub.f32 %v4520, %v650
        %v5771 = vsub.f32 %v4535, %v651
        %v5772 = vsub.f32 %v4550, %v652
        %v5773 = vsub.f32 %v4565, %v653
        %v5774 = vsub.f32 %v4580, %v654
        %v5775 = vsub.f32 %v4595, %v655
        %v5776 = vsub.f32 %v4610, %v656
        %v5777 = vsub.f32 %v4625, %v657
        %v5778 = vsub.f32 %v4640, %v658
        %v5779 = vsub.f32 %v4655, %v659
        %v5780 = vsub.f32 %v4670, %v660
        %v5781 = vsub.f32 %v4685, %v661
        %v5782 = vsub.f32 %v4700, %v662
        %v5783 = vsub.f32 %v4715, %v663
        %v5784 = vsub.f32 %v4730, %v664
        %v5785 = vsub.f32 %v4745, %v665
        %v5786 = vsub.f32 %v4760, %v666
        %v5787 = vsub.f32 %v4775, %v667
        %v5788 = vsub.f32 %v4790, %v668
        %v5789 = vsub.f32 %v4805, %v669
        %v5790 = vsub.f32 %v4820, %v670
        %v5791 = vsub.f32 %v4835, %v671
        %v5792 = vsub.f32 %v4850, %v672
        %v5793 = vsub.f32 %v4865, %v673
        %v5794 = vsub.f32 %v4880, %v674
        %v5795 = vsub.f32 %v4895, %v675
        %v5796 = vsub.f32 %v4910, %v676
        %v5797 = vsub.f32 %v4925, %v677
        %v5798 = vsub.f32 %v4940, %v678
        %v5799 = vsub.f32 %v4955, %v679
        %v5800 = vsub.f32 %v4970, %v680
        %v5801 = vsub.f32 %v4985, %v681
        %v5802 = vsub.f32 %v5000, %v682
        %v5803 = vsub.f32 %v5015, %v683
        %v5804 = vsub.f32 %v5030, %v684
        %v5805 = vsub.f32 %v5045, %v685
        %v5806 = vsub.f32 %v5060, %v686
        %v5807 = vsub.f32 %v5075, %v687
        %v5808 = vsub.f32 %v5090, %v688
        %v5809 = vsub.f32 %v5105, %v689
        %v5810 = vsub.f32 %v5120, %v690
        %v5811 = vsub.f32 %v5135, %v691
        %v5812 = vsub.f32 %v5150, %v692
        %v5813 = vsub.f32 %v5165, %v693
        %v5814 = vsub.f32 %v5180, %v694
        %v5815 = vsub.f32 %v5195, %v695
        %v5816 = vsub.f32 %v5210, %v696
        %v5817 = vsub.f32 %v5225, %v697
        %v5818 = vsub.f32 %v5240, %v698
        %v5819 = vsub.f32 %v5255, %v699
        %v5820 = vsub.f32 %v5270, %v700
        %v5821 = vsub.f32 %v5285, %v701
        %v5822 = vsub.f32 %v5300, %v702
        %v5823 = vsub.f32 %v5315, %v703
        %v5824 = vsub.f32 %v5330, %v704
        %v5825 = vsub.f32 %v5345, %v705
        %v5826 = vsub.f32 %v5360, %v706
        %v5827 = vsub.f32 %v5375, %v707
        %v5828 = vsub.f32 %v5390, %v708
        %v5829 = vsub.f32 %v5405, %v709
        %v5830 = vsub.f32 %v5420, %v710
        %v5831 = vsub.f32 %v5435, %v711
        %v5832 = vsub.f32 %v5450, %v712
        %v5833 = vsub.f32 %v5465, %v713
        %v5834 = vsub.f32 %v5480, %v714
        %v5835 = vsub.f32 %v5495, %v715
        %v5836 = vsub.f32 %v5510, %v716
        %v5837 = vsub.f32 %v5525, %v717
        %v5838 = vsub.f32 %v5540, %v718
        %v5839 = vsub.f32 %v5555, %v719
        %v5840 = vsub.f32 %v5570, %v720
        %v5841 = vsub.f32 %v5585, %v721
        %v5842 = vmul.f32 %v5586, %v5586
        %v5843 = vmul.f32 %v5587, %v5587
        %v5844 = vmul.f32 %v5588, %v5588
        %v5845 = vmul.f32 %v5589, %v5589
        %v5846 = vmul.f32 %v5590, %v5590
        %v5847 = vmul.f32 %v5591, %v5591
        %v5848 = vmul.f32 %v5592, %v5592
        %v5849 = vmul.f32 %v5593, %v5593
        %v5850 = vmul.f32 %v5594, %v5594
        %v5851 = vmul.f32 %v5595, %v5595
        %v5852 = vmul.f32 %v5596, %v5596
        %v5853 = vmul.f32 %v5597, %v5597
        %v5854 = vmul.f32 %v5598, %v5598
        %v5855 = vmul.f32 %v5599, %v5599
        %v5856 = vmul.f32 %v5600, %v5600
        %v5857 = vmul.f32 %v5601, %v5601
        %v5858 = vmul.f32 %v5602, %v5602
        %v5859 = vmul.f32 %v5603, %v5603
        %v5860 = vmul.f32 %v5604, %v5604
        %v5861 = vmul.f32 %v5605, %v5605
        %v5862 = vmul.f32 %v5606, %v5606
        %v5863 = vmul.f32 %v5607, %v5607
        %v5864 = vmul.f32 %v5608, %v5608
        %v5865 = vmul.f32 %v5609, %v5609
        %v5866 = vmul.f32 %v5610, %v5610
        %v5867 = vmul.f32 %v5611, %v5611
        %v5868 = vmul.f32 %v5612, %v5612
        %v5869 = vmul.f32 %v5613, %v5613
        %v5870 = vmul.f32 %v5614, %v5614
        %v5871 = vmul.f32 %v5615, %v5615
        %v5872 = vmul.f32 %v5616, %v5616
        %v5873 = vmul.f32 %v5617, %v5617
        %v5874 = vmul.f32 %v5618, %v5618
        %v5875 = vmul.f32 %v5619, %v5619
        %v5876 = vmul.f32 %v5620, %v5620
        %v5877 = vmul.f32 %v5621, %v5621
        %v5878 = vmul.f32 %v5622, %v5622
        %v5879 = vmul.f32 %v5623, %v5623
        %v5880 = vmul.f32 %v5624, %v5624
        %v5881 = vmul.f32 %v5625, %v5625
        %v5882 = vmul.f32 %v5626, %v5626
        %v5883 = vmul.f32 %v5627, %v5627
        %v5884 = vmul.f32 %v5628, %v5628
        %v5885 = vmul.f32 %v5629, %v5629
        %v5886 = vmul.f32 %v5630, %v5630
        %v5887 = vmul.f32 %v5631, %v5631
        %v5888 = vmul.f32 %v5632, %v5632
        %v5889 = vmul.f32 %v5633, %v5633
        %v5890 = vmul.f32 %v5634, %v5634
        %v5891 = vmul.f32 %v5635, %v5635
        %v5892 = vmul.f32 %v5636, %v5636
        %v5893 = vmul.f32 %v5637, %v5637
        %v5894 = vmul.f32 %v5638, %v5638
        %v5895 = vmul.f32 %v5639, %v5639
        %v5896 = vmul.f32 %v5640, %v5640
        %v5897 = vmul.f32 %v5641, %v5641
        %v5898 = vmul.f32 %v5642, %v5642
        %v5899 = vmul.f32 %v5643, %v5643
        %v5900 = vmul.f32 %v5644, %v5644
        %v5901 = vmul.f32 %v5645, %v5645
        %v5902 = vmul.f32 %v5646, %v5646
        %v5903 = vmul.f32 %v5647, %v5647
        %v5904 = vmul.f32 %v5648, %v5648
        %v5905 = vmul.f32 %v5649, %v5649
        %v5906 = vmul.f32 %v5650, %v5650
        %v5907 = vmul.f32 %v5651, %v5651
        %v5908 = vmul.f32 %v5652, %v5652
        %v5909 = vmul.f32 %v5653, %v5653
        %v5910 = vmul.f32 %v5654, %v5654
        %v5911 = vmul.f32 %v5655, %v5655
        %v5912 = vmul.f32 %v5656, %v5656
        %v5913 = vmul.f32 %v5657, %v5657
        %v5914 = vmul.f32 %v5658, %v5658
        %v5915 = vmul.f32 %v5659, %v5659
        %v5916 = vmul.f32 %v5660, %v5660
        %v5917 = vmul.f32 %v5661, %v5661
        %v5918 = vmul.f32 %v5662, %v5662
        %v5919 = vmul.f32 %v5663, %v5663
        %v5920 = vmul.f32 %v5664, %v5664
        %v5921 = vmul.f32 %v5665, %v5665
        %v5922 = vmul.f32 %v5666, %v5666
        %v5923 = vmul.f32 %v5667, %v5667
        %v5924 = vmul.f32 %v5668, %v5668
        %v5925 = vmul.f32 %v5669, %v5669
        %v5926 = vmul.f32 %v5670, %v5670
        %v5927 = vmul.f32 %v5671, %v5671
        %v5928 = vmul.f32 %v5672, %v5672
        %v5929 = vmul.f32 %v5673, %v5673
        %v5930 = vmul.f32 %v5674, %v5674
        %v5931 = vmul.f32 %v5675, %v5675
        %v5932 = vmul.f32 %v5676, %v5676
        %v5933 = vmul.f32 %v5677, %v5677
        %v5934 = vmul.f32 %v5678, %v5678
        %v5935 = vmul.f32 %v5679, %v5679
        %v5936 = vmul.f32 %v5680, %v5680
        %v5937 = vmul.f32 %v5681, %v5681
        %v5938 = vmul.f32 %v5682, %v5682
        %v5939 = vmul.f32 %v5683, %v5683
        %v5940 = vmul.f32 %v5684, %v5684
        %v5941 = vmul.f32 %v5685, %v5685
        %v5942 = vmul.f32 %v5686, %v5686
        %v5943 = vmul.f32 %v5687, %v5687
        %v5944 = vmul.f32 %v5688, %v5688
        %v5945 = vmul.f32 %v5689, %v5689
        %v5946 = vmul.f32 %v5690, %v5690
        %v5947 = vmul.f32 %v5691, %v5691
        %v5948 = vmul.f32 %v5692, %v5692
        %v5949 = vmul.f32 %v5693, %v5693
        %v5950 = vmul.f32 %v5694, %v5694
        %v5951 = vmul.f32 %v5695, %v5695
        %v5952 = vmul.f32 %v5696, %v5696
        %v5953 = vmul.f32 %v5697, %v5697
        %v5954 = vmul.f32 %v5698, %v5698
        %v5955 = vmul.f32 %v5699, %v5699
        %v5956 = vmul.f32 %v5700, %v5700
        %v5957 = vmul.f32 %v5701, %v5701
        %v5958 = vmul.f32 %v5702, %v5702
        %v5959 = vmul.f32 %v5703, %v5703
        %v5960 = vmul.f32 %v5704, %v5704
        %v5961 = vmul.f32 %v5705, %v5705
        %v5962 = vmul.f32 %v5706, %v5706
        %v5963 = vmul.f32 %v5707, %v5707
        %v5964 = vmul.f32 %v5708, %v5708
        %v5965 = vmul.f32 %v5709, %v5709
        %v5966 = vmul.f32 %v5710, %v5710
        %v5967 = vmul.f32 %v5711, %v5711
        %v5968 = vmul.f32 %v5712, %v5712
        %v5969 = vmul.f32 %v5713, %v5713
        %v5970 = vmul.f32 %v5714, %v5714
        %v5971 = vmul.f32 %v5715, %v5715
        %v5972 = vmul.f32 %v5716, %v5716
        %v5973 = vmul.f32 %v5717, %v5717
        %v5974 = vmul.f32 %v5718, %v5718
        %v5975 = vmul.f32 %v5719, %v5719
        %v5976 = vmul.f32 %v5720, %v5720
        %v5977 = vmul.f32 %v5721, %v5721
        %v5978 = vmul.f32 %v5722, %v5722
        %v5979 = vmul.f32 %v5723, %v5723
        %v5980 = vmul.f32 %v5724, %v5724
        %v5981 = vmul.f32 %v5725, %v5725
        %v5982 = vmul.f32 %v5726, %v5726
        %v5983 = vmul.f32 %v5727, %v5727
        %v5984 = vmul.f32 %v5728, %v5728
        %v5985 = vmul.f32 %v5729, %v5729
        %v5986 = vmul.f32 %v5730, %v5730
        %v5987 = vmul.f32 %v5731, %v5731
        %v5988 = vmul.f32 %v5732, %v5732
        %v5989 = vmul.f32 %v5733, %v5733
        %v5990 = vmul.f32 %v5734, %v5734
        %v5991 = vmul.f32 %v5735, %v5735
        %v5992 = vmul.f32 %v5736, %v5736
        %v5993 = vmul.f32 %v5737, %v5737
        %v5994 = vmul.f32 %v5738, %v5738
        %v5995 = vmul.f32 %v5739, %v5739
        %v5996 = vmul.f32 %v5740, %v5740
        %v5997 = vmul.f32 %v5741, %v5741
        %v5998 = vmul.f32 %v5742, %v5742
        %v5999 = vmul.f32 %v5743, %v5743
        %v6000 = vmul.f32 %v5744, %v5744
        %v6001 = vmul.f32 %v5745, %v5745
        %v6002 = vmul.f32 %v5746, %v5746
        %v6003 = vmul.f32 %v5747, %v5747
        %v6004 = vmul.f32 %v5748, %v5748
        %v6005 = vmul.f32 %v5749, %v5749
        %v6006 = vmul.f32 %v5750, %v5750
        %v6007 = vmul.f32 %v5751, %v5751
        %v6008 = vmul.f32 %v5752, %v5752
        %v6009 = vmul.f32 %v5753, %v5753
        %v6010 = vmul.f32 %v5754, %v5754
        %v6011 = vmul.f32 %v5755, %v5755
        %v6012 = vmul.f32 %v5756, %v5756
        %v6013 = vmul.f32 %v5757, %v5757
        %v6014 = vmul.f32 %v5758, %v5758
        %v6015 = vmul.f32 %v5759, %v5759
        %v6016 = vmul.f32 %v5760, %v5760
        %v6017 = vmul.f32 %v5761, %v5761
        %v6018 = vmul.f32 %v5762, %v5762
        %v6019 = vmul.f32 %v5763, %v5763
        %v6020 = vmul.f32 %v5764, %v5764
        %v6021 = vmul.f32 %v5765, %v5765
        %v6022 = vmul.f32 %v5766, %v5766
        %v6023 = vmul.f32 %v5767, %v5767
        %v6024 = vmul.f32 %v5768, %v5768
        %v6025 = vmul.f32 %v5769, %v5769
        %v6026 = vmul.f32 %v5770, %v5770
        %v6027 = vmul.f32 %v5771, %v5771
        %v6028 = vmul.f32 %v5772, %v5772
        %v6029 = vmul.f32 %v5773, %v5773
        %v6030 = vmul.f32 %v5774, %v5774
        %v6031 = vmul.f32 %v5775, %v5775
        %v6032 = vmul.f32 %v5776, %v5776
        %v6033 = vmul.f32 %v5777, %v5777
        %v6034 = vmul.f32 %v5778, %v5778
        %v6035 = vmul.f32 %v5779, %v5779
        %v6036 = vmul.f32 %v5780, %v5780
        %v6037 = vmul.f32 %v5781, %v5781
        %v6038 = vmul.f32 %v5782, %v5782
        %v6039 = vmul.f32 %v5783, %v5783
        %v6040 = vmul.f32 %v5784, %v5784
        %v6041 = vmul.f32 %v5785, %v5785
        %v6042 = vmul.f32 %v5786, %v5786
        %v6043 = vmul.f32 %v5787, %v5787
        %v6044 = vmul.f32 %v5788, %v5788
        %v6045 = vmul.f32 %v5789, %v5789
        %v6046 = vmul.f32 %v5790, %v5790
        %v6047 = vmul.f32 %v5791, %v5791
        %v6048 = vmul.f32 %v5792, %v5792
        %v6049 = vmul.f32 %v5793, %v5793
        %v6050 = vmul.f32 %v5794, %v5794
        %v6051 = vmul.f32 %v5795, %v5795
        %v6052 = vmul.f32 %v5796, %v5796
        %v6053 = vmul.f32 %v5797, %v5797
        %v6054 = vmul.f32 %v5798, %v5798
        %v6055 = vmul.f32 %v5799, %v5799
        %v6056 = vmul.f32 %v5800, %v5800
        %v6057 = vmul.f32 %v5801, %v5801
        %v6058 = vmul.f32 %v5802, %v5802
        %v6059 = vmul.f32 %v5803, %v5803
        %v6060 = vmul.f32 %v5804, %v5804
        %v6061 = vmul.f32 %v5805, %v5805
        %v6062 = vmul.f32 %v5806, %v5806
        %v6063 = vmul.f32 %v5807, %v5807
        %v6064 = vmul.f32 %v5808, %v5808
        %v6065 = vmul.f32 %v5809, %v5809
        %v6066 = vmul.f32 %v5810, %v5810
        %v6067 = vmul.f32 %v5811, %v5811
        %v6068 = vmul.f32 %v5812, %v5812
        %v6069 = vmul.f32 %v5813, %v5813
        %v6070 = vmul.f32 %v5814, %v5814
        %v6071 = vmul.f32 %v5815, %v5815
        %v6072 = vmul.f32 %v5816, %v5816
        %v6073 = vmul.f32 %v5817, %v5817
        %v6074 = vmul.f32 %v5818, %v5818
        %v6075 = vmul.f32 %v5819, %v5819
        %v6076 = vmul.f32 %v5820, %v5820
        %v6077 = vmul.f32 %v5821, %v5821
        %v6078 = vmul.f32 %v5822, %v5822
        %v6079 = vmul.f32 %v5823, %v5823
        %v6080 = vmul.f32 %v5824, %v5824
        %v6081 = vmul.f32 %v5825, %v5825
        %v6082 = vmul.f32 %v5826, %v5826
        %v6083 = vmul.f32 %v5827, %v5827
        %v6084 = vmul.f32 %v5828, %v5828
        %v6085 = vmul.f32 %v5829, %v5829
        %v6086 = vmul.f32 %v5830, %v5830
        %v6087 = vmul.f32 %v5831, %v5831
        %v6088 = vmul.f32 %v5832, %v5832
        %v6089 = vmul.f32 %v5833, %v5833
        %v6090 = vmul.f32 %v5834, %v5834
        %v6091 = vmul.f32 %v5835, %v5835
        %v6092 = vmul.f32 %v5836, %v5836
        %v6093 = vmul.f32 %v5837, %v5837
        %v6094 = vmul.f32 %v5838, %v5838
        %v6095 = vmul.f32 %v5839, %v5839
        %v6096 = vmul.f32 %v5840, %v5840
        %v6097 = vmul.f32 %v5841, %v5841
        %v6098 = vadd.f32 %v5842, %v5850
        %v6099 = vadd.f32 %v6098, %v5858
        %v6100 = vadd.f32 %v6099, %v5866
        %v6101 = vadd.f32 %v6100, %v5874
        %v6102 = vadd.f32 %v6101, %v5882
        %v6103 = vadd.f32 %v6102, %v5890
        %v6104 = vadd.f32 %v6103, %v5898
        %v6105 = vadd.f32 %v6104, %v5906
        %v6106 = vadd.f32 %v6105, %v5914
        %v6107 = vadd.f32 %v6106, %v5922
        %v6108 = vadd.f32 %v6107, %v5930
        %v6109 = vadd.f32 %v6108, %v5938
        %v6110 = vadd.f32 %v6109, %v5946
        %v6111 = vadd.f32 %v6110, %v5954
        %v6112 = vadd.f32 %v6111, %v5962
        %v6113 = vadd.f32 %v6112, %v5970
        %v6114 = vadd.f32 %v6113, %v5978
        %v6115 = vadd.f32 %v6114, %v5986
        %v6116 = vadd.f32 %v6115, %v5994
        %v6117 = vadd.f32 %v6116, %v6002
        %v6118 = vadd.f32 %v6117, %v6010
        %v6119 = vadd.f32 %v6118, %v6018
        %v6120 = vadd.f32 %v6119, %v6026
        %v6121 = vadd.f32 %v6120, %v6034
        %v6122 = vadd.f32 %v6121, %v6042
        %v6123 = vadd.f32 %v6122, %v6050
        %v6124 = vadd.f32 %v6123, %v6058
        %v6125 = vadd.f32 %v6124, %v6066
        %v6126 = vadd.f32 %v6125, %v6074
        %v6127 = vadd.f32 %v6126, %v6082
        %v6128 = vadd.f32 %v6127, %v6090
        %v6129 = vadd.f32 %v5843, %v5851
        %v6130 = vadd.f32 %v6129, %v5859
        %v6131 = vadd.f32 %v6130, %v5867
        %v6132 = vadd.f32 %v6131, %v5875
        %v6133 = vadd.f32 %v6132, %v5883
        %v6134 = vadd.f32 %v6133, %v5891
        %v6135 = vadd.f32 %v6134, %v5899
        %v6136 = vadd.f32 %v6135, %v5907
        %v6137 = vadd.f32 %v6136, %v5915
        %v6138 = vadd.f32 %v6137, %v5923
        %v6139 = vadd.f32 %v6138, %v5931
        %v6140 = vadd.f32 %v6139, %v5939
        %v6141 = vadd.f32 %v6140, %v5947
        %v6142 = vadd.f32 %v6141, %v5955
        %v6143 = vadd.f32 %v6142, %v5963
        %v6144 = vadd.f32 %v6143, %v5971
        %v6145 = vadd.f32 %v6144, %v5979
        %v6146 = vadd.f32 %v6145, %v5987
        %v6147 = vadd.f32 %v6146, %v5995
        %v6148 = vadd.f32 %v6147, %v6003
        %v6149 = vadd.f32 %v6148, %v6011
        %v6150 = vadd.f32 %v6149, %v6019
        %v6151 = vadd.f32 %v6150, %v6027
        %v6152 = vadd.f32 %v6151, %v6035
        %v6153 = vadd.f32 %v6152, %v6043
        %v6154 = vadd.f32 %v6153, %v6051
        %v6155 = vadd.f32 %v6154, %v6059
        %v6156 = vadd.f32 %v6155, %v6067
        %v6157 = vadd.f32 %v6156, %v6075
        %v6158 = vadd.f32 %v6157, %v6083
        %v6159 = vadd.f32 %v6158, %v6091
        %v6160 = vadd.f32 %v5844, %v5852
        %v6161 = vadd.f32 %v6160, %v5860
        %v6162 = vadd.f32 %v6161, %v5868
        %v6163 = vadd.f32 %v6162, %v5876
        %v6164 = vadd.f32 %v6163, %v5884
        %v6165 = vadd.f32 %v6164, %v5892
        %v6166 = vadd.f32 %v6165, %v5900
        %v6167 = vadd.f32 %v6166, %v5908
        %v6168 = vadd.f32 %v6167, %v5916
        %v6169 = vadd.f32 %v6168, %v5924
        %v6170 = vadd.f32 %v6169, %v5932
        %v6171 = vadd.f32 %v6170, %v5940
        %v6172 = vadd.f32 %v6171, %v5948
        %v6173 = vadd.f32 %v6172, %v5956
        %v6174 = vadd.f32 %v6173, %v5964
        %v6175 = vadd.f32 %v6174, %v5972
        %v6176 = vadd.f32 %v6175, %v5980
        %v6177 = vadd.f32 %v6176, %v5988
        %v6178 = vadd.f32 %v6177, %v5996
        %v6179 = vadd.f32 %v6178, %v6004
        %v6180 = vadd.f32 %v6179, %v6012
        %v6181 = vadd.f32 %v6180, %v6020
        %v6182 = vadd.f32 %v6181, %v6028
        %v6183 = vadd.f32 %v6182, %v6036
        %v6184 = vadd.f32 %v6183, %v6044
        %v6185 = vadd.f32 %v6184, %v6052
        %v6186 = vadd.f32 %v6185, %v6060
        %v6187 = vadd.f32 %v6186, %v6068
        %v6188 = vadd.f32 %v6187, %v6076
        %v6189 = vadd.f32 %v6188, %v6084
        %v6190 = vadd.f32 %v6189, %v6092
        %v6191 = vadd.f32 %v5845, %v5853
        %v6192 = vadd.f32 %v6191, %v5861
        %v6193 = vadd.f32 %v6192, %v5869
        %v6194 = vadd.f32 %v6193, %v5877
        %v6195 = vadd.f32 %v6194, %v5885
        %v6196 = vadd.f32 %v6195, %v5893
        %v6197 = vadd.f32 %v6196, %v5901
        %v6198 = vadd.f32 %v6197, %v5909
        %v6199 = vadd.f32 %v6198, %v5917
        %v6200 = vadd.f32 %v6199, %v5925
        %v6201 = vadd.f32 %v6200, %v5933
        %v6202 = vadd.f32 %v6201, %v5941
        %v6203 = vadd.f32 %v6202, %v5949
        %v6204 = vadd.f32 %v6203, %v5957
        %v6205 = vadd.f32 %v6204, %v5965
        %v6206 = vadd.f32 %v6205, %v5973
        %v6207 = vadd.f32 %v6206, %v5981
        %v6208 = vadd.f32 %v6207, %v5989
        %v6209 = vadd.f32 %v6208, %v5997
        %v6210 = vadd.f32 %v6209, %v6005
        %v6211 = vadd.f32 %v6210, %v6013
        %v6212 = vadd.f32 %v6211, %v6021
        %v6213 = vadd.f32 %v6212, %v6029
        %v6214 = vadd.f32 %v6213, %v6037
        %v6215 = vadd.f32 %v6214, %v6045
        %v6216 = vadd.f32 %v6215, %v6053
        %v6217 = vadd.f32 %v6216, %v6061
        %v6218 = vadd.f32 %v6217, %v6069
        %v6219 = vadd.f32 %v6218, %v6077
        %v6220 = vadd.f32 %v6219, %v6085
        %v6221 = vadd.f32 %v6220, %v6093
        %v6222 = vadd.f32 %v5846, %v5854
        %v6223 = vadd.f32 %v6222, %v5862
        %v6224 = vadd.f32 %v6223, %v5870
        %v6225 = vadd.f32 %v6224, %v5878
        %v6226 = vadd.f32 %v6225, %v5886
        %v6227 = vadd.f32 %v6226, %v5894
        %v6228 = vadd.f32 %v6227, %v5902
        %v6229 = vadd.f32 %v6228, %v5910
        %v6230 = vadd.f32 %v6229, %v5918
        %v6231 = vadd.f32 %v6230, %v5926
        %v6232 = vadd.f32 %v6231, %v5934
        %v6233 = vadd.f32 %v6232, %v5942
        %v6234 = vadd.f32 %v6233, %v5950
        %v6235 = vadd.f32 %v6234, %v5958
        %v6236 = vadd.f32 %v6235, %v5966
        %v6237 = vadd.f32 %v6236, %v5974
        %v6238 = vadd.f32 %v6237, %v5982
        %v6239 = vadd.f32 %v6238, %v5990
        %v6240 = vadd.f32 %v6239, %v5998
        %v6241 = vadd.f32 %v6240, %v6006
        %v6242 = vadd.f32 %v6241, %v6014
        %v6243 = vadd.f32 %v6242, %v6022
        %v6244 = vadd.f32 %v6243, %v6030
        %v6245 = vadd.f32 %v6244, %v6038
        %v6246 = vadd.f32 %v6245, %v6046
        %v6247 = vadd.f32 %v6246, %v6054
        %v6248 = vadd.f32 %v6247, %v6062
        %v6249 = vadd.f32 %v6248, %v6070
        %v6250 = vadd.f32 %v6249, %v6078
        %v6251 = vadd.f32 %v6250, %v6086
        %v6252 = vadd.f32 %v6251, %v6094
        %v6253 = vadd.f32 %v5847, %v5855
        %v6254 = vadd.f32 %v6253, %v5863
        %v6255 = vadd.f32 %v6254, %v5871
        %v6256 = vadd.f32 %v6255, %v5879
        %v6257 = vadd.f32 %v6256, %v5887
        %v6258 = vadd.f32 %v6257, %v5895
        %v6259 = vadd.f32 %v6258, %v5903
        %v6260 = vadd.f32 %v6259, %v5911
        %v6261 = vadd.f32 %v6260, %v5919
        %v6262 = vadd.f32 %v6261, %v5927
        %v6263 = vadd.f32 %v6262, %v5935
        %v6264 = vadd.f32 %v6263, %v5943
        %v6265 = vadd.f32 %v6264, %v5951
        %v6266 = vadd.f32 %v6265, %v5959
        %v6267 = vadd.f32 %v6266, %v5967
        %v6268 = vadd.f32 %v6267, %v5975
        %v6269 = vadd.f32 %v6268, %v5983
        %v6270 = vadd.f32 %v6269, %v5991
        %v6271 = vadd.f32 %v6270, %v5999
        %v6272 = vadd.f32 %v6271, %v6007
        %v6273 = vadd.f32 %v6272, %v6015
        %v6274 = vadd.f32 %v6273, %v6023
        %v6275 = vadd.f32 %v6274, %v6031
        %v6276 = vadd.f32 %v6275, %v6039
        %v6277 = vadd.f32 %v6276, %v6047
        %v6278 = vadd.f32 %v6277, %v6055
        %v6279 = vadd.f32 %v6278, %v6063
        %v6280 = vadd.f32 %v6279, %v6071
        %v6281 = vadd.f32 %v6280, %v6079
        %v6282 = vadd.f32 %v6281, %v6087
        %v6283 = vadd.f32 %v6282, %v6095
        %v6284 = vadd.f32 %v5848, %v5856
        %v6285 = vadd.f32 %v6284, %v5864
        %v6286 = vadd.f32 %v6285, %v5872
        %v6287 = vadd.f32 %v6286, %v5880
        %v6288 = vadd.f32 %v6287, %v5888
        %v6289 = vadd.f32 %v6288, %v5896
        %v6290 = vadd.f32 %v6289, %v5904
        %v6291 = vadd.f32 %v6290, %v5912
        %v6292 = vadd.f32 %v6291, %v5920
        %v6293 = vadd.f32 %v6292, %v5928
        %v6294 = vadd.f32 %v6293, %v5936
        %v6295 = vadd.f32 %v6294, %v5944
        %v6296 = vadd.f32 %v6295, %v5952
        %v6297 = vadd.f32 %v6296, %v5960
        %v6298 = vadd.f32 %v6297, %v5968
        %v6299 = vadd.f32 %v6298, %v5976
        %v6300 = vadd.f32 %v6299, %v5984
        %v6301 = vadd.f32 %v6300, %v5992
        %v6302 = vadd.f32 %v6301, %v6000
        %v6303 = vadd.f32 %v6302, %v6008
        %v6304 = vadd.f32 %v6303, %v6016
        %v6305 = vadd.f32 %v6304, %v6024
        %v6306 = vadd.f32 %v6305, %v6032
        %v6307 = vadd.f32 %v6306, %v6040
        %v6308 = vadd.f32 %v6307, %v6048
        %v6309 = vadd.f32 %v6308, %v6056
        %v6310 = vadd.f32 %v6309, %v6064
        %v6311 = vadd.f32 %v6310, %v6072
        %v6312 = vadd.f32 %v6311, %v6080
        %v6313 = vadd.f32 %v6312, %v6088
        %v6314 = vadd.f32 %v6313, %v6096
        %v6315 = vadd.f32 %v5849, %v5857
        %v6316 = vadd.f32 %v6315, %v5865
        %v6317 = vadd.f32 %v6316, %v5873
        %v6318 = vadd.f32 %v6317, %v5881
        %v6319 = vadd.f32 %v6318, %v5889
        %v6320 = vadd.f32 %v6319, %v5897
        %v6321 = vadd.f32 %v6320, %v5905
        %v6322 = vadd.f32 %v6321, %v5913
        %v6323 = vadd.f32 %v6322, %v5921
        %v6324 = vadd.f32 %v6323, %v5929
        %v6325 = vadd.f32 %v6324, %v5937
        %v6326 = vadd.f32 %v6325, %v5945
        %v6327 = vadd.f32 %v6326, %v5953
        %v6328 = vadd.f32 %v6327, %v5961
        %v6329 = vadd.f32 %v6328, %v5969
        %v6330 = vadd.f32 %v6329, %v5977
        %v6331 = vadd.f32 %v6330, %v5985
        %v6332 = vadd.f32 %v6331, %v5993
        %v6333 = vadd.f32 %v6332, %v6001
        %v6334 = vadd.f32 %v6333, %v6009
        %v6335 = vadd.f32 %v6334, %v6017
        %v6336 = vadd.f32 %v6335, %v6025
        %v6337 = vadd.f32 %v6336, %v6033
        %v6338 = vadd.f32 %v6337, %v6041
        %v6339 = vadd.f32 %v6338, %v6049
        %v6340 = vadd.f32 %v6339, %v6057
        %v6341 = vadd.f32 %v6340, %v6065
        %v6342 = vadd.f32 %v6341, %v6073
        %v6343 = vadd.f32 %v6342, %v6081
        %v6344 = vadd.f32 %v6343, %v6089
        %v6345 = vadd.f32 %v6344, %v6097
        %6346 = vst [vmem:[%s207] sm:$0xff] %v6128
        %6347 = vst [vmem:[%s207 + $0x8] sm:$0xff] %v6159
        %6348 = vst [vmem:[%s207 + $0x10] sm:$0xff] %v6190
        %6349 = vst [vmem:[%s207 + $0x18] sm:$0xff] %v6221
        %6350 = vst [vmem:[%s207 + $0x20] sm:$0xff] %v6252
        %6351 = vst [vmem:[%s207 + $0x28] sm:$0xff] %v6283
        %6352 = vst [vmem:[%s207 + $0x30] sm:$0xff] %v6314
        %6353 = vst [vmem:[%s207 + $0x38] sm:$0xff] %v6345
        %s6354 = sand.u32 %s82, 1
        %s6355 = scalar_lea.sflag [#allocation4], %s6354
        %s6356 = sand.u32 %s82, 1
        %s6357 = smul.addr %s6356, 64
        %s6358 = scalar_lea.vmem [#allocation7], %s6357
        // Predicated region
        $region37: #{tpu_custom_call.1} parent=27 // pred_check
          %p6359 = pneg %p92
        $region38: #{tpu_custom_call.1} parent=27 // pred_check_branch
          %6361 = sbr.rel (%p6359) target = $region40
        $region39: #{tpu_custom_call.1} parent=27 // pred_region
          %6363 = vsyncadd %s6355, 0
          %s6364 = smul.addr %s22, 8
          %s6365 = smul.addr %s6364, 8
          %s6366 = scalar_lea.hbm %s2, %s6365
          %s6368 = sshll.u32 %s6358, 4
          %s6369 = int_to_ptr.vmem [resolvable:$true] %s6368
          %s6370 = sshll.u32 %s6366, 4
          %s6371 = int_to_ptr.hbm [resolvable:$true] %s6370
          %6373 = dma.vmem_to_hbm [thread:$0]  %s6369, 1024, %s6371, %s6355
        $region40: #{tpu_custom_call.1} parent=27 // pred_fallthru
          _
      $region28: #{tpu_custom_call.1} parent=5 // pred_fallthru
        _
      %p6374 = scmp.le.s32.totalorder 2, %s17
      // Predicated region
      $region41: #{tpu_custom_call.1} parent=5 // pred_check
        %p6375 = pneg %p6374
      $region42: #{tpu_custom_call.1} parent=5 // pred_check_branch
        %6377 = sbr.rel (%p6375) target = $region44
      $region43: #{tpu_custom_call.1} parent=5 // pred_region
        %s6378 = ssub.s32 %s17, 2
        // Predicated region
        $region45: #{tpu_custom_call.1} parent=43 // pred_check
          %p6379 = pneg %p98
        $region46: #{tpu_custom_call.1} parent=43 // pred_check_branch
          %6381 = sbr.rel (%p6379) target = $region48
        $region47: #{tpu_custom_call.1} parent=43 // pred_region
          %s6382 = sand.u32 %s83, 1
          %s6383 = scalar_lea.sflag [#allocation4], %s6382
          %s6384 = sand.u32 %s83, 1
          %s6385 = smul.addr %s6384, 64
          %s6386 = scalar_lea.vmem [#allocation7], %s6385
          %6388 = dma.done %s6383, 1024
        $region48: #{tpu_custom_call.1} parent=43 // pred_fallthru
          _
      $region44: #{tpu_custom_call.1} parent=5 // pred_fallthru
        _
    $region6: #{tpu_custom_call.1} parent=1 // loop_footer
      %s21 = sadd.s32 1, %s17
    $region7: #{tpu_custom_call.1} parent=1 // loop_footer_branch
      %16 = sbr.rel target = $region3
    $region8: #{tpu_custom_call.1} parent=1 // loop_exit
      _
    %6389 = vsyncpa [#allocation3], 1
    %s6390 = scalar_lea.sflag [#allocation3], 1
    %6391 = vsyncpa %s6390, 1
    %6392 = vsyncpa [#allocation6], 1
    %s6393 = scalar_lea.sflag [#allocation6], 1
    %6394 = vsyncpa %s6393, 1
    %6395 = vsyncpa [#allocation4], 1
    %s6396 = scalar_lea.sflag [#allocation4], 1
    %6397 = vsyncpa %s6396, 1

</llo_original>
